<compile_context>
chip_gen: v7x
topology: tpu7x:2x2x1
jax: 0.10.0
libtpu: 0.0.40
codegen_flags: <defaults>
</compile_context>

<pallas_src>
import math
import functools

import jax
import jax.numpy as jnp
from jax.experimental import pallas as pl
from jax.experimental.pallas import tpu as pltpu


def thalamic_rnn_kernel(*refs, dt, tau, sig_ns, noisy, Tc, K):
    if noisy:
        (inp_ref, eps_ref, x0_ref, r0_ref, vt_ref, ws_ref,
         xo_ref, ro_ref, x_scr, r_scr) = refs
    else:
        (inp_ref, x0_ref, r0_ref, vt_ref, ws_ref,
         xo_ref, ro_ref, x_scr, r_scr) = refs
        eps_ref = None

    t = pl.program_id(1)

    # load the initial state at the first time-chunk of each batch tile
    @pl.when(t == 0)
    def _():
        x_scr[...] = x0_ref[...]
        r_scr[...] = r0_ref[...]

    alpha = dt / tau
    wdt = ws_ref.dtype                              # f32 (or bf16 via param_dtype)

    x = x_scr[...]                                  # (tb, N) f32
    r = r_scr[...]                                  # (tb, N) f32

    # Tc is small (<= ~16); static unroll keeps the whole chunk visible to the scheduler.
    for s in range(Tc):
        inp_s = inp_ref[s]                          # (tb, K + Din + 1) = [r_thal | u | 1]
        r_th = inp_s[:, :K]                         # (tb, K)
        u1 = inp_s[:, K:]                           # (tb, Din + 1)

        # thalamic gating of the low-rank recurrence: gated = (r @ V^T) * r_thal
        gated = jnp.dot(r.astype(vt_ref.dtype), vt_ref[...],
                        preferred_element_type=jnp.float32) * r_th   # (tb, K)

        # one fused MXU matmul: [r | gated | u | 1] @ [J ; U^T ; W_in ; B]
        act = jnp.concatenate([r, gated, u1], axis=-1)               # (tb, N+K+Din+1)
        ssum = jnp.dot(act.astype(wdt), ws_ref[...],
                       preferred_element_type=jnp.float32)           # (tb, N)

        if noisy:
            ssum = ssum + sig_ns * eps_ref[s]

        x = (1.0 - alpha) * x + alpha * ssum
        r = jax.nn.softplus(x)

        xo_ref[s] = x
        ro_ref[s] = r

    # carry state to the next time-chunk
    x_scr[...] = x
    r_scr[...] = r


def _largest_divisor_leq(n, cap):
    cap = max(1, min(int(cap), int(n)))
    for d in range(cap, 0, -1):
        if n % d == 0:
            return d
    return 1


def thalamic_rnn_rollout(x0, r0, r_thal_seq, u_seq, W_in, J, Bb, U, V, key=None,
                         *, dt=0.05, tau=0.15, noise_scale=0.1,
                         batch_block=None, time_block=8, param_dtype=jnp.float32):
    """Run T steps of ThalamicRNN.forward in one fused pallas_call.

    Returns (x_traj, r_traj), each (T, B, N). (x_traj[-1], r_traj[-1]) is the final state.
    On v7x, pass batch_block=B//2 (>=2 'parallel' batch tiles) to use both TensorCores.
    """
    T, B, K = r_thal_seq.shape
    N = J.shape[0]
    Din = W_in.shape[0]

    tb = B if batch_block is None else batch_block
    assert B % tb == 0 and tb % 8 == 0, "batch tile must be a multiple of 8 rows"
    nb = B // tb
    Tc = _largest_divisor_leq(T, time_block)
    nt = T // Tc

    sigma = math.sqrt(2.0 * dt / tau)
    sig_ns = float(sigma * noise_scale)
    noisy = sig_ns != 0.0

    # ---- host-side glue (done once) ----
    # Stacked weight [J ; U^T ; W_in ; B] -> a single MXU matmul per step.
    Ws = jnp.concatenate([J, U.T, W_in, Bb], axis=0).astype(param_dtype)   # (N+K+Din+1, N)
    Vt = V.T.astype(param_dtype)                                           # (N, K)
    # Pack the two tiny per-step streams plus a ones column into one stream.
    inp_packed = jnp.concatenate(
        [r_thal_seq.astype(jnp.float32), u_seq.astype(jnp.float32),
         jnp.ones((T, B, 1), jnp.float32)], axis=-1)                        # (T, B, K+Din+1)

    operands = [inp_packed]
    in_specs = [pl.BlockSpec((Tc, tb, K + Din + 1), lambda b, t: (t, b, 0))]
    if noisy:
        assert key is not None, "a PRNG key is required when noise_scale != 0"
        eps = jax.random.normal(key, (T, B, N), jnp.float32)
        operands.append(eps)
        in_specs.append(pl.BlockSpec((Tc, tb, N), lambda b, t: (t, b, 0)))
    operands += [x0.astype(jnp.float32), r0.astype(jnp.float32), Vt, Ws]
    in_specs += [
        pl.BlockSpec((tb, N), lambda b, t: (b, 0)),                 # x0
        pl.BlockSpec((tb, N), lambda b, t: (b, 0)),                 # r0
        pl.BlockSpec((N, K), lambda b, t: (0, 0)),                  # V^T (resident)
        pl.BlockSpec((N + K + Din + 1, N), lambda b, t: (0, 0)),    # [J;U^T;W_in;B] (resident)
    ]

    kernel = functools.partial(thalamic_rnn_kernel, dt=float(dt), tau=float(tau),
                               sig_ns=sig_ns, noisy=noisy, Tc=Tc, K=K)

    grid_spec = pltpu.PrefetchScalarGridSpec(
        num_scalar_prefetch=0,
        grid=(nb, nt),                              # batch "parallel", time last ("arbitrary")
        in_specs=in_specs,
        out_specs=(pl.BlockSpec((Tc, tb, N), lambda b, t: (t, b, 0)),
                   pl.BlockSpec((Tc, tb, N), lambda b, t: (t, b, 0))),
        scratch_shapes=[pltpu.VMEM((tb, N), jnp.float32),    # carried x
                        pltpu.VMEM((tb, N), jnp.float32)],   # carried r
    )

    return pl.pallas_call(
        kernel,
        out_shape=(jax.ShapeDtypeStruct((T, B, N), jnp.float32),
                   jax.ShapeDtypeStruct((T, B, N), jnp.float32)),
        grid_spec=grid_spec,
        compiler_params=pltpu.CompilerParams(
            dimension_semantics=("parallel", "arbitrary")),
    )(*operands)


def reference_rollout_noiseless(x0, r0, r_thal_seq, u_seq, W_in, J, Bb, U, V, *, dt, tau):
    """Pure-JAX noiseless rollout (noise_scale = 0) used as a correctness check."""
    def step(carry, inp):
        x, r = carry
        r_th, u = inp
        rec = ((r @ V.T) * r_th) @ U.T
        pre = -x + r @ J + rec + Bb + u @ W_in
        x_new = x + dt / tau * pre
        r_new = jax.nn.softplus(x_new)
        return (x_new, r_new), (x_new, r_new)
    _, (xs, rs) = jax.lax.scan(step, (x0, r0), (r_thal_seq, u_seq))
    return xs, rs


if __name__ == "__main__":
    # small shapes consistent with the module: nneurons=128, nbg=16, input_size=8
    T, Bsz, N, K, Din = 16, 16, 128, 16, 8
    g0, dt, tau, noise_scale = 1.2, 0.05, 0.15, 0.1

    key = jax.random.PRNGKey(0)
    ks = jax.random.split(key, 9)
    f32 = jnp.float32

    # parameter init (matching __init__ scalings)
    W_in = jax.random.normal(ks[0], (Din, N), f32) / math.sqrt(N)    # I["context"]
    J = g0 * jax.random.normal(ks[1], (N, N), f32) / math.sqrt(N)    # J
    Bb = jax.random.normal(ks[2], (1, N), f32)                       # B
    U = jax.random.normal(ks[3], (N, K), f32) / math.sqrt(N)         # U
    V = jax.random.normal(ks[4], (K, N), f32) / math.sqrt(N)         # V

    # reset_state(batch_size=Bsz)
    x0 = jax.random.normal(ks[5], (Bsz, N), f32) / math.sqrt(N)
    r0 = jax.nn.softplus(x0)

    # per-step forward inputs
    r_thal_seq = jax.nn.softplus(jax.random.normal(ks[6], (T, Bsz, K), f32))
    u_seq = jax.random.normal(ks[7], (T, Bsz, Din), f32)

    # fused noisy rollout (noise generated host-side, streamed into the kernel)
    x_traj, r_traj = thalamic_rnn_rollout(x0, r0, r_thal_seq, u_seq, W_in, J, Bb, U, V,
                                          key=ks[8], dt=dt, tau=tau,
                                          noise_scale=noise_scale)
    jax.block_until_ready((x_traj, r_traj))
    assert x_traj.shape == (T, Bsz, N) and r_traj.shape == (T, Bsz, N)
    assert bool(jnp.all(jnp.isfinite(x_traj))) and bool(jnp.all(r_traj >= 0.0))

    # correctness check vs a pure-JAX reference with the noise switched off
    xk, rk = thalamic_rnn_rollout(x0, r0, r_thal_seq, u_seq, W_in, J, Bb, U, V,
                                  key=None, dt=dt, tau=tau, noise_scale=0.0)
    with jax.default_matmul_precision("highest"):
        xr, rr = reference_rollout_noiseless(x0, r0, r_thal_seq, u_seq, W_in, J, Bb, U, V,
                                             dt=dt, tau=tau)
    jax.block_until_ready((xk, rk, xr, rr))
    err = max(float(jnp.max(jnp.abs(xk - xr))), float(jnp.max(jnp.abs(rk - rr))))
    assert err < 5e-2, f"kernel/reference mismatch: {err}"

    print("KERNEL_OK")
</pallas_src>

<mosaic_0001>
module attributes {stable_mosaic.version = 11 : i64} {
  func.func @thalamic_rnn_kernel(%arg0: i32, %arg1: i32, %arg2: memref<8x16x25xf32, #tpu.memory_space<vmem>>, %arg3: memref<8x16x128xf32, #tpu.memory_space<vmem>>, %arg4: memref<16x128xf32, #tpu.memory_space<vmem>>, %arg5: memref<16x128xf32, #tpu.memory_space<vmem>>, %arg6: memref<128x16xf32, #tpu.memory_space<vmem>>, %arg7: memref<153x128xf32, #tpu.memory_space<vmem>>, %arg8: memref<8x16x128xf32, #tpu.memory_space<vmem>>, %arg9: memref<8x16x128xf32, #tpu.memory_space<vmem>>, %arg10: memref<16x128xf32, #tpu.memory_space<vmem>>, %arg11: memref<16x128xf32, #tpu.memory_space<vmem>>) attributes {dimension_semantics = [#tpu.dimension_semantics<parallel>, #tpu.dimension_semantics<arbitrary>], iteration_bounds = array<i64: 1, 2>, scalar_prefetch = 0 : i64, scratch_operands = 2 : i64, tpu.core_type = #tpu.core_type<tc>, window_params = [{transform_indices = @transform_0, window_bounds = array<i64: 8, 16, 25>}, {transform_indices = @transform_1, window_bounds = array<i64: 8, 16, 128>}, {transform_indices = @transform_2, window_bounds = array<i64: 16, 128>}, {transform_indices = @transform_3, window_bounds = array<i64: 16, 128>}, {pipeline_mode = #tpu.pipeline_mode<synchronous>, transform_indices = @transform_4, window_bounds = array<i64: 128, 16>}, {pipeline_mode = #tpu.pipeline_mode<synchronous>, transform_indices = @transform_5, window_bounds = array<i64: 153, 128>}, {transform_indices = @transform_6, window_bounds = array<i64: 8, 16, 128>}, {transform_indices = @transform_7, window_bounds = array<i64: 8, 16, 128>}]} {
    %c0_i32 = arith.constant 0 : i32
    %0 = arith.cmpi eq, %arg1, %c0_i32 : i32
    %1 = arith.extui %0 : i1 to i32
    %c0_i32_0 = arith.constant 0 : i32
    %2 = arith.cmpi ne, %1, %c0_i32_0 : i32
    scf.if %2 {
      %c0_184 = arith.constant 0 : index
      %c0_185 = arith.constant 0 : index
      %327 = vector.load %arg4[%c0_184, %c0_185] : memref<16x128xf32, #tpu.memory_space<vmem>>, vector<16x128xf32>
      %c0_186 = arith.constant 0 : index
      %c0_187 = arith.constant 0 : index
      %328 = vector.load %arg10[%c0_186, %c0_187] : memref<16x128xf32, #tpu.memory_space<vmem>>, vector<16x128xf32>
      tpu.vector_store %arg10[%c0_186, %c0_187], %327 {strides = array<i32>} : memref<16x128xf32, #tpu.memory_space<vmem>>, vector<16x128xf32>,
      %c0_188 = arith.constant 0 : index
      %c0_189 = arith.constant 0 : index
      %329 = vector.load %arg5[%c0_188, %c0_189] : memref<16x128xf32, #tpu.memory_space<vmem>>, vector<16x128xf32>
      %c0_190 = arith.constant 0 : index
      %c0_191 = arith.constant 0 : index
      %330 = vector.load %arg11[%c0_190, %c0_191] : memref<16x128xf32, #tpu.memory_space<vmem>>, vector<16x128xf32>
      tpu.vector_store %arg11[%c0_190, %c0_191], %329 {strides = array<i32>} : memref<16x128xf32, #tpu.memory_space<vmem>>, vector<16x128xf32>,
    } else {
    }
    %c0 = arith.constant 0 : index
    %c0_1 = arith.constant 0 : index
    %3 = vector.load %arg10[%c0, %c0_1] : memref<16x128xf32, #tpu.memory_space<vmem>>, vector<16x128xf32>
    %c0_2 = arith.constant 0 : index
    %c0_3 = arith.constant 0 : index
    %4 = vector.load %arg11[%c0_2, %c0_3] : memref<16x128xf32, #tpu.memory_space<vmem>>, vector<16x128xf32>
    %c0_4 = arith.constant 0 : index
    %c0_5 = arith.constant 0 : index
    %c0_6 = arith.constant 0 : index
    %5 = vector.load %arg2[%c0_4, %c0_5, %c0_6] : memref<8x16x25xf32, #tpu.memory_space<vmem>>, vector<1x16x25xf32>
    %6 = vector.shape_cast %5 : vector<1x16x25xf32> to vector<16x25xf32>
    %7 = vector.extract_strided_slice %6 {offsets = [0, 0], sizes = [16, 16], strides = [1, 1]} : vector<16x25xf32> to vector<16x16xf32>
    %8 = vector.extract_strided_slice %6 {offsets = [0, 16], sizes = [16, 9], strides = [1, 1]} : vector<16x25xf32> to vector<16x9xf32>
    %c0_7 = arith.constant 0 : index
    %c0_8 = arith.constant 0 : index
    %9 = vector.load %arg6[%c0_7, %c0_8] : memref<128x16xf32, #tpu.memory_space<vmem>>, vector<128x16xf32>
    %cst = arith.constant dense<0.000000e+00> : vector<16x16xf32>
    %10 = tpu.matmul %4, %9, %cst {dimension_numbers = #tpu.dot_dimension_numbers<[1], [0], [0], [1], [0, 0, 1, 1], [], []>} : vector<16x128xf32>, vector<128x16xf32>, vector<16x16xf32> -> vector<16x16xf32>
    %11 = arith.mulf %10, %7 : vector<16x16xf32>
    %12 = tpu.concatenate %4, %11, %8 in 1 : vector<16x128xf32>, vector<16x16xf32>, vector<16x9xf32> -> vector<16x153xf32>
    %c0_9 = arith.constant 0 : index
    %c0_10 = arith.constant 0 : index
    %13 = vector.load %arg7[%c0_9, %c0_10] : memref<153x128xf32, #tpu.memory_space<vmem>>, vector<153x128xf32>
    %cst_11 = arith.constant dense<0.000000e+00> : vector<16x128xf32>
    %14 = tpu.matmul %12, %13, %cst_11 {dimension_numbers = #tpu.dot_dimension_numbers<[1], [0], [0], [1], [0, 0, 1, 1], [], []>} : vector<16x153xf32>, vector<153x128xf32>, vector<16x128xf32> -> vector<16x128xf32>
    %c0_12 = arith.constant 0 : index
    %c0_13 = arith.constant 0 : index
    %c0_14 = arith.constant 0 : index
    %15 = vector.load %arg3[%c0_12, %c0_13, %c0_14] : memref<8x16x128xf32, #tpu.memory_space<vmem>>, vector<1x16x128xf32>
    %16 = vector.shape_cast %15 : vector<1x16x128xf32> to vector<16x128xf32>
    %cst_15 = arith.constant 0.0816496611 : f32
    %17 = vector.broadcast %cst_15 : f32 to vector<16x128xf32>
    %18 = arith.mulf %17, %16 : vector<16x128xf32>
    %19 = arith.addf %14, %18 : vector<16x128xf32>
    %cst_16 = arith.constant 0.666666686 : f32
    %20 = vector.broadcast %cst_16 : f32 to vector<16x128xf32>
    %21 = arith.mulf %20, %3 : vector<16x128xf32>
    %cst_17 = arith.constant 0.333333343 : f32
    %22 = vector.broadcast %cst_17 : f32 to vector<16x128xf32>
    %23 = arith.mulf %22, %19 : vector<16x128xf32>
    %24 = arith.addf %21, %23 : vector<16x128xf32>
    %cst_18 = arith.constant 0.000000e+00 : f32
    %25 = vector.broadcast %cst_18 : f32 to vector<16x128xf32>
    %26 = arith.maximumf %24, %25 : vector<16x128xf32>
    %27 = vector.broadcast %cst_18 : f32 to vector<16x128xf32>
    %28 = arith.subf %24, %27 : vector<16x128xf32>
    %29 = arith.cmpf one, %28, %28 : vector<16x128xf32>
    %30 = vector.broadcast %cst_18 : f32 to vector<16x128xf32>
    %31 = arith.addf %24, %30 : vector<16x128xf32>
    %32 = math.absf %28 : vector<16x128xf32>
    %cst_19 = arith.constant 0.000000e+00 : f32
    %33 = vector.broadcast %cst_19 : f32 to vector<16x128xf32>
    %34 = arith.subf %33, %32 : vector<16x128xf32>
    %35 = math.exp %34 : vector<16x128xf32>
    %36 = math.log1p %35 : vector<16x128xf32>
    %37 = arith.addf %26, %36 : vector<16x128xf32>
    %38 = arith.select %29, %31, %37 : vector<16x128xi1>, vector<16x128xf32>
    %c0_20 = arith.constant 0 : index
    %c0_21 = arith.constant 0 : index
    %c0_22 = arith.constant 0 : index
    %39 = vector.load %arg8[%c0_20, %c0_21, %c0_22] : memref<8x16x128xf32, #tpu.memory_space<vmem>>, vector<1x16x128xf32>
    %40 = vector.shape_cast %39 : vector<1x16x128xf32> to vector<16x128xf32>
    %41 = vector.shape_cast %24 : vector<16x128xf32> to vector<1x16x128xf32>
    tpu.vector_store %arg8[%c0_20, %c0_21, %c0_22], %41 {strides = array<i32>} : memref<8x16x128xf32, #tpu.memory_space<vmem>>, vector<1x16x128xf32>,
    %c0_23 = arith.constant 0 : index
    %c0_24 = arith.constant 0 : index
    %c0_25 = arith.constant 0 : index
    %42 = vector.load %arg9[%c0_23, %c0_24, %c0_25] : memref<8x16x128xf32, #tpu.memory_space<vmem>>, vector<1x16x128xf32>
    %43 = vector.shape_cast %42 : vector<1x16x128xf32> to vector<16x128xf32>
    %44 = vector.shape_cast %38 : vector<16x128xf32> to vector<1x16x128xf32>
    tpu.vector_store %arg9[%c0_23, %c0_24, %c0_25], %44 {strides = array<i32>} : memref<8x16x128xf32, #tpu.memory_space<vmem>>, vector<1x16x128xf32>,
    %c1 = arith.constant 1 : index
    %c0_26 = arith.constant 0 : index
    %c0_27 = arith.constant 0 : index
    %45 = vector.load %arg2[%c1, %c0_26, %c0_27] : memref<8x16x25xf32, #tpu.memory_space<vmem>>, vector<1x16x25xf32>
    %46 = vector.shape_cast %45 : vector<1x16x25xf32> to vector<16x25xf32>
    %47 = vector.extract_strided_slice %46 {offsets = [0, 0], sizes = [16, 16], strides = [1, 1]} : vector<16x25xf32> to vector<16x16xf32>
    %48 = vector.extract_strided_slice %46 {offsets = [0, 16], sizes = [16, 9], strides = [1, 1]} : vector<16x25xf32> to vector<16x9xf32>
    %c0_28 = arith.constant 0 : index
    %c0_29 = arith.constant 0 : index
    %49 = vector.load %arg6[%c0_28, %c0_29] : memref<128x16xf32, #tpu.memory_space<vmem>>, vector<128x16xf32>
    %cst_30 = arith.constant dense<0.000000e+00> : vector<16x16xf32>
    %50 = tpu.matmul %38, %49, %cst_30 {dimension_numbers = #tpu.dot_dimension_numbers<[1], [0], [0], [1], [0, 0, 1, 1], [], []>} : vector<16x128xf32>, vector<128x16xf32>, vector<16x16xf32> -> vector<16x16xf32>
    %51 = arith.mulf %50, %47 : vector<16x16xf32>
    %52 = tpu.concatenate %38, %51, %48 in 1 : vector<16x128xf32>, vector<16x16xf32>, vector<16x9xf32> -> vector<16x153xf32>
    %c0_31 = arith.constant 0 : index
    %c0_32 = arith.constant 0 : index
    %53 = vector.load %arg7[%c0_31, %c0_32] : memref<153x128xf32, #tpu.memory_space<vmem>>, vector<153x128xf32>
    %cst_33 = arith.constant dense<0.000000e+00> : vector<16x128xf32>
    %54 = tpu.matmul %52, %53, %cst_33 {dimension_numbers = #tpu.dot_dimension_numbers<[1], [0], [0], [1], [0, 0, 1, 1], [], []>} : vector<16x153xf32>, vector<153x128xf32>, vector<16x128xf32> -> vector<16x128xf32>
    %c1_34 = arith.constant 1 : index
    %c0_35 = arith.constant 0 : index
    %c0_36 = arith.constant 0 : index
    %55 = vector.load %arg3[%c1_34, %c0_35, %c0_36] : memref<8x16x128xf32, #tpu.memory_space<vmem>>, vector<1x16x128xf32>
    %56 = vector.shape_cast %55 : vector<1x16x128xf32> to vector<16x128xf32>
    %cst_37 = arith.constant 0.0816496611 : f32
    %57 = vector.broadcast %cst_37 : f32 to vector<16x128xf32>
    %58 = arith.mulf %57, %56 : vector<16x128xf32>
    %59 = arith.addf %54, %58 : vector<16x128xf32>
    %cst_38 = arith.constant 0.666666686 : f32
    %60 = vector.broadcast %cst_38 : f32 to vector<16x128xf32>
    %61 = arith.mulf %60, %24 : vector<16x128xf32>
    %cst_39 = arith.constant 0.333333343 : f32
    %62 = vector.broadcast %cst_39 : f32 to vector<16x128xf32>
    %63 = arith.mulf %62, %59 : vector<16x128xf32>
    %64 = arith.addf %61, %63 : vector<16x128xf32>
    %cst_40 = arith.constant 0.000000e+00 : f32
    %65 = vector.broadcast %cst_40 : f32 to vector<16x128xf32>
    %66 = arith.maximumf %64, %65 : vector<16x128xf32>
    %67 = vector.broadcast %cst_40 : f32 to vector<16x128xf32>
    %68 = arith.subf %64, %67 : vector<16x128xf32>
    %69 = arith.cmpf one, %68, %68 : vector<16x128xf32>
    %70 = vector.broadcast %cst_40 : f32 to vector<16x128xf32>
    %71 = arith.addf %64, %70 : vector<16x128xf32>
    %72 = math.absf %68 : vector<16x128xf32>
    %cst_41 = arith.constant 0.000000e+00 : f32
    %73 = vector.broadcast %cst_41 : f32 to vector<16x128xf32>
    %74 = arith.subf %73, %72 : vector<16x128xf32>
    %75 = math.exp %74 : vector<16x128xf32>
    %76 = math.log1p %75 : vector<16x128xf32>
    %77 = arith.addf %66, %76 : vector<16x128xf32>
    %78 = arith.select %69, %71, %77 : vector<16x128xi1>, vector<16x128xf32>
    %c1_42 = arith.constant 1 : index
    %c0_43 = arith.constant 0 : index
    %c0_44 = arith.constant 0 : index
    %79 = vector.load %arg8[%c1_42, %c0_43, %c0_44] : memref<8x16x128xf32, #tpu.memory_space<vmem>>, vector<1x16x128xf32>
    %80 = vector.shape_cast %79 : vector<1x16x128xf32> to vector<16x128xf32>
    %81 = vector.shape_cast %64 : vector<16x128xf32> to vector<1x16x128xf32>
    tpu.vector_store %arg8[%c1_42, %c0_43, %c0_44], %81 {strides = array<i32>} : memref<8x16x128xf32, #tpu.memory_space<vmem>>, vector<1x16x128xf32>,
    %c1_45 = arith.constant 1 : index
    %c0_46 = arith.constant 0 : index
    %c0_47 = arith.constant 0 : index
    %82 = vector.load %arg9[%c1_45, %c0_46, %c0_47] : memref<8x16x128xf32, #tpu.memory_space<vmem>>, vector<1x16x128xf32>
    %83 = vector.shape_cast %82 : vector<1x16x128xf32> to vector<16x128xf32>
    %84 = vector.shape_cast %78 : vector<16x128xf32> to vector<1x16x128xf32>
    tpu.vector_store %arg9[%c1_45, %c0_46, %c0_47], %84 {strides = array<i32>} : memref<8x16x128xf32, #tpu.memory_space<vmem>>, vector<1x16x128xf32>,
    %c2 = arith.constant 2 : index
    %c0_48 = arith.constant 0 : index
    %c0_49 = arith.constant 0 : index
    %85 = vector.load %arg2[%c2, %c0_48, %c0_49] : memref<8x16x25xf32, #tpu.memory_space<vmem>>, vector<1x16x25xf32>
    %86 = vector.shape_cast %85 : vector<1x16x25xf32> to vector<16x25xf32>
    %87 = vector.extract_strided_slice %86 {offsets = [0, 0], sizes = [16, 16], strides = [1, 1]} : vector<16x25xf32> to vector<16x16xf32>
    %88 = vector.extract_strided_slice %86 {offsets = [0, 16], sizes = [16, 9], strides = [1, 1]} : vector<16x25xf32> to vector<16x9xf32>
    %c0_50 = arith.constant 0 : index
    %c0_51 = arith.constant 0 : index
    %89 = vector.load %arg6[%c0_50, %c0_51] : memref<128x16xf32, #tpu.memory_space<vmem>>, vector<128x16xf32>
    %cst_52 = arith.constant dense<0.000000e+00> : vector<16x16xf32>
    %90 = tpu.matmul %78, %89, %cst_52 {dimension_numbers = #tpu.dot_dimension_numbers<[1], [0], [0], [1], [0, 0, 1, 1], [], []>} : vector<16x128xf32>, vector<128x16xf32>, vector<16x16xf32> -> vector<16x16xf32>
    %91 = arith.mulf %90, %87 : vector<16x16xf32>
    %92 = tpu.concatenate %78, %91, %88 in 1 : vector<16x128xf32>, vector<16x16xf32>, vector<16x9xf32> -> vector<16x153xf32>
    %c0_53 = arith.constant 0 : index
    %c0_54 = arith.constant 0 : index
    %93 = vector.load %arg7[%c0_53, %c0_54] : memref<153x128xf32, #tpu.memory_space<vmem>>, vector<153x128xf32>
    %cst_55 = arith.constant dense<0.000000e+00> : vector<16x128xf32>
    %94 = tpu.matmul %92, %93, %cst_55 {dimension_numbers = #tpu.dot_dimension_numbers<[1], [0], [0], [1], [0, 0, 1, 1], [], []>} : vector<16x153xf32>, vector<153x128xf32>, vector<16x128xf32> -> vector<16x128xf32>
    %c2_56 = arith.constant 2 : index
    %c0_57 = arith.constant 0 : index
    %c0_58 = arith.constant 0 : index
    %95 = vector.load %arg3[%c2_56, %c0_57, %c0_58] : memref<8x16x128xf32, #tpu.memory_space<vmem>>, vector<1x16x128xf32>
    %96 = vector.shape_cast %95 : vector<1x16x128xf32> to vector<16x128xf32>
    %cst_59 = arith.constant 0.0816496611 : f32
    %97 = vector.broadcast %cst_59 : f32 to vector<16x128xf32>
    %98 = arith.mulf %97, %96 : vector<16x128xf32>
    %99 = arith.addf %94, %98 : vector<16x128xf32>
    %cst_60 = arith.constant 0.666666686 : f32
    %100 = vector.broadcast %cst_60 : f32 to vector<16x128xf32>
    %101 = arith.mulf %100, %64 : vector<16x128xf32>
    %cst_61 = arith.constant 0.333333343 : f32
    %102 = vector.broadcast %cst_61 : f32 to vector<16x128xf32>
    %103 = arith.mulf %102, %99 : vector<16x128xf32>
    %104 = arith.addf %101, %103 : vector<16x128xf32>
    %cst_62 = arith.constant 0.000000e+00 : f32
    %105 = vector.broadcast %cst_62 : f32 to vector<16x128xf32>
    %106 = arith.maximumf %104, %105 : vector<16x128xf32>
    %107 = vector.broadcast %cst_62 : f32 to vector<16x128xf32>
    %108 = arith.subf %104, %107 : vector<16x128xf32>
    %109 = arith.cmpf one, %108, %108 : vector<16x128xf32>
    %110 = vector.broadcast %cst_62 : f32 to vector<16x128xf32>
    %111 = arith.addf %104, %110 : vector<16x128xf32>
    %112 = math.absf %108 : vector<16x128xf32>
    %cst_63 = arith.constant 0.000000e+00 : f32
    %113 = vector.broadcast %cst_63 : f32 to vector<16x128xf32>
    %114 = arith.subf %113, %112 : vector<16x128xf32>
    %115 = math.exp %114 : vector<16x128xf32>
    %116 = math.log1p %115 : vector<16x128xf32>
    %117 = arith.addf %106, %116 : vector<16x128xf32>
    %118 = arith.select %109, %111, %117 : vector<16x128xi1>, vector<16x128xf32>
    %c2_64 = arith.constant 2 : index
    %c0_65 = arith.constant 0 : index
    %c0_66 = arith.constant 0 : index
    %119 = vector.load %arg8[%c2_64, %c0_65, %c0_66] : memref<8x16x128xf32, #tpu.memory_space<vmem>>, vector<1x16x128xf32>
    %120 = vector.shape_cast %119 : vector<1x16x128xf32> to vector<16x128xf32>
    %121 = vector.shape_cast %104 : vector<16x128xf32> to vector<1x16x128xf32>
    tpu.vector_store %arg8[%c2_64, %c0_65, %c0_66], %121 {strides = array<i32>} : memref<8x16x128xf32, #tpu.memory_space<vmem>>, vector<1x16x128xf32>,
    %c2_67 = arith.constant 2 : index
    %c0_68 = arith.constant 0 : index
    %c0_69 = arith.constant 0 : index
    %122 = vector.load %arg9[%c2_67, %c0_68, %c0_69] : memref<8x16x128xf32, #tpu.memory_space<vmem>>, vector<1x16x128xf32>
    %123 = vector.shape_cast %122 : vector<1x16x128xf32> to vector<16x128xf32>
    %124 = vector.shape_cast %118 : vector<16x128xf32> to vector<1x16x128xf32>
    tpu.vector_store %arg9[%c2_67, %c0_68, %c0_69], %124 {strides = array<i32>} : memref<8x16x128xf32, #tpu.memory_space<vmem>>, vector<1x16x128xf32>,
    %c3 = arith.constant 3 : index
    %c0_70 = arith.constant 0 : index
    %c0_71 = arith.constant 0 : index
    %125 = vector.load %arg2[%c3, %c0_70, %c0_71] : memref<8x16x25xf32, #tpu.memory_space<vmem>>, vector<1x16x25xf32>
    %126 = vector.shape_cast %125 : vector<1x16x25xf32> to vector<16x25xf32>
    %127 = vector.extract_strided_slice %126 {offsets = [0, 0], sizes = [16, 16], strides = [1, 1]} : vector<16x25xf32> to vector<16x16xf32>
    %128 = vector.extract_strided_slice %126 {offsets = [0, 16], sizes = [16, 9], strides = [1, 1]} : vector<16x25xf32> to vector<16x9xf32>
    %c0_72 = arith.constant 0 : index
    %c0_73 = arith.constant 0 : index
    %129 = vector.load %arg6[%c0_72, %c0_73] : memref<128x16xf32, #tpu.memory_space<vmem>>, vector<128x16xf32>
    %cst_74 = arith.constant dense<0.000000e+00> : vector<16x16xf32>
    %130 = tpu.matmul %118, %129, %cst_74 {dimension_numbers = #tpu.dot_dimension_numbers<[1], [0], [0], [1], [0, 0, 1, 1], [], []>} : vector<16x128xf32>, vector<128x16xf32>, vector<16x16xf32> -> vector<16x16xf32>
    %131 = arith.mulf %130, %127 : vector<16x16xf32>
    %132 = tpu.concatenate %118, %131, %128 in 1 : vector<16x128xf32>, vector<16x16xf32>, vector<16x9xf32> -> vector<16x153xf32>
    %c0_75 = arith.constant 0 : index
    %c0_76 = arith.constant 0 : index
    %133 = vector.load %arg7[%c0_75, %c0_76] : memref<153x128xf32, #tpu.memory_space<vmem>>, vector<153x128xf32>
    %cst_77 = arith.constant dense<0.000000e+00> : vector<16x128xf32>
    %134 = tpu.matmul %132, %133, %cst_77 {dimension_numbers = #tpu.dot_dimension_numbers<[1], [0], [0], [1], [0, 0, 1, 1], [], []>} : vector<16x153xf32>, vector<153x128xf32>, vector<16x128xf32> -> vector<16x128xf32>
    %c3_78 = arith.constant 3 : index
    %c0_79 = arith.constant 0 : index
    %c0_80 = arith.constant 0 : index
    %135 = vector.load %arg3[%c3_78, %c0_79, %c0_80] : memref<8x16x128xf32, #tpu.memory_space<vmem>>, vector<1x16x128xf32>
    %136 = vector.shape_cast %135 : vector<1x16x128xf32> to vector<16x128xf32>
    %cst_81 = arith.constant 0.0816496611 : f32
    %137 = vector.broadcast %cst_81 : f32 to vector<16x128xf32>
    %138 = arith.mulf %137, %136 : vector<16x128xf32>
    %139 = arith.addf %134, %138 : vector<16x128xf32>
    %cst_82 = arith.constant 0.666666686 : f32
    %140 = vector.broadcast %cst_82 : f32 to vector<16x128xf32>
    %141 = arith.mulf %140, %104 : vector<16x128xf32>
    %cst_83 = arith.constant 0.333333343 : f32
    %142 = vector.broadcast %cst_83 : f32 to vector<16x128xf32>
    %143 = arith.mulf %142, %139 : vector<16x128xf32>
    %144 = arith.addf %141, %143 : vector<16x128xf32>
    %cst_84 = arith.constant 0.000000e+00 : f32
    %145 = vector.broadcast %cst_84 : f32 to vector<16x128xf32>
    %146 = arith.maximumf %144, %145 : vector<16x128xf32>
    %147 = vector.broadcast %cst_84 : f32 to vector<16x128xf32>
    %148 = arith.subf %144, %147 : vector<16x128xf32>
    %149 = arith.cmpf one, %148, %148 : vector<16x128xf32>
    %150 = vector.broadcast %cst_84 : f32 to vector<16x128xf32>
    %151 = arith.addf %144, %150 : vector<16x128xf32>
    %152 = math.absf %148 : vector<16x128xf32>
    %cst_85 = arith.constant 0.000000e+00 : f32
    %153 = vector.broadcast %cst_85 : f32 to vector<16x128xf32>
    %154 = arith.subf %153, %152 : vector<16x128xf32>
    %155 = math.exp %154 : vector<16x128xf32>
    %156 = math.log1p %155 : vector<16x128xf32>
    %157 = arith.addf %146, %156 : vector<16x128xf32>
    %158 = arith.select %149, %151, %157 : vector<16x128xi1>, vector<16x128xf32>
    %c3_86 = arith.constant 3 : index
    %c0_87 = arith.constant 0 : index
    %c0_88 = arith.constant 0 : index
    %159 = vector.load %arg8[%c3_86, %c0_87, %c0_88] : memref<8x16x128xf32, #tpu.memory_space<vmem>>, vector<1x16x128xf32>
    %160 = vector.shape_cast %159 : vector<1x16x128xf32> to vector<16x128xf32>
    %161 = vector.shape_cast %144 : vector<16x128xf32> to vector<1x16x128xf32>
    tpu.vector_store %arg8[%c3_86, %c0_87, %c0_88], %161 {strides = array<i32>} : memref<8x16x128xf32, #tpu.memory_space<vmem>>, vector<1x16x128xf32>,
    %c3_89 = arith.constant 3 : index
    %c0_90 = arith.constant 0 : index
    %c0_91 = arith.constant 0 : index
    %162 = vector.load %arg9[%c3_89, %c0_90, %c0_91] : memref<8x16x128xf32, #tpu.memory_space<vmem>>, vector<1x16x128xf32>
    %163 = vector.shape_cast %162 : vector<1x16x128xf32> to vector<16x128xf32>
    %164 = vector.shape_cast %158 : vector<16x128xf32> to vector<1x16x128xf32>
    tpu.vector_store %arg9[%c3_89, %c0_90, %c0_91], %164 {strides = array<i32>} : memref<8x16x128xf32, #tpu.memory_space<vmem>>, vector<1x16x128xf32>,
    %c4 = arith.constant 4 : index
    %c0_92 = arith.constant 0 : index
    %c0_93 = arith.constant 0 : index
    %165 = vector.load %arg2[%c4, %c0_92, %c0_93] : memref<8x16x25xf32, #tpu.memory_space<vmem>>, vector<1x16x25xf32>
    %166 = vector.shape_cast %165 : vector<1x16x25xf32> to vector<16x25xf32>
    %167 = vector.extract_strided_slice %166 {offsets = [0, 0], sizes = [16, 16], strides = [1, 1]} : vector<16x25xf32> to vector<16x16xf32>
    %168 = vector.extract_strided_slice %166 {offsets = [0, 16], sizes = [16, 9], strides = [1, 1]} : vector<16x25xf32> to vector<16x9xf32>
    %c0_94 = arith.constant 0 : index
    %c0_95 = arith.constant 0 : index
    %169 = vector.load %arg6[%c0_94, %c0_95] : memref<128x16xf32, #tpu.memory_space<vmem>>, vector<128x16xf32>
    %cst_96 = arith.constant dense<0.000000e+00> : vector<16x16xf32>
    %170 = tpu.matmul %158, %169, %cst_96 {dimension_numbers = #tpu.dot_dimension_numbers<[1], [0], [0], [1], [0, 0, 1, 1], [], []>} : vector<16x128xf32>, vector<128x16xf32>, vector<16x16xf32> -> vector<16x16xf32>
    %171 = arith.mulf %170, %167 : vector<16x16xf32>
    %172 = tpu.concatenate %158, %171, %168 in 1 : vector<16x128xf32>, vector<16x16xf32>, vector<16x9xf32> -> vector<16x153xf32>
    %c0_97 = arith.constant 0 : index
    %c0_98 = arith.constant 0 : index
    %173 = vector.load %arg7[%c0_97, %c0_98] : memref<153x128xf32, #tpu.memory_space<vmem>>, vector<153x128xf32>
    %cst_99 = arith.constant dense<0.000000e+00> : vector<16x128xf32>
    %174 = tpu.matmul %172, %173, %cst_99 {dimension_numbers = #tpu.dot_dimension_numbers<[1], [0], [0], [1], [0, 0, 1, 1], [], []>} : vector<16x153xf32>, vector<153x128xf32>, vector<16x128xf32> -> vector<16x128xf32>
    %c4_100 = arith.constant 4 : index
    %c0_101 = arith.constant 0 : index
    %c0_102 = arith.constant 0 : index
    %175 = vector.load %arg3[%c4_100, %c0_101, %c0_102] : memref<8x16x128xf32, #tpu.memory_space<vmem>>, vector<1x16x128xf32>
    %176 = vector.shape_cast %175 : vector<1x16x128xf32> to vector<16x128xf32>
    %cst_103 = arith.constant 0.0816496611 : f32
    %177 = vector.broadcast %cst_103 : f32 to vector<16x128xf32>
    %178 = arith.mulf %177, %176 : vector<16x128xf32>
    %179 = arith.addf %174, %178 : vector<16x128xf32>
    %cst_104 = arith.constant 0.666666686 : f32
    %180 = vector.broadcast %cst_104 : f32 to vector<16x128xf32>
    %181 = arith.mulf %180, %144 : vector<16x128xf32>
    %cst_105 = arith.constant 0.333333343 : f32
    %182 = vector.broadcast %cst_105 : f32 to vector<16x128xf32>
    %183 = arith.mulf %182, %179 : vector<16x128xf32>
    %184 = arith.addf %181, %183 : vector<16x128xf32>
    %cst_106 = arith.constant 0.000000e+00 : f32
    %185 = vector.broadcast %cst_106 : f32 to vector<16x128xf32>
    %186 = arith.maximumf %184, %185 : vector<16x128xf32>
    %187 = vector.broadcast %cst_106 : f32 to vector<16x128xf32>
    %188 = arith.subf %184, %187 : vector<16x128xf32>
    %189 = arith.cmpf one, %188, %188 : vector<16x128xf32>
    %190 = vector.broadcast %cst_106 : f32 to vector<16x128xf32>
    %191 = arith.addf %184, %190 : vector<16x128xf32>
    %192 = math.absf %188 : vector<16x128xf32>
    %cst_107 = arith.constant 0.000000e+00 : f32
    %193 = vector.broadcast %cst_107 : f32 to vector<16x128xf32>
    %194 = arith.subf %193, %192 : vector<16x128xf32>
    %195 = math.exp %194 : vector<16x128xf32>
    %196 = math.log1p %195 : vector<16x128xf32>
    %197 = arith.addf %186, %196 : vector<16x128xf32>
    %198 = arith.select %189, %191, %197 : vector<16x128xi1>, vector<16x128xf32>
    %c4_108 = arith.constant 4 : index
    %c0_109 = arith.constant 0 : index
    %c0_110 = arith.constant 0 : index
    %199 = vector.load %arg8[%c4_108, %c0_109, %c0_110] : memref<8x16x128xf32, #tpu.memory_space<vmem>>, vector<1x16x128xf32>
    %200 = vector.shape_cast %199 : vector<1x16x128xf32> to vector<16x128xf32>
    %201 = vector.shape_cast %184 : vector<16x128xf32> to vector<1x16x128xf32>
    tpu.vector_store %arg8[%c4_108, %c0_109, %c0_110], %201 {strides = array<i32>} : memref<8x16x128xf32, #tpu.memory_space<vmem>>, vector<1x16x128xf32>,
    %c4_111 = arith.constant 4 : index
    %c0_112 = arith.constant 0 : index
    %c0_113 = arith.constant 0 : index
    %202 = vector.load %arg9[%c4_111, %c0_112, %c0_113] : memref<8x16x128xf32, #tpu.memory_space<vmem>>, vector<1x16x128xf32>
    %203 = vector.shape_cast %202 : vector<1x16x128xf32> to vector<16x128xf32>
    %204 = vector.shape_cast %198 : vector<16x128xf32> to vector<1x16x128xf32>
    tpu.vector_store %arg9[%c4_111, %c0_112, %c0_113], %204 {strides = array<i32>} : memref<8x16x128xf32, #tpu.memory_space<vmem>>, vector<1x16x128xf32>,
    %c5 = arith.constant 5 : index
    %c0_114 = arith.constant 0 : index
    %c0_115 = arith.constant 0 : index
    %205 = vector.load %arg2[%c5, %c0_114, %c0_115] : memref<8x16x25xf32, #tpu.memory_space<vmem>>, vector<1x16x25xf32>
    %206 = vector.shape_cast %205 : vector<1x16x25xf32> to vector<16x25xf32>
    %207 = vector.extract_strided_slice %206 {offsets = [0, 0], sizes = [16, 16], strides = [1, 1]} : vector<16x25xf32> to vector<16x16xf32>
    %208 = vector.extract_strided_slice %206 {offsets = [0, 16], sizes = [16, 9], strides = [1, 1]} : vector<16x25xf32> to vector<16x9xf32>
    %c0_116 = arith.constant 0 : index
    %c0_117 = arith.constant 0 : index
    %209 = vector.load %arg6[%c0_116, %c0_117] : memref<128x16xf32, #tpu.memory_space<vmem>>, vector<128x16xf32>
    %cst_118 = arith.constant dense<0.000000e+00> : vector<16x16xf32>
    %210 = tpu.matmul %198, %209, %cst_118 {dimension_numbers = #tpu.dot_dimension_numbers<[1], [0], [0], [1], [0, 0, 1, 1], [], []>} : vector<16x128xf32>, vector<128x16xf32>, vector<16x16xf32> -> vector<16x16xf32>
    %211 = arith.mulf %210, %207 : vector<16x16xf32>
    %212 = tpu.concatenate %198, %211, %208 in 1 : vector<16x128xf32>, vector<16x16xf32>, vector<16x9xf32> -> vector<16x153xf32>
    %c0_119 = arith.constant 0 : index
    %c0_120 = arith.constant 0 : index
    %213 = vector.load %arg7[%c0_119, %c0_120] : memref<153x128xf32, #tpu.memory_space<vmem>>, vector<153x128xf32>
    %cst_121 = arith.constant dense<0.000000e+00> : vector<16x128xf32>
    %214 = tpu.matmul %212, %213, %cst_121 {dimension_numbers = #tpu.dot_dimension_numbers<[1], [0], [0], [1], [0, 0, 1, 1], [], []>} : vector<16x153xf32>, vector<153x128xf32>, vector<16x128xf32> -> vector<16x128xf32>
    %c5_122 = arith.constant 5 : index
    %c0_123 = arith.constant 0 : index
    %c0_124 = arith.constant 0 : index
    %215 = vector.load %arg3[%c5_122, %c0_123, %c0_124] : memref<8x16x128xf32, #tpu.memory_space<vmem>>, vector<1x16x128xf32>
    %216 = vector.shape_cast %215 : vector<1x16x128xf32> to vector<16x128xf32>
    %cst_125 = arith.constant 0.0816496611 : f32
    %217 = vector.broadcast %cst_125 : f32 to vector<16x128xf32>
    %218 = arith.mulf %217, %216 : vector<16x128xf32>
    %219 = arith.addf %214, %218 : vector<16x128xf32>
    %cst_126 = arith.constant 0.666666686 : f32
    %220 = vector.broadcast %cst_126 : f32 to vector<16x128xf32>
    %221 = arith.mulf %220, %184 : vector<16x128xf32>
    %cst_127 = arith.constant 0.333333343 : f32
    %222 = vector.broadcast %cst_127 : f32 to vector<16x128xf32>
    %223 = arith.mulf %222, %219 : vector<16x128xf32>
    %224 = arith.addf %221, %223 : vector<16x128xf32>
    %cst_128 = arith.constant 0.000000e+00 : f32
    %225 = vector.broadcast %cst_128 : f32 to vector<16x128xf32>
    %226 = arith.maximumf %224, %225 : vector<16x128xf32>
    %227 = vector.broadcast %cst_128 : f32 to vector<16x128xf32>
    %228 = arith.subf %224, %227 : vector<16x128xf32>
    %229 = arith.cmpf one, %228, %228 : vector<16x128xf32>
    %230 = vector.broadcast %cst_128 : f32 to vector<16x128xf32>
    %231 = arith.addf %224, %230 : vector<16x128xf32>
    %232 = math.absf %228 : vector<16x128xf32>
    %cst_129 = arith.constant 0.000000e+00 : f32
    %233 = vector.broadcast %cst_129 : f32 to vector<16x128xf32>
    %234 = arith.subf %233, %232 : vector<16x128xf32>
    %235 = math.exp %234 : vector<16x128xf32>
    %236 = math.log1p %235 : vector<16x128xf32>
    %237 = arith.addf %226, %236 : vector<16x128xf32>
    %238 = arith.select %229, %231, %237 : vector<16x128xi1>, vector<16x128xf32>
    %c5_130 = arith.constant 5 : index
    %c0_131 = arith.constant 0 : index
    %c0_132 = arith.constant 0 : index
    %239 = vector.load %arg8[%c5_130, %c0_131, %c0_132] : memref<8x16x128xf32, #tpu.memory_space<vmem>>, vector<1x16x128xf32>
    %240 = vector.shape_cast %239 : vector<1x16x128xf32> to vector<16x128xf32>
    %241 = vector.shape_cast %224 : vector<16x128xf32> to vector<1x16x128xf32>
    tpu.vector_store %arg8[%c5_130, %c0_131, %c0_132], %241 {strides = array<i32>} : memref<8x16x128xf32, #tpu.memory_space<vmem>>, vector<1x16x128xf32>,
    %c5_133 = arith.constant 5 : index
    %c0_134 = arith.constant 0 : index
    %c0_135 = arith.constant 0 : index
    %242 = vector.load %arg9[%c5_133, %c0_134, %c0_135] : memref<8x16x128xf32, #tpu.memory_space<vmem>>, vector<1x16x128xf32>
    %243 = vector.shape_cast %242 : vector<1x16x128xf32> to vector<16x128xf32>
    %244 = vector.shape_cast %238 : vector<16x128xf32> to vector<1x16x128xf32>
    tpu.vector_store %arg9[%c5_133, %c0_134, %c0_135], %244 {strides = array<i32>} : memref<8x16x128xf32, #tpu.memory_space<vmem>>, vector<1x16x128xf32>,
    %c6 = arith.constant 6 : index
    %c0_136 = arith.constant 0 : index
    %c0_137 = arith.constant 0 : index
    %245 = vector.load %arg2[%c6, %c0_136, %c0_137] : memref<8x16x25xf32, #tpu.memory_space<vmem>>, vector<1x16x25xf32>
    %246 = vector.shape_cast %245 : vector<1x16x25xf32> to vector<16x25xf32>
    %247 = vector.extract_strided_slice %246 {offsets = [0, 0], sizes = [16, 16], strides = [1, 1]} : vector<16x25xf32> to vector<16x16xf32>
    %248 = vector.extract_strided_slice %246 {offsets = [0, 16], sizes = [16, 9], strides = [1, 1]} : vector<16x25xf32> to vector<16x9xf32>
    %c0_138 = arith.constant 0 : index
    %c0_139 = arith.constant 0 : index
    %249 = vector.load %arg6[%c0_138, %c0_139] : memref<128x16xf32, #tpu.memory_space<vmem>>, vector<128x16xf32>
    %cst_140 = arith.constant dense<0.000000e+00> : vector<16x16xf32>
    %250 = tpu.matmul %238, %249, %cst_140 {dimension_numbers = #tpu.dot_dimension_numbers<[1], [0], [0], [1], [0, 0, 1, 1], [], []>} : vector<16x128xf32>, vector<128x16xf32>, vector<16x16xf32> -> vector<16x16xf32>
    %251 = arith.mulf %250, %247 : vector<16x16xf32>
    %252 = tpu.concatenate %238, %251, %248 in 1 : vector<16x128xf32>, vector<16x16xf32>, vector<16x9xf32> -> vector<16x153xf32>
    %c0_141 = arith.constant 0 : index
    %c0_142 = arith.constant 0 : index
    %253 = vector.load %arg7[%c0_141, %c0_142] : memref<153x128xf32, #tpu.memory_space<vmem>>, vector<153x128xf32>
    %cst_143 = arith.constant dense<0.000000e+00> : vector<16x128xf32>
    %254 = tpu.matmul %252, %253, %cst_143 {dimension_numbers = #tpu.dot_dimension_numbers<[1], [0], [0], [1], [0, 0, 1, 1], [], []>} : vector<16x153xf32>, vector<153x128xf32>, vector<16x128xf32> -> vector<16x128xf32>
    %c6_144 = arith.constant 6 : index
    %c0_145 = arith.constant 0 : index
    %c0_146 = arith.constant 0 : index
    %255 = vector.load %arg3[%c6_144, %c0_145, %c0_146] : memref<8x16x128xf32, #tpu.memory_space<vmem>>, vector<1x16x128xf32>
    %256 = vector.shape_cast %255 : vector<1x16x128xf32> to vector<16x128xf32>
    %cst_147 = arith.constant 0.0816496611 : f32
    %257 = vector.broadcast %cst_147 : f32 to vector<16x128xf32>
    %258 = arith.mulf %257, %256 : vector<16x128xf32>
    %259 = arith.addf %254, %258 : vector<16x128xf32>
    %cst_148 = arith.constant 0.666666686 : f32
    %260 = vector.broadcast %cst_148 : f32 to vector<16x128xf32>
    %261 = arith.mulf %260, %224 : vector<16x128xf32>
    %cst_149 = arith.constant 0.333333343 : f32
    %262 = vector.broadcast %cst_149 : f32 to vector<16x128xf32>
    %263 = arith.mulf %262, %259 : vector<16x128xf32>
    %264 = arith.addf %261, %263 : vector<16x128xf32>
    %cst_150 = arith.constant 0.000000e+00 : f32
    %265 = vector.broadcast %cst_150 : f32 to vector<16x128xf32>
    %266 = arith.maximumf %264, %265 : vector<16x128xf32>
    %267 = vector.broadcast %cst_150 : f32 to vector<16x128xf32>
    %268 = arith.subf %264, %267 : vector<16x128xf32>
    %269 = arith.cmpf one, %268, %268 : vector<16x128xf32>
    %270 = vector.broadcast %cst_150 : f32 to vector<16x128xf32>
    %271 = arith.addf %264, %270 : vector<16x128xf32>
    %272 = math.absf %268 : vector<16x128xf32>
    %cst_151 = arith.constant 0.000000e+00 : f32
    %273 = vector.broadcast %cst_151 : f32 to vector<16x128xf32>
    %274 = arith.subf %273, %272 : vector<16x128xf32>
    %275 = math.exp %274 : vector<16x128xf32>
    %276 = math.log1p %275 : vector<16x128xf32>
    %277 = arith.addf %266, %276 : vector<16x128xf32>
    %278 = arith.select %269, %271, %277 : vector<16x128xi1>, vector<16x128xf32>
    %c6_152 = arith.constant 6 : index
    %c0_153 = arith.constant 0 : index
    %c0_154 = arith.constant 0 : index
    %279 = vector.load %arg8[%c6_152, %c0_153, %c0_154] : memref<8x16x128xf32, #tpu.memory_space<vmem>>, vector<1x16x128xf32>
    %280 = vector.shape_cast %279 : vector<1x16x128xf32> to vector<16x128xf32>
    %281 = vector.shape_cast %264 : vector<16x128xf32> to vector<1x16x128xf32>
    tpu.vector_store %arg8[%c6_152, %c0_153, %c0_154], %281 {strides = array<i32>} : memref<8x16x128xf32, #tpu.memory_space<vmem>>, vector<1x16x128xf32>,
    %c6_155 = arith.constant 6 : index
    %c0_156 = arith.constant 0 : index
    %c0_157 = arith.constant 0 : index
    %282 = vector.load %arg9[%c6_155, %c0_156, %c0_157] : memref<8x16x128xf32, #tpu.memory_space<vmem>>, vector<1x16x128xf32>
    %283 = vector.shape_cast %282 : vector<1x16x128xf32> to vector<16x128xf32>
    %284 = vector.shape_cast %278 : vector<16x128xf32> to vector<1x16x128xf32>
    tpu.vector_store %arg9[%c6_155, %c0_156, %c0_157], %284 {strides = array<i32>} : memref<8x16x128xf32, #tpu.memory_space<vmem>>, vector<1x16x128xf32>,
    %c7 = arith.constant 7 : index
    %c0_158 = arith.constant 0 : index
    %c0_159 = arith.constant 0 : index
    %285 = vector.load %arg2[%c7, %c0_158, %c0_159] : memref<8x16x25xf32, #tpu.memory_space<vmem>>, vector<1x16x25xf32>
    %286 = vector.shape_cast %285 : vector<1x16x25xf32> to vector<16x25xf32>
    %287 = vector.extract_strided_slice %286 {offsets = [0, 0], sizes = [16, 16], strides = [1, 1]} : vector<16x25xf32> to vector<16x16xf32>
    %288 = vector.extract_strided_slice %286 {offsets = [0, 16], sizes = [16, 9], strides = [1, 1]} : vector<16x25xf32> to vector<16x9xf32>
    %c0_160 = arith.constant 0 : index
    %c0_161 = arith.constant 0 : index
    %289 = vector.load %arg6[%c0_160, %c0_161] : memref<128x16xf32, #tpu.memory_space<vmem>>, vector<128x16xf32>
    %cst_162 = arith.constant dense<0.000000e+00> : vector<16x16xf32>
    %290 = tpu.matmul %278, %289, %cst_162 {dimension_numbers = #tpu.dot_dimension_numbers<[1], [0], [0], [1], [0, 0, 1, 1], [], []>} : vector<16x128xf32>, vector<128x16xf32>, vector<16x16xf32> -> vector<16x16xf32>
    %291 = arith.mulf %290, %287 : vector<16x16xf32>
    %292 = tpu.concatenate %278, %291, %288 in 1 : vector<16x128xf32>, vector<16x16xf32>, vector<16x9xf32> -> vector<16x153xf32>
    %c0_163 = arith.constant 0 : index
    %c0_164 = arith.constant 0 : index
    %293 = vector.load %arg7[%c0_163, %c0_164] : memref<153x128xf32, #tpu.memory_space<vmem>>, vector<153x128xf32>
    %cst_165 = arith.constant dense<0.000000e+00> : vector<16x128xf32>
    %294 = tpu.matmul %292, %293, %cst_165 {dimension_numbers = #tpu.dot_dimension_numbers<[1], [0], [0], [1], [0, 0, 1, 1], [], []>} : vector<16x153xf32>, vector<153x128xf32>, vector<16x128xf32> -> vector<16x128xf32>
    %c7_166 = arith.constant 7 : index
    %c0_167 = arith.constant 0 : index
    %c0_168 = arith.constant 0 : index
    %295 = vector.load %arg3[%c7_166, %c0_167, %c0_168] : memref<8x16x128xf32, #tpu.memory_space<vmem>>, vector<1x16x128xf32>
    %296 = vector.shape_cast %295 : vector<1x16x128xf32> to vector<16x128xf32>
    %cst_169 = arith.constant 0.0816496611 : f32
    %297 = vector.broadcast %cst_169 : f32 to vector<16x128xf32>
    %298 = arith.mulf %297, %296 : vector<16x128xf32>
    %299 = arith.addf %294, %298 : vector<16x128xf32>
    %cst_170 = arith.constant 0.666666686 : f32
    %300 = vector.broadcast %cst_170 : f32 to vector<16x128xf32>
    %301 = arith.mulf %300, %264 : vector<16x128xf32>
    %cst_171 = arith.constant 0.333333343 : f32
    %302 = vector.broadcast %cst_171 : f32 to vector<16x128xf32>
    %303 = arith.mulf %302, %299 : vector<16x128xf32>
    %304 = arith.addf %301, %303 : vector<16x128xf32>
    %cst_172 = arith.constant 0.000000e+00 : f32
    %305 = vector.broadcast %cst_172 : f32 to vector<16x128xf32>
    %306 = arith.maximumf %304, %305 : vector<16x128xf32>
    %307 = vector.broadcast %cst_172 : f32 to vector<16x128xf32>
    %308 = arith.subf %304, %307 : vector<16x128xf32>
    %309 = arith.cmpf one, %308, %308 : vector<16x128xf32>
    %310 = vector.broadcast %cst_172 : f32 to vector<16x128xf32>
    %311 = arith.addf %304, %310 : vector<16x128xf32>
    %312 = math.absf %308 : vector<16x128xf32>
    %cst_173 = arith.constant 0.000000e+00 : f32
    %313 = vector.broadcast %cst_173 : f32 to vector<16x128xf32>
    %314 = arith.subf %313, %312 : vector<16x128xf32>
    %315 = math.exp %314 : vector<16x128xf32>
    %316 = math.log1p %315 : vector<16x128xf32>
    %317 = arith.addf %306, %316 : vector<16x128xf32>
    %318 = arith.select %309, %311, %317 : vector<16x128xi1>, vector<16x128xf32>
    %c7_174 = arith.constant 7 : index
    %c0_175 = arith.constant 0 : index
    %c0_176 = arith.constant 0 : index
    %319 = vector.load %arg8[%c7_174, %c0_175, %c0_176] : memref<8x16x128xf32, #tpu.memory_space<vmem>>, vector<1x16x128xf32>
    %320 = vector.shape_cast %319 : vector<1x16x128xf32> to vector<16x128xf32>
    %321 = vector.shape_cast %304 : vector<16x128xf32> to vector<1x16x128xf32>
    tpu.vector_store %arg8[%c7_174, %c0_175, %c0_176], %321 {strides = array<i32>} : memref<8x16x128xf32, #tpu.memory_space<vmem>>, vector<1x16x128xf32>,
    %c7_177 = arith.constant 7 : index
    %c0_178 = arith.constant 0 : index
    %c0_179 = arith.constant 0 : index
    %322 = vector.load %arg9[%c7_177, %c0_178, %c0_179] : memref<8x16x128xf32, #tpu.memory_space<vmem>>, vector<1x16x128xf32>
    %323 = vector.shape_cast %322 : vector<1x16x128xf32> to vector<16x128xf32>
    %324 = vector.shape_cast %318 : vector<16x128xf32> to vector<1x16x128xf32>
    tpu.vector_store %arg9[%c7_177, %c0_178, %c0_179], %324 {strides = array<i32>} : memref<8x16x128xf32, #tpu.memory_space<vmem>>, vector<1x16x128xf32>,
    %c0_180 = arith.constant 0 : index
    %c0_181 = arith.constant 0 : index
    %325 = vector.load %arg10[%c0_180, %c0_181] : memref<16x128xf32, #tpu.memory_space<vmem>>, vector<16x128xf32>
    tpu.vector_store %arg10[%c0_180, %c0_181], %304 {strides = array<i32>} : memref<16x128xf32, #tpu.memory_space<vmem>>, vector<16x128xf32>,
    %c0_182 = arith.constant 0 : index
    %c0_183 = arith.constant 0 : index
    %326 = vector.load %arg11[%c0_182, %c0_183] : memref<16x128xf32, #tpu.memory_space<vmem>>, vector<16x128xf32>
    tpu.vector_store %arg11[%c0_182, %c0_183], %318 {strides = array<i32>} : memref<16x128xf32, #tpu.memory_space<vmem>>, vector<16x128xf32>,
    return
  }
  func.func @transform_0(%arg0: i32, %arg1: i32) -> (i32, i32, i32) {
    %c0_i32 = arith.constant 0 : i32
    %c0_i32_0 = arith.constant 0 : i32
    return %arg1, %arg0, %c0_i32 : i32, i32, i32
  }
  func.func @transform_1(%arg0: i32, %arg1: i32) -> (i32, i32, i32) {
    %c0_i32 = arith.constant 0 : i32
    %c0_i32_0 = arith.constant 0 : i32
    return %arg1, %arg0, %c0_i32 : i32, i32, i32
  }
  func.func @transform_2(%arg0: i32, %arg1: i32) -> (i32, i32) {
    %c0_i32 = arith.constant 0 : i32
    %c0_i32_0 = arith.constant 0 : i32
    return %arg0, %c0_i32 : i32, i32
  }
  func.func @transform_3(%arg0: i32, %arg1: i32) -> (i32, i32) {
    %c0_i32 = arith.constant 0 : i32
    %c0_i32_0 = arith.constant 0 : i32
    return %arg0, %c0_i32 : i32, i32
  }
  func.func @transform_4(%arg0: i32, %arg1: i32) -> (i32, i32) {
    %c0_i32 = arith.constant 0 : i32
    %c0_i32_0 = arith.constant 0 : i32
    %c0_i32_1 = arith.constant 0 : i32
    return %c0_i32, %c0_i32_0 : i32, i32
  }
  func.func @transform_5(%arg0: i32, %arg1: i32) -> (i32, i32) {
    %c0_i32 = arith.constant 0 : i32
    %c0_i32_0 = arith.constant 0 : i32
    %c0_i32_1 = arith.constant 0 : i32
    return %c0_i32, %c0_i32_0 : i32, i32
  }
  func.func @transform_6(%arg0: i32, %arg1: i32) -> (i32, i32, i32) {
    %c0_i32 = arith.constant 0 : i32
    %c0_i32_0 = arith.constant 0 : i32
    return %arg1, %arg0, %c0_i32 : i32, i32, i32
  }
  func.func @transform_7(%arg0: i32, %arg1: i32) -> (i32, i32, i32) {
    %c0_i32 = arith.constant 0 : i32
    %c0_i32_0 = arith.constant 0 : i32
    return %arg1, %arg0, %c0_i32 : i32, i32, i32
  }
}

</mosaic_0001>

<llo_original>
// kernel: tpu_custom_call.1
$region0: #{tpu_custom_call.1}
  #allocation0 [shape = 'u32[]', space=smem, size = 0x4, offset = 0x4, fixed_abs, tag = 'smem constant byte address 0x4 - core index']
  #allocation1 [shape = 'u32[144,128]{1,0:T(1,128)}', space=vmem, size = 0x12000, scoped, tag = 'internal scratch']
  #allocation2 [shape = 'f32[16,128]{1,0:T(8,128)}', space=vmem, size = 0x2000, scoped, tag = 'scratch operand']
  #allocation3 [shape = 'f32[16,128]{1,0:T(8,128)}', space=vmem, size = 0x2000, scoped, tag = 'scratch operand']
  %s0 = inlined_call_operand.hbm [shape: f32[16,16,25], index: 0, kind: input, shape index: {}]
  %s1 = inlined_call_operand.hbm [shape: f32[16,16,128], index: 1, kind: input, shape index: {}]
  %s2 = inlined_call_operand.hbm [shape: f32[16,128], index: 2, kind: input, shape index: {}]
  %s3 = inlined_call_operand.hbm [shape: f32[16,128], index: 3, kind: input, shape index: {}]
  %s4 = inlined_call_operand.vmem [shape: f32[128,16], index: 4, kind: input, shape index: {}]
  %s5 = inlined_call_operand.vmem [shape: f32[153,128], index: 5, kind: input, shape index: {}]
  %s6 = inlined_call_operand.hbm [shape: f32[16,16,128], index: 6, kind: output, shape index: {0}]
  %s7 = inlined_call_operand.hbm [shape: f32[16,16,128], index: 7, kind: output, shape index: {1}]
  %8 = xla_tuple %s6, %s7
  %s9 = sld [smem:[#allocation0]]
  $region85: #{tpu_custom_call.1} parent=0
    _
  %s11 = ssub.s32 1, %s9
  %s12 = scalar_select 0, %s11, %s9
  $region1: #{tpu_custom_call.1} parent=0
    #allocation4 [shape = 'u8[131072]{0}', space=vmem, size = 0x20000, scoped, tag = 'input window, operand 0']
    #allocation5 [shape = 's32[2]{0}', space=sflag, size = 0x8, scoped, tag = 'scoped memory for tpu_custom_call.1']
    #allocation6 [shape = 's32[2]{0}', space=sflag, size = 0x8, scoped, tag = 'scoped memory for tpu_custom_call.1']
    #allocation7 [shape = 'u8[131072]{0}', space=vmem, size = 0x20000, scoped, tag = 'input window, operand 1']
    #allocation8 [shape = 's32[2]{0}', space=sflag, size = 0x8, scoped, tag = 'scoped memory for tpu_custom_call.1']
    #allocation9 [shape = 'u8[8192]{0}', space=vmem, size = 0x2000, scoped, tag = 'input window, operand 2, single buffered']
    #allocation10 [shape = 'u8[8192]{0}', space=vmem, size = 0x2000, scoped, tag = 'input window, operand 3, single buffered']
    #allocation11 [shape = 's32[1]{0}', space=sflag, size = 0x4, scoped, tag = 'scoped memory for tpu_custom_call.1']
    #allocation12 [shape = 'u8[131072]{0}', space=vmem, size = 0x20000, scoped, tag = 'output window, operand 0']
    #allocation13 [shape = 'u8[131072]{0}', space=vmem, size = 0x20000, scoped, tag = 'output window, operand 1']
    #allocation14 [shape = 's32[2]{0}', space=sflag, size = 0x8, scoped, tag = 'scoped memory for tpu_custom_call.1']
    %13 = vsyncpa [#allocation5], 0
    %s14 = scalar_lea.sflag [#allocation5], 1
    %15 = vsyncpa %s14, 0
    %16 = vsyncpa [#allocation8], 0
    %s17 = scalar_lea.sflag [#allocation8], 1
    %18 = vsyncpa %s17, 0
    %19 = vsyncpa [#allocation11], 0
    %20 = vsyncpa [#allocation6], 0
    %s21 = scalar_lea.sflag [#allocation6], 1
    %22 = vsyncpa %s21, 0
    %23 = vsyncpa [#allocation14], 0
    %s24 = scalar_lea.sflag [#allocation14], 1
    %25 = vsyncpa %s24, 0
    loop: start=0, step=1, limit=4
    $region2: #{tpu_custom_call.1} parent=1 // loop_pre_header
      _
    $region3: #{tpu_custom_call.1} parent=1 // loop_header
      %s27 = sphi 0, %s31
      %p28 = scmp.ge.s32.totalorder %s27, 4
      %s34 = sphi 0, %s46
      %s35 = sphi 0, %s42
      %s36 = sphi 0, %s34
      %s37 = sphi 0, %s35
      %s38 = sphi 0, %s36
      %s39 = sphi 0, %s37
      %s51 = sphi 0, %s53
      %s54 = sphi 0, %s51
      %s55 = sphi 0, %s54
      %s71 = sphi 0, %s55
      %s79 = sphi 0, %s81
      %s82 = sphi 0, %s79
      %s83 = sphi 0, %s82
      %s99 = sphi 0, %s83
      %s105 = sphi 0, %s107
      %s108 = sphi 0, %s105
      %s109 = sphi 0, %s108
      %s125 = sphi 0, %s109
      %s131 = sphi 0, %s133
      %s134 = sphi 0, %s131
      %s135 = sphi 0, %s134
      %s151 = sphi 0, %s135
      %s155 = sphi 0, %s155
      %s157 = sphi 0, %s155
      %s158 = sphi 0, %s157
      %s172 = sphi 0, %s158
      %s176 = sphi 0, %s176
      %s178 = sphi 0, %s176
      %s179 = sphi 0, %s178
      %s193 = sphi 0, %s179
      %s201 = sphi 0, %s203
      %s204 = sphi 0, %s201
      %s205 = sphi 0, %s204
      %s221 = sphi 0, %s205
      %s229 = sphi 0, %s231
      %s232 = sphi 0, %s229
      %s233 = sphi 0, %s232
      %s249 = sphi 0, %s233
    $region4: #{tpu_custom_call.1} parent=1 // loop_header_branch
      %30 = sbr.rel (%p28) target = $region8
    $region5: #{tpu_custom_call.1} parent=1 // loop_body
      %s32 = ssub.s32 %s27, 1
      %s33 = ssub.s32 %s27, 2
      %s40 = sadd.s32 1, %s35
      %p41 = scmp.ge.s32.totalorder %s40, 2
      %s42 = scalar_select %p41, 0, %s40
      %s43 = sadd.s32 1, %s34
      %s44 = scalar_select %p41, %s43, %s34
      %p45 = scmp.ge.s32.totalorder %s44, 1
      %s46 = scalar_select %p45, 0, %s44
      %s47 = ssub.s32 %s35, %s42
      %s48 = ssub.s32 %s34, %s46
      %s49 = sor.u32 %s47, %s48
      %p50 = scmp.eq.s32.totalorder %s49, 0
      %s52 = sadd.s32 %s51, 1
      %s53 = scalar_select %p50, %s51, %s52
      %p56 = pneg %p50
      %p57 = scmp.eq.s32.totalorder %s27, 1
      %p58 = por %p56, %p57
      %p59 = scmp.ne.s32.totalorder %s51, %s54
      %p60 = scmp.eq.s32.totalorder %s27, 0
      %p61 = por %p59, %p60
      %p62 = scmp.ne.s32.totalorder %s51, %s54
      %p63 = scmp.eq.s32.totalorder %s32, 1
      %p64 = por %p62, %p63
      %p65 = scmp.ne.s32.totalorder %s54, %s55
      %p66 = scmp.eq.s32.totalorder %s32, 0
      %p67 = por %p65, %p66
      %p68 = scmp.ne.s32.totalorder %s54, %s55
      %p69 = scmp.eq.s32.totalorder %s33, 1
      %p70 = por %p68, %p69
      %p72 = scmp.ne.s32.totalorder %s55, %s71
      %p73 = scmp.eq.s32.totalorder %s33, 0
      %p74 = por %p72, %p73
      %s75 = ssub.s32 %s35, %s42
      %s76 = ssub.s32 %s34, %s46
      %s77 = sor.u32 %s75, %s76
      %p78 = scmp.eq.s32.totalorder %s77, 0
      %s80 = sadd.s32 %s79, 1
      %s81 = scalar_select %p78, %s79, %s80
      %p84 = pneg %p78
      %p85 = scmp.eq.s32.totalorder %s27, 1
      %p86 = por %p84, %p85
      %p87 = scmp.ne.s32.totalorder %s79, %s82
      %p88 = scmp.eq.s32.totalorder %s27, 0
      %p89 = por %p87, %p88
      %p90 = scmp.ne.s32.totalorder %s79, %s82
      %p91 = scmp.eq.s32.totalorder %s32, 1
      %p92 = por %p90, %p91
      %p93 = scmp.ne.s32.totalorder %s82, %s83
      %p94 = scmp.eq.s32.totalorder %s32, 0
      %p95 = por %p93, %p94
      %p96 = scmp.ne.s32.totalorder %s82, %s83
      %p97 = scmp.eq.s32.totalorder %s33, 1
      %p98 = por %p96, %p97
      %p100 = scmp.ne.s32.totalorder %s83, %s99
      %p101 = scmp.eq.s32.totalorder %s33, 0
      %p102 = por %p100, %p101
      %s103 = ssub.s32 %s34, %s46
      %p104 = scmp.eq.s32.totalorder %s103, 0
      %s106 = sadd.s32 %s105, 1
      %s107 = scalar_select %p104, %s105, %s106
      %p110 = pneg %p104
      %p111 = scmp.eq.s32.totalorder %s27, 1
      %p112 = por %p110, %p111
      %p113 = scmp.ne.s32.totalorder %s105, %s108
      %p114 = scmp.eq.s32.totalorder %s27, 0
      %p115 = por %p113, %p114
      %p116 = scmp.ne.s32.totalorder %s105, %s108
      %p117 = scmp.eq.s32.totalorder %s32, 1
      %p118 = por %p116, %p117
      %p119 = scmp.ne.s32.totalorder %s108, %s109
      %p120 = scmp.eq.s32.totalorder %s32, 0
      %p121 = por %p119, %p120
      %p122 = scmp.ne.s32.totalorder %s108, %s109
      %p123 = scmp.eq.s32.totalorder %s33, 1
      %p124 = por %p122, %p123
      %p126 = scmp.ne.s32.totalorder %s109, %s125
      %p127 = scmp.eq.s32.totalorder %s33, 0
      %p128 = por %p126, %p127
      %s129 = ssub.s32 %s34, %s46
      %p130 = scmp.eq.s32.totalorder %s129, 0
      %s132 = sadd.s32 %s131, 1
      %s133 = scalar_select %p130, %s131, %s132
      %p136 = pneg %p130
      %p137 = scmp.eq.s32.totalorder %s27, 1
      %p138 = por %p136, %p137
      %p139 = scmp.ne.s32.totalorder %s131, %s134
      %p140 = scmp.eq.s32.totalorder %s27, 0
      %p141 = por %p139, %p140
      %p142 = scmp.ne.s32.totalorder %s131, %s134
      %p143 = scmp.eq.s32.totalorder %s32, 1
      %p144 = por %p142, %p143
      %p145 = scmp.ne.s32.totalorder %s134, %s135
      %p146 = scmp.eq.s32.totalorder %s32, 0
      %p147 = por %p145, %p146
      %p148 = scmp.ne.s32.totalorder %s134, %s135
      %p149 = scmp.eq.s32.totalorder %s33, 1
      %p150 = por %p148, %p149
      %p152 = scmp.ne.s32.totalorder %s135, %s151
      %p153 = scmp.eq.s32.totalorder %s33, 0
      %p154 = por %p152, %p153
      %s156 = sadd.s32 %s155, 1
      %p159 = scmp.eq.s32.totalorder %s27, 1
      %p160 = scmp.ne.s32.totalorder %s155, %s157
      %p161 = scmp.eq.s32.totalorder %s27, 0
      %p162 = por %p160, %p161
      %p163 = scmp.ne.s32.totalorder %s155, %s157
      %p164 = scmp.eq.s32.totalorder %s32, 1
      %p165 = por %p163, %p164
      %p166 = scmp.ne.s32.totalorder %s157, %s158
      %p167 = scmp.eq.s32.totalorder %s32, 0
      %p168 = por %p166, %p167
      %p169 = scmp.ne.s32.totalorder %s157, %s158
      %p170 = scmp.eq.s32.totalorder %s33, 1
      %p171 = por %p169, %p170
      %p173 = scmp.ne.s32.totalorder %s158, %s172
      %p174 = scmp.eq.s32.totalorder %s33, 0
      %p175 = por %p173, %p174
      %s177 = sadd.s32 %s176, 1
      %p180 = scmp.eq.s32.totalorder %s27, 1
      %p181 = scmp.ne.s32.totalorder %s176, %s178
      %p182 = scmp.eq.s32.totalorder %s27, 0
      %p183 = por %p181, %p182
      %p184 = scmp.ne.s32.totalorder %s176, %s178
      %p185 = scmp.eq.s32.totalorder %s32, 1
      %p186 = por %p184, %p185
      %p187 = scmp.ne.s32.totalorder %s178, %s179
      %p188 = scmp.eq.s32.totalorder %s32, 0
      %p189 = por %p187, %p188
      %p190 = scmp.ne.s32.totalorder %s178, %s179
      %p191 = scmp.eq.s32.totalorder %s33, 1
      %p192 = por %p190, %p191
      %p194 = scmp.ne.s32.totalorder %s179, %s193
      %p195 = scmp.eq.s32.totalorder %s33, 0
      %p196 = por %p194, %p195
      %s197 = ssub.s32 %s35, %s42
      %s198 = ssub.s32 %s34, %s46
      %s199 = sor.u32 %s197, %s198
      %p200 = scmp.eq.s32.totalorder %s199, 0
      %s202 = sadd.s32 %s201, 1
      %s203 = scalar_select %p200, %s201, %s202
      %p206 = pneg %p200
      %p207 = scmp.eq.s32.totalorder %s27, 1
      %p208 = por %p206, %p207
      %p209 = scmp.ne.s32.totalorder %s201, %s204
      %p210 = scmp.eq.s32.totalorder %s27, 0
      %p211 = por %p209, %p210
      %p212 = scmp.ne.s32.totalorder %s201, %s204
      %p213 = scmp.eq.s32.totalorder %s32, 1
      %p214 = por %p212, %p213
      %p215 = scmp.ne.s32.totalorder %s204, %s205
      %p216 = scmp.eq.s32.totalorder %s32, 0
      %p217 = por %p215, %p216
      %p218 = scmp.ne.s32.totalorder %s204, %s205
      %p219 = scmp.eq.s32.totalorder %s33, 1
      %p220 = por %p218, %p219
      %p222 = scmp.ne.s32.totalorder %s205, %s221
      %p223 = scmp.eq.s32.totalorder %s33, 0
      %p224 = por %p222, %p223
      %s225 = ssub.s32 %s35, %s42
      %s226 = ssub.s32 %s34, %s46
      %s227 = sor.u32 %s225, %s226
      %p228 = scmp.eq.s32.totalorder %s227, 0
      %s230 = sadd.s32 %s229, 1
      %s231 = scalar_select %p228, %s229, %s230
      %p234 = pneg %p228
      %p235 = scmp.eq.s32.totalorder %s27, 1
      %p236 = por %p234, %p235
      %p237 = scmp.ne.s32.totalorder %s229, %s232
      %p238 = scmp.eq.s32.totalorder %s27, 0
      %p239 = por %p237, %p238
      %p240 = scmp.ne.s32.totalorder %s229, %s232
      %p241 = scmp.eq.s32.totalorder %s32, 1
      %p242 = por %p240, %p241
      %p243 = scmp.ne.s32.totalorder %s232, %s233
      %p244 = scmp.eq.s32.totalorder %s32, 0
      %p245 = por %p243, %p244
      %p246 = scmp.ne.s32.totalorder %s232, %s233
      %p247 = scmp.eq.s32.totalorder %s33, 1
      %p248 = por %p246, %p247
      %p250 = scmp.ne.s32.totalorder %s233, %s249
      %p251 = scmp.eq.s32.totalorder %s33, 0
      %p252 = por %p250, %p251
      %p253 = scmp.le.s32.totalorder 1, %s27
      %p254 = scmp.lt.s32.totalorder %s27, 3
      %p255 = pnand %p253, %p254
      %p256 = pneg %p255
      // Predicated region
      $region9: #{tpu_custom_call.1} parent=5 // pred_check
        _
      $region10: #{tpu_custom_call.1} parent=5 // pred_check_branch
        %258 = sbr.rel (%p255) target = $region12
      $region11: #{tpu_custom_call.1} parent=5 // pred_region
        %s259 = ssub.s32 %s27, 1
        // Predicated region
        $region13: #{tpu_custom_call.1} parent=11 // pred_check
          %p260 = pneg %p121
        $region14: #{tpu_custom_call.1} parent=11 // pred_check_branch
          %262 = sbr.rel (%p260) target = $region16
        $region15: #{tpu_custom_call.1} parent=11 // pred_region
          %s263 = smul.u32 2, %s36
          %s265 = ssub.s32 256, 256
          %266 = vsyncadd [#allocation8], %s265
          %s267 = smul.addr %s263, 128
          %s268 = scalar_lea.hbm %s2, %s267
          %s269 = sshll.u32 [#allocation9], 4
          %s270 = int_to_ptr.vmem [resolvable:$true] %s269
          %275 = dma.hbm_to_vmem [thread:$0]  %s268, 256, %s270, [#allocation8], 128, 128, 8
        $region16: #{tpu_custom_call.1} parent=11 // pred_fallthru
          _
        // Predicated region
        $region17: #{tpu_custom_call.1} parent=11 // pred_check
          %p276 = pneg %p147
        $region18: #{tpu_custom_call.1} parent=11 // pred_check_branch
          %278 = sbr.rel (%p276) target = $region20
        $region19: #{tpu_custom_call.1} parent=11 // pred_region
          %s279 = smul.u32 2, %s36
          %s281 = ssub.s32 256, 256
          %282 = vsyncadd [#allocation11], %s281
          %s283 = smul.addr %s279, 128
          %s284 = scalar_lea.hbm %s3, %s283
          %s285 = sshll.u32 [#allocation10], 4
          %s286 = int_to_ptr.vmem [resolvable:$true] %s285
          %291 = dma.hbm_to_vmem [thread:$0]  %s284, 256, %s286, [#allocation11], 128, 128, 8
        $region20: #{tpu_custom_call.1} parent=11 // pred_fallthru
          _
        // Predicated region
        $region21: #{tpu_custom_call.1} parent=11 // pred_check
          %p292 = pneg %p168
        $region22: #{tpu_custom_call.1} parent=11 // pred_check_branch
          %294 = sbr.rel (%p292) target = $region24
        $region23: #{tpu_custom_call.1} parent=11 // pred_region
          _
        $region24: #{tpu_custom_call.1} parent=11 // pred_fallthru
          _
        // Predicated region
        $region25: #{tpu_custom_call.1} parent=11 // pred_check
          %p295 = pneg %p189
        $region26: #{tpu_custom_call.1} parent=11 // pred_check_branch
          %297 = sbr.rel (%p295) target = $region28
        $region27: #{tpu_custom_call.1} parent=11 // pred_region
          _
        $region28: #{tpu_custom_call.1} parent=11 // pred_fallthru
          _
      $region12: #{tpu_custom_call.1} parent=5 // pred_fallthru
        _
      %p298 = scmp.lt.s32.totalorder %s27, 2
      // Predicated region
      $region29: #{tpu_custom_call.1} parent=5 // pred_check
        %p299 = pneg %p298
      $region30: #{tpu_custom_call.1} parent=5 // pred_check_branch
        %301 = sbr.rel (%p299) target = $region32
      $region31: #{tpu_custom_call.1} parent=5 // pred_region
        // Predicated region
        $region33: #{tpu_custom_call.1} parent=31 // pred_check
          %p302 = pneg %p61
        $region34: #{tpu_custom_call.1} parent=31 // pred_check_branch
          %304 = sbr.rel (%p302) target = $region36
        $region35: #{tpu_custom_call.1} parent=31 // pred_region
          %s305 = sand.u32 %s51, 1
          %s306 = scalar_lea.sflag [#allocation5], %s305
          %s307 = sand.u32 %s51, 1
          %s308 = smul.addr %s307, 128
          %s309 = scalar_lea.vmem [#allocation4], %s308
          %s310 = smul.u32 8, %s35
          %s311 = smul.u32 2, %s34
          %s313 = ssub.s32 2048, 2048
          %314 = vsyncadd %s306, %s313
          %s315 = smul.addr %s310, 2
          %s316 = sadd.s32 %s311, %s315
          %s317 = smul.addr %s316, 128
          %s318 = scalar_lea.hbm %s0, %s317
          %s319 = sshll.u32 %s309, 4
          %s320 = int_to_ptr.vmem [resolvable:$true] %s319
          %325 = dma.hbm_to_vmem [thread:$0]  %s318, 2048, %s320, %s306, 128, 128, 8
        $region36: #{tpu_custom_call.1} parent=31 // pred_fallthru
          _
        // Predicated region
        $region37: #{tpu_custom_call.1} parent=31 // pred_check
          %p326 = pneg %p89
        $region38: #{tpu_custom_call.1} parent=31 // pred_check_branch
          %328 = sbr.rel (%p326) target = $region40
        $region39: #{tpu_custom_call.1} parent=31 // pred_region
          %s329 = sand.u32 %s27, 1
          %s330 = scalar_lea.sflag [#allocation8], %s329
          %s331 = sand.u32 %s79, 1
          %s332 = smul.addr %s331, 128
          %s333 = scalar_lea.vmem [#allocation7], %s332
          %s334 = smul.u32 8, %s35
          %s335 = smul.u32 2, %s34
          %s337 = ssub.s32 2048, 2048
          %338 = vsyncadd %s330, %s337
          %s339 = smul.addr %s334, 2
          %s340 = sadd.s32 %s335, %s339
          %s341 = smul.addr %s340, 128
          %s342 = scalar_lea.hbm %s1, %s341
          %s343 = sshll.u32 %s333, 4
          %s344 = int_to_ptr.vmem [resolvable:$true] %s343
          %349 = dma.hbm_to_vmem [thread:$0]  %s342, 2048, %s344, %s330, 128, 128, 8
        $region40: #{tpu_custom_call.1} parent=31 // pred_fallthru
          _
      $region32: #{tpu_custom_call.1} parent=5 // pred_fallthru
        _
      %p350 = scmp.le.s32.totalorder 1, %s27
      %p351 = scmp.lt.s32.totalorder %s27, 3
      %p352 = pnand %p350, %p351
      %p353 = pneg %p352
      // Predicated region
      $region41: #{tpu_custom_call.1} parent=5 // pred_check
        _
      $region42: #{tpu_custom_call.1} parent=5 // pred_check_branch
        %355 = sbr.rel (%p352) target = $region44
      $region43: #{tpu_custom_call.1} parent=5 // pred_region
        %s356 = ssub.s32 %s27, 1
        %s357 = sand.u32 %s54, 1
        %s358 = scalar_lea.sflag [#allocation5], %s357
        %s359 = sand.u32 %s54, 1
        %s360 = smul.addr %s359, 128
        %s361 = scalar_lea.vmem [#allocation4], %s360
        // Predicated region
        $region45: #{tpu_custom_call.1} parent=43 // pred_check
          %p362 = pneg %p67
        $region46: #{tpu_custom_call.1} parent=43 // pred_check_branch
          %364 = sbr.rel (%p362) target = $region48
        $region47: #{tpu_custom_call.1} parent=43 // pred_region
          %365 = dma.done %s358, 2048
        $region48: #{tpu_custom_call.1} parent=43 // pred_fallthru
          _
        %s366 = sand.u32 %s32, 1
        %s367 = scalar_lea.sflag [#allocation8], %s366
        %s368 = sand.u32 %s82, 1
        %s369 = smul.addr %s368, 128
        %s370 = scalar_lea.vmem [#allocation7], %s369
        // Predicated region
        $region49: #{tpu_custom_call.1} parent=43 // pred_check
          %p371 = pneg %p95
        $region50: #{tpu_custom_call.1} parent=43 // pred_check_branch
          %373 = sbr.rel (%p371) target = $region52
        $region51: #{tpu_custom_call.1} parent=43 // pred_region
          %374 = dma.done %s367, 2048
        $region52: #{tpu_custom_call.1} parent=43 // pred_fallthru
          _
        // Predicated region
        $region53: #{tpu_custom_call.1} parent=43 // pred_check
          %p375 = pneg %p121
        $region54: #{tpu_custom_call.1} parent=43 // pred_check_branch
          %377 = sbr.rel (%p375) target = $region56
        $region55: #{tpu_custom_call.1} parent=43 // pred_region
          %378 = dma.done [#allocation8], 256
        $region56: #{tpu_custom_call.1} parent=43 // pred_fallthru
          _
        // Predicated region
        $region57: #{tpu_custom_call.1} parent=43 // pred_check
          %p379 = pneg %p147
        $region58: #{tpu_custom_call.1} parent=43 // pred_check_branch
          %381 = sbr.rel (%p379) target = $region60
        $region59: #{tpu_custom_call.1} parent=43 // pred_region
          %382 = dma.done [#allocation11], 256
        $region60: #{tpu_custom_call.1} parent=43 // pred_fallthru
          _
        %s383 = sand.u32 %s54, 1
        %s384 = scalar_lea.sflag [#allocation5], %s383
        %s385 = sand.u32 %s54, 1
        %s386 = smul.addr %s385, 128
        %s387 = scalar_lea.vmem [#allocation4], %s386
        %p388 = pneg %p67
        %p389 = pneg %p64
        %s390 = sand.u32 %s32, 1
        %s391 = scalar_lea.sflag [#allocation8], %s390
        %s392 = sand.u32 %s82, 1
        %s393 = smul.addr %s392, 128
        %s394 = scalar_lea.vmem [#allocation7], %s393
        %p395 = pneg %p95
        %p396 = pneg %p92
        %p397 = pneg %p121
        %p398 = pneg %p118
        %p399 = pneg %p147
        %p400 = pneg %p144
        %p401 = pneg %p168
        %p402 = pneg %p165
        %p403 = pneg %p189
        %p404 = pneg %p186
        %p405 = pneg %p217
        %p406 = pneg %p214
        %s407 = sand.u32 %s204, 1
        %s408 = scalar_lea.sflag [#allocation6], %s407
        %s409 = sand.u32 %s204, 1
        %s410 = smul.addr %s409, 128
        %s411 = scalar_lea.vmem [#allocation12], %s410
        %p412 = pneg %p245
        %p413 = pneg %p242
        %s414 = sand.u32 %s232, 1
        %s415 = scalar_lea.sflag [#allocation14], %s414
        %s416 = sand.u32 %s232, 1
        %s417 = smul.addr %s416, 128
        %s418 = scalar_lea.vmem [#allocation13], %s417
        %s419 = smul.u32 8, %s37
        %s420 = smul.u32 2, %s36
        %s421 = smul.u32 8, %s37
        %s422 = smul.u32 2, %s36
        %s423 = smul.u32 2, %s36
        %s424 = smul.u32 2, %s36
        %s425 = smul.u32 8, %s37
        %s426 = smul.u32 2, %s36
        %s427 = smul.u32 8, %s37
        %s428 = smul.u32 2, %s36
        %p429 = scmp.eq.s32.totalorder %s37, 0
        // Predicated region
        $region61: #{tpu_custom_call.1} parent=43 // pred_check
          %p430 = pneg %p429
        $region62: #{tpu_custom_call.1} parent=43 // pred_check_branch
          %432 = sbr.rel (%p430) target = $region64
        $region63: #{tpu_custom_call.1} parent=43 // pred_region
          %v433 = vld [vmem:[#allocation9] sm:$0xff]
          %v434 = vld [vmem:[#allocation9 + $0x8] sm:$0xff]
          %435 = vst [vmem:[#allocation2] sm:$0xff] %v433
          %436 = vst [vmem:[#allocation2 + $0x8] sm:$0xff] %v434
          %v437 = vld [vmem:[#allocation10] sm:$0xff]
          %v438 = vld [vmem:[#allocation10 + $0x8] sm:$0xff]
          %439 = vst [vmem:[#allocation3] sm:$0xff] %v437
          %440 = vst [vmem:[#allocation3 + $0x8] sm:$0xff] %v438
        $region64: #{tpu_custom_call.1} parent=43 // pred_fallthru
          _
        %v441 = vld [vmem:[#allocation2] sm:$0xff]
        %v442 = vld [vmem:[#allocation2 + $0x8] sm:$0xff]
        %v443 = vld [vmem:[#allocation3] sm:$0xff]
        %v444 = vld [vmem:[#allocation3 + $0x8] sm:$0xff]
        %v445 = vld [vmem:[%s361] sm:$0xff]
        %v446 = vld [vmem:[%s361 + $0x8] sm:$0xff]
        %v447 = vld [vmem:[%s4] sm:$0xff]
        %v448 = vld [vmem:[%s4 + $0x8] sm:$0xff]
        %v449 = vld [vmem:[%s4 + $0x10] sm:$0xff]
        %v450 = vld [vmem:[%s4 + $0x18] sm:$0xff]
        %v451 = vld [vmem:[%s4 + $0x20] sm:$0xff]
        %v452 = vld [vmem:[%s4 + $0x28] sm:$0xff]
        %v453 = vld [vmem:[%s4 + $0x30] sm:$0xff]
        %v454 = vld [vmem:[%s4 + $0x38] sm:$0xff]
        %v455 = vld [vmem:[%s4 + $0x40] sm:$0xff]
        %v456 = vld [vmem:[%s4 + $0x48] sm:$0xff]
        %v457 = vld [vmem:[%s4 + $0x50] sm:$0xff]
        %v458 = vld [vmem:[%s4 + $0x58] sm:$0xff]
        %v459 = vld [vmem:[%s4 + $0x60] sm:$0xff]
        %v460 = vld [vmem:[%s4 + $0x68] sm:$0xff]
        %v461 = vld [vmem:[%s4 + $0x70] sm:$0xff]
        %v462 = vld [vmem:[%s4 + $0x78] sm:$0xff]
        %463 = vmatprep.subr.mxu0 0.0
        %464 = vmatpush1.msra.mxu0 %v447
        %465 = vmatprep.subr.mxu0 0.0
        %466 = vmatpush1.msra.mxu0 %v448
        %467 = vmatprep.subr.mxu0 0.0
        %468 = vmatpush1.msra.mxu0 %v449
        %469 = vmatprep.subr.mxu0 0.0
        %470 = vmatpush1.msra.mxu0 %v450
        %471 = vmatprep.subr.mxu0 0.0
        %472 = vmatpush1.msra.mxu0 %v451
        %473 = vmatprep.subr.mxu0 0.0
        %474 = vmatpush1.msra.mxu0 %v452
        %475 = vmatprep.subr.mxu0 0.0
        %476 = vmatpush1.msra.mxu0 %v453
        %477 = vmatprep.subr.mxu0 0.0
        %478 = vmatpush1.msra.mxu0 %v454
        %479 = vmatprep.subr.mxu0 0.0
        %480 = vmatpush1.msra.mxu0 %v455
        %481 = vmatprep.subr.mxu0 0.0
        %482 = vmatpush1.msra.mxu0 %v456
        %483 = vmatprep.subr.mxu0 0.0
        %484 = vmatpush1.msra.mxu0 %v457
        %485 = vmatprep.subr.mxu0 0.0
        %486 = vmatpush1.msra.mxu0 %v458
        %487 = vmatprep.subr.mxu0 0.0
        %488 = vmatpush1.msra.mxu0 %v459
        %489 = vmatprep.subr.mxu0 0.0
        %490 = vmatpush1.msra.mxu0 %v460
        %491 = vmatprep.subr.mxu0 0.0
        %492 = vmatpush1.msra.mxu0 %v461
        %493 = vmatprep.subr.mxu0 0.0
        %494 = vmatpush1.msra.mxu0 %v462
        %495 = vmatprep.subr.mxu0 0.0
        %496 = vmatpush1.msra.mxu0 0.0
        %497 = vmatprep.subr.mxu0 0.0
        %498 = vmatpush1.msra.mxu0 0.0
        %499 = vmatprep.subr.mxu0 0.0
        %500 = vmatpush1.msra.mxu0 0.0
        %501 = vmatprep.subr.mxu0 0.0
        %502 = vmatpush1.msra.mxu0 0.0
        %503 = vmatprep.subr.mxu0 0.0
        %504 = vmatpush1.msra.mxu0 0.0
        %505 = vmatprep.subr.mxu0 0.0
        %506 = vmatpush1.msra.mxu0 0.0
        %507 = vmatprep.subr.mxu0 0.0
        %508 = vmatpush1.msra.mxu0 0.0
        %509 = vmatprep.subr.mxu0 0.0
        %510 = vmatpush1.msra.mxu0 0.0
        %511 = vmatprep.subr.mxu0 0.0
        %512 = vmatpush1.msra.mxu0 0.0
        %513 = vmatprep.subr.mxu0 0.0
        %514 = vmatpush1.msra.mxu0 0.0
        %515 = vmatprep.subr.mxu0 0.0
        %516 = vmatpush1.msra.mxu0 0.0
        %517 = vmatprep.subr.mxu0 0.0
        %518 = vmatpush1.msra.mxu0 0.0
        %519 = vmatprep.subr.mxu0 0.0
        %520 = vmatpush1.msra.mxu0 0.0
        %521 = vmatprep.subr.mxu0 0.0
        %522 = vmatpush1.msra.mxu0 0.0
        %523 = vmatprep.subr.mxu0 0.0
        %524 = vmatpush1.msra.mxu0 0.0
        %525 = vmatprep.subr.mxu0 0.0
        %526 = vmatpush1.msra.mxu0 0.0
        %527 = vmatprep.mubr.f32.mxu0 0.0
        %528 = vmatmul.mubr.f32.gmra.mrb[0].mxu0 %v443
        %v529 = vpop.f32.mrb[0].mxu0
        %v530 = vadd.f32 0.0, %v529
        %v531 = vpop.f32.mrb[0].mxu0
        %532 = vmatprep.mubr.f32.mxu0 0.0
        %533 = vmatmul.mubr.f32.gmra.mrb[0].mxu0 %v444
        %v534 = vpop.f32.mrb[0].mxu0
        %v535 = vadd.f32 0.0, %v534
        %v536 = vpop.f32.mrb[0].mxu0
        %537 = vdwg.mxu0
        %v538 = vmul.f32 %v530, %v445
        %v539 = vmul.f32 %v535, %v446
        %vm540 = vcmask 130048
        %v541 = vsel %vm540, %v538, %v445
        %v542 = vsel %vm540, %v539, %v446
        %v543 = vld [vmem:[%s5] sm:$0xff]
        %v544 = vld [vmem:[%s5 + $0x8] sm:$0xff]
        %v545 = vld [vmem:[%s5 + $0x10] sm:$0xff]
        %v546 = vld [vmem:[%s5 + $0x18] sm:$0xff]
        %v547 = vld [vmem:[%s5 + $0x20] sm:$0xff]
        %v548 = vld [vmem:[%s5 + $0x28] sm:$0xff]
        %v549 = vld [vmem:[%s5 + $0x30] sm:$0xff]
        %v550 = vld [vmem:[%s5 + $0x38] sm:$0xff]
        %v551 = vld [vmem:[%s5 + $0x40] sm:$0xff]
        %v552 = vld [vmem:[%s5 + $0x48] sm:$0xff]
        %v553 = vld [vmem:[%s5 + $0x50] sm:$0xff]
        %v554 = vld [vmem:[%s5 + $0x58] sm:$0xff]
        %v555 = vld [vmem:[%s5 + $0x60] sm:$0xff]
        %v556 = vld [vmem:[%s5 + $0x68] sm:$0xff]
        %v557 = vld [vmem:[%s5 + $0x70] sm:$0xff]
        %v558 = vld [vmem:[%s5 + $0x78] sm:$0xff]
        %v559 = vld [vmem:[%s5 + $0x80] sm:$0xff]
        %v560 = vld [vmem:[%s5 + $0x88] sm:$0xff]
        %v561 = vld [vmem:[%s5 + $0x90] sm:$0xff]
        %v562 = vld [vmem:[%s5 + $0x98] sm:$0x1]
        %v563 = vld [vmem:[%s370] sm:$0xff]
        %v564 = vld [vmem:[%s370 + $0x8] sm:$0xff]
        %v565 = vmul.f32 %v563, 0.08164966
        %v566 = vmul.f32 %v564, 0.08164966
        %vm567 = vcmask 203776
        %v569 = vsel %vm567, %v541, 0
        %v572 = vsel %vm567, %v542, 0
        %vm574 = vcmask 1040384
        %v576 = vsel %vm574, %v562, 0
        %578 = vmatprep.subr.mxu0 0.0
        %579 = vmatpush1.msra.mxu0 %v543
        %580 = vmatprep.subr.mxu0 0.0
        %581 = vmatpush1.msra.mxu0 %v544
        %582 = vmatprep.subr.mxu0 0.0
        %583 = vmatpush1.msra.mxu0 %v545
        %584 = vmatprep.subr.mxu0 0.0
        %585 = vmatpush1.msra.mxu0 %v546
        %586 = vmatprep.subr.mxu0 0.0
        %587 = vmatpush1.msra.mxu0 %v547
        %588 = vmatprep.subr.mxu0 0.0
        %589 = vmatpush1.msra.mxu0 %v548
        %590 = vmatprep.subr.mxu0 0.0
        %591 = vmatpush1.msra.mxu0 %v549
        %592 = vmatprep.subr.mxu0 0.0
        %593 = vmatpush1.msra.mxu0 %v550
        %594 = vmatprep.subr.mxu0 0.0
        %595 = vmatpush1.msra.mxu0 %v551
        %596 = vmatprep.subr.mxu0 0.0
        %597 = vmatpush1.msra.mxu0 %v552
        %598 = vmatprep.subr.mxu0 0.0
        %599 = vmatpush1.msra.mxu0 %v553
        %600 = vmatprep.subr.mxu0 0.0
        %601 = vmatpush1.msra.mxu0 %v554
        %602 = vmatprep.subr.mxu0 0.0
        %603 = vmatpush1.msra.mxu0 %v555
        %604 = vmatprep.subr.mxu0 0.0
        %605 = vmatpush1.msra.mxu0 %v556
        %606 = vmatprep.subr.mxu0 0.0
        %607 = vmatpush1.msra.mxu0 %v557
        %608 = vmatprep.subr.mxu0 0.0
        %609 = vmatpush1.msra.mxu0 %v558
        %610 = vmatprep.subr.mxu0 0.0
        %611 = vmatpush1.msra.mxu0 %v559
        %612 = vmatprep.subr.mxu0 0.0
        %613 = vmatpush1.msra.mxu0 %v560
        %614 = vmatprep.subr.mxu0 0.0
        %615 = vmatpush1.msra.mxu0 %v561
        %616 = vmatprep.subr.mxu0 0.0
        %617 = vmatpush1.msra.mxu0 %v576
        %618 = vmatprep.subr.mxu0 0.0
        %619 = vmatpush1.msra.mxu0 0.0
        %620 = vmatprep.subr.mxu0 0.0
        %621 = vmatpush1.msra.mxu0 0.0
        %622 = vmatprep.subr.mxu0 0.0
        %623 = vmatpush1.msra.mxu0 0.0
        %624 = vmatprep.subr.mxu0 0.0
        %625 = vmatpush1.msra.mxu0 0.0
        %626 = vmatprep.subr.mxu0 0.0
        %627 = vmatpush1.msra.mxu0 0.0
        %628 = vmatprep.subr.mxu0 0.0
        %629 = vmatpush1.msra.mxu0 0.0
        %630 = vmatprep.subr.mxu0 0.0
        %631 = vmatpush1.msra.mxu0 0.0
        %632 = vmatprep.subr.mxu0 0.0
        %633 = vmatpush1.msra.mxu0 0.0
        %634 = vmatprep.subr.mxu0 0.0
        %635 = vmatpush1.msra.mxu0 0.0
        %636 = vmatprep.subr.mxu0 0.0
        %637 = vmatpush1.msra.mxu0 0.0
        %638 = vmatprep.subr.mxu0 0.0
        %639 = vmatpush1.msra.mxu0 0.0
        %640 = vmatprep.subr.mxu0 0.0
        %641 = vmatpush1.msra.mxu0 0.0
        %642 = vmatprep.mubr.f32.mxu0 %v569
        %643 = vmatmul.mubr.f32.gmra.mrb[0].mxu0 %v443
        %v644 = vpop.f32.mrb[0].mxu0
        %v645 = vadd.f32 %v565, %v644
        %v646 = vpop.f32.mrb[0].mxu0
        %647 = vmatprep.mubr.f32.mxu0 %v572
        %648 = vmatmul.mubr.f32.gmra.mrb[0].mxu0 %v444
        %v649 = vpop.f32.mrb[0].mxu0
        %v650 = vadd.f32 %v566, %v649
        %v651 = vpop.f32.mrb[0].mxu0
        %652 = vdwg.mxu0
        %v653 = vmul.f32 %v441, 0.6666667
        %v654 = vmul.f32 %v442, 0.6666667
        %v655 = vmul.f32 %v645, 0.33333334
        %v656 = vmul.f32 %v650, 0.33333334
        %v657 = vadd.f32 %v653, %v655
        %v658 = vadd.f32 %v654, %v656
        %v659 = vmax.f32 %v657, 0.0
        %v660 = vmax.f32 %v658, 0.0
        %vm661 = vcmp.ne.f32.partialorder %v657, %v657
        %vm662 = vcmp.ne.f32.partialorder %v658, %v658
        %v663 = vadd.f32 %v657, 0.0
        %v664 = vadd.f32 %v658, 0.0
        %v665 = vand.u32 2147483647, %v657
        %v666 = vand.u32 2147483647, %v658
        %v667 = vsub.f32 0.0, %v665
        %v668 = vsub.f32 0.0, %v666
        %v669 = vmul.f32 %v667, 1.442695
        %v670 = vpow.pop %v669
        %v671 = vmul.f32 %v668, 1.442695
        %v672 = vpow.pop %v671
        %v673 = vadd.f32 %v670, 1.0
        %v674 = vlog2.pop %v673
        %v675 = vmul.f32 %v674, 0.6931472
        %v676 = vmul.f32 -0.5, %v670
        %v677 = vadd.f32 %v676, 1.0
        %v678 = vmul.f32 %v677, %v670
        %v679 = vand.u32 2147483647, %v670
        %vm680 = vcmp.lt.f32.partialorder %v679, 0.0004427343
        %v681 = vsel %vm680, %v678, %v675
        %v682 = vadd.f32 %v672, 1.0
        %v683 = vlog2.pop %v682
        %v684 = vmul.f32 %v683, 0.6931472
        %v685 = vmul.f32 -0.5, %v672
        %v686 = vadd.f32 %v685, 1.0
        %v687 = vmul.f32 %v686, %v672
        %v688 = vand.u32 2147483647, %v672
        %vm689 = vcmp.lt.f32.partialorder %v688, 0.0004427343
        %v690 = vsel %vm689, %v687, %v684
        %v691 = vadd.f32 %v659, %v681
        %v692 = vadd.f32 %v660, %v690
        %v693 = vsel %vm661, %v663, %v691
        %v694 = vsel %vm662, %v664, %v692
        %695 = vst [vmem:[%s411] sm:$0xff] %v657
        %696 = vst [vmem:[%s411 + $0x8] sm:$0xff] %v658
        %697 = vst [vmem:[%s418] sm:$0xff] %v693
        %698 = vst [vmem:[%s418 + $0x8] sm:$0xff] %v694
        %s699 = scalar_lea.vmem %s361, 16 [#allocation4]
        %v700 = vld [vmem:[%s699] sm:$0xff]
        %v701 = vld [vmem:[%s699 + $0x8] sm:$0xff]
        %v702 = vld [vmem:[%s4] sm:$0xff]
        %v703 = vld [vmem:[%s4 + $0x8] sm:$0xff]
        %v704 = vld [vmem:[%s4 + $0x10] sm:$0xff]
        %v705 = vld [vmem:[%s4 + $0x18] sm:$0xff]
        %v706 = vld [vmem:[%s4 + $0x20] sm:$0xff]
        %v707 = vld [vmem:[%s4 + $0x28] sm:$0xff]
        %v708 = vld [vmem:[%s4 + $0x30] sm:$0xff]
        %v709 = vld [vmem:[%s4 + $0x38] sm:$0xff]
        %v710 = vld [vmem:[%s4 + $0x40] sm:$0xff]
        %v711 = vld [vmem:[%s4 + $0x48] sm:$0xff]
        %v712 = vld [vmem:[%s4 + $0x50] sm:$0xff]
        %v713 = vld [vmem:[%s4 + $0x58] sm:$0xff]
        %v714 = vld [vmem:[%s4 + $0x60] sm:$0xff]
        %v715 = vld [vmem:[%s4 + $0x68] sm:$0xff]
        %v716 = vld [vmem:[%s4 + $0x70] sm:$0xff]
        %v717 = vld [vmem:[%s4 + $0x78] sm:$0xff]
        %718 = vmatprep.subr.mxu0 0.0
        %719 = vmatpush1.msra.mxu0 %v702
        %720 = vmatprep.subr.mxu0 0.0
        %721 = vmatpush1.msra.mxu0 %v703
        %722 = vmatprep.subr.mxu0 0.0
        %723 = vmatpush1.msra.mxu0 %v704
        %724 = vmatprep.subr.mxu0 0.0
        %725 = vmatpush1.msra.mxu0 %v705
        %726 = vmatprep.subr.mxu0 0.0
        %727 = vmatpush1.msra.mxu0 %v706
        %728 = vmatprep.subr.mxu0 0.0
        %729 = vmatpush1.msra.mxu0 %v707
        %730 = vmatprep.subr.mxu0 0.0
        %731 = vmatpush1.msra.mxu0 %v708
        %732 = vmatprep.subr.mxu0 0.0
        %733 = vmatpush1.msra.mxu0 %v709
        %734 = vmatprep.subr.mxu0 0.0
        %735 = vmatpush1.msra.mxu0 %v710
        %736 = vmatprep.subr.mxu0 0.0
        %737 = vmatpush1.msra.mxu0 %v711
        %738 = vmatprep.subr.mxu0 0.0
        %739 = vmatpush1.msra.mxu0 %v712
        %740 = vmatprep.subr.mxu0 0.0
        %741 = vmatpush1.msra.mxu0 %v713
        %742 = vmatprep.subr.mxu0 0.0
        %743 = vmatpush1.msra.mxu0 %v714
        %744 = vmatprep.subr.mxu0 0.0
        %745 = vmatpush1.msra.mxu0 %v715
        %746 = vmatprep.subr.mxu0 0.0
        %747 = vmatpush1.msra.mxu0 %v716
        %748 = vmatprep.subr.mxu0 0.0
        %749 = vmatpush1.msra.mxu0 %v717
        %750 = vmatprep.subr.mxu0 0.0
        %751 = vmatpush1.msra.mxu0 0.0
        %752 = vmatprep.subr.mxu0 0.0
        %753 = vmatpush1.msra.mxu0 0.0
        %754 = vmatprep.subr.mxu0 0.0
        %755 = vmatpush1.msra.mxu0 0.0
        %756 = vmatprep.subr.mxu0 0.0
        %757 = vmatpush1.msra.mxu0 0.0
        %758 = vmatprep.subr.mxu0 0.0
        %759 = vmatpush1.msra.mxu0 0.0
        %760 = vmatprep.subr.mxu0 0.0
        %761 = vmatpush1.msra.mxu0 0.0
        %762 = vmatprep.subr.mxu0 0.0
        %763 = vmatpush1.msra.mxu0 0.0
        %764 = vmatprep.subr.mxu0 0.0
        %765 = vmatpush1.msra.mxu0 0.0
        %766 = vmatprep.subr.mxu0 0.0
        %767 = vmatpush1.msra.mxu0 0.0
        %768 = vmatprep.subr.mxu0 0.0
        %769 = vmatpush1.msra.mxu0 0.0
        %770 = vmatprep.subr.mxu0 0.0
        %771 = vmatpush1.msra.mxu0 0.0
        %772 = vmatprep.subr.mxu0 0.0
        %773 = vmatpush1.msra.mxu0 0.0
        %774 = vmatprep.subr.mxu0 0.0
        %775 = vmatpush1.msra.mxu0 0.0
        %776 = vmatprep.subr.mxu0 0.0
        %777 = vmatpush1.msra.mxu0 0.0
        %778 = vmatprep.subr.mxu0 0.0
        %779 = vmatpush1.msra.mxu0 0.0
        %780 = vmatprep.subr.mxu0 0.0
        %781 = vmatpush1.msra.mxu0 0.0
        %782 = vmatprep.mubr.f32.mxu0 0.0
        %783 = vmatmul.mubr.f32.gmra.mrb[0].mxu0 %v693
        %v784 = vpop.f32.mrb[0].mxu0
        %v785 = vadd.f32 0.0, %v784
        %v786 = vpop.f32.mrb[0].mxu0
        %787 = vmatprep.mubr.f32.mxu0 0.0
        %788 = vmatmul.mubr.f32.gmra.mrb[0].mxu0 %v694
        %v789 = vpop.f32.mrb[0].mxu0
        %v790 = vadd.f32 0.0, %v789
        %v791 = vpop.f32.mrb[0].mxu0
        %792 = vdwg.mxu0
        %v793 = vmul.f32 %v785, %v700
        %v794 = vmul.f32 %v790, %v701
        %v795 = vsel %vm540, %v793, %v700
        %v796 = vsel %vm540, %v794, %v701
        %v797 = vld [vmem:[%s5] sm:$0xff]
        %v798 = vld [vmem:[%s5 + $0x8] sm:$0xff]
        %v799 = vld [vmem:[%s5 + $0x10] sm:$0xff]
        %v800 = vld [vmem:[%s5 + $0x18] sm:$0xff]
        %v801 = vld [vmem:[%s5 + $0x20] sm:$0xff]
        %v802 = vld [vmem:[%s5 + $0x28] sm:$0xff]
        %v803 = vld [vmem:[%s5 + $0x30] sm:$0xff]
        %v804 = vld [vmem:[%s5 + $0x38] sm:$0xff]
        %v805 = vld [vmem:[%s5 + $0x40] sm:$0xff]
        %v806 = vld [vmem:[%s5 + $0x48] sm:$0xff]
        %v807 = vld [vmem:[%s5 + $0x50] sm:$0xff]
        %v808 = vld [vmem:[%s5 + $0x58] sm:$0xff]
        %v809 = vld [vmem:[%s5 + $0x60] sm:$0xff]
        %v810 = vld [vmem:[%s5 + $0x68] sm:$0xff]
        %v811 = vld [vmem:[%s5 + $0x70] sm:$0xff]
        %v812 = vld [vmem:[%s5 + $0x78] sm:$0xff]
        %v813 = vld [vmem:[%s5 + $0x80] sm:$0xff]
        %v814 = vld [vmem:[%s5 + $0x88] sm:$0xff]
        %v815 = vld [vmem:[%s5 + $0x90] sm:$0xff]
        %v816 = vld [vmem:[%s5 + $0x98] sm:$0x1]
        %s817 = scalar_lea.vmem %s370, 16 [#allocation7]
        %v818 = vld [vmem:[%s817] sm:$0xff]
        %v819 = vld [vmem:[%s817 + $0x8] sm:$0xff]
        %v820 = vmul.f32 %v818, 0.08164966
        %v821 = vmul.f32 %v819, 0.08164966
        %v823 = vsel %vm567, %v795, 0
        %v826 = vsel %vm567, %v796, 0
        %v829 = vsel %vm574, %v816, 0
        %831 = vmatprep.subr.mxu0 0.0
        %832 = vmatpush1.msra.mxu0 %v797
        %833 = vmatprep.subr.mxu0 0.0
        %834 = vmatpush1.msra.mxu0 %v798
        %835 = vmatprep.subr.mxu0 0.0
        %836 = vmatpush1.msra.mxu0 %v799
        %837 = vmatprep.subr.mxu0 0.0
        %838 = vmatpush1.msra.mxu0 %v800
        %839 = vmatprep.subr.mxu0 0.0
        %840 = vmatpush1.msra.mxu0 %v801
        %841 = vmatprep.subr.mxu0 0.0
        %842 = vmatpush1.msra.mxu0 %v802
        %843 = vmatprep.subr.mxu0 0.0
        %844 = vmatpush1.msra.mxu0 %v803
        %845 = vmatprep.subr.mxu0 0.0
        %846 = vmatpush1.msra.mxu0 %v804
        %847 = vmatprep.subr.mxu0 0.0
        %848 = vmatpush1.msra.mxu0 %v805
        %849 = vmatprep.subr.mxu0 0.0
        %850 = vmatpush1.msra.mxu0 %v806
        %851 = vmatprep.subr.mxu0 0.0
        %852 = vmatpush1.msra.mxu0 %v807
        %853 = vmatprep.subr.mxu0 0.0
        %854 = vmatpush1.msra.mxu0 %v808
        %855 = vmatprep.subr.mxu0 0.0
        %856 = vmatpush1.msra.mxu0 %v809
        %857 = vmatprep.subr.mxu0 0.0
        %858 = vmatpush1.msra.mxu0 %v810
        %859 = vmatprep.subr.mxu0 0.0
        %860 = vmatpush1.msra.mxu0 %v811
        %861 = vmatprep.subr.mxu0 0.0
        %862 = vmatpush1.msra.mxu0 %v812
        %863 = vmatprep.subr.mxu0 0.0
        %864 = vmatpush1.msra.mxu0 %v813
        %865 = vmatprep.subr.mxu0 0.0
        %866 = vmatpush1.msra.mxu0 %v814
        %867 = vmatprep.subr.mxu0 0.0
        %868 = vmatpush1.msra.mxu0 %v815
        %869 = vmatprep.subr.mxu0 0.0
        %870 = vmatpush1.msra.mxu0 %v829
        %871 = vmatprep.subr.mxu0 0.0
        %872 = vmatpush1.msra.mxu0 0.0
        %873 = vmatprep.subr.mxu0 0.0
        %874 = vmatpush1.msra.mxu0 0.0
        %875 = vmatprep.subr.mxu0 0.0
        %876 = vmatpush1.msra.mxu0 0.0
        %877 = vmatprep.subr.mxu0 0.0
        %878 = vmatpush1.msra.mxu0 0.0
        %879 = vmatprep.subr.mxu0 0.0
        %880 = vmatpush1.msra.mxu0 0.0
        %881 = vmatprep.subr.mxu0 0.0
        %882 = vmatpush1.msra.mxu0 0.0
        %883 = vmatprep.subr.mxu0 0.0
        %884 = vmatpush1.msra.mxu0 0.0
        %885 = vmatprep.subr.mxu0 0.0
        %886 = vmatpush1.msra.mxu0 0.0
        %887 = vmatprep.subr.mxu0 0.0
        %888 = vmatpush1.msra.mxu0 0.0
        %889 = vmatprep.subr.mxu0 0.0
        %890 = vmatpush1.msra.mxu0 0.0
        %891 = vmatprep.subr.mxu0 0.0
        %892 = vmatpush1.msra.mxu0 0.0
        %893 = vmatprep.subr.mxu0 0.0
        %894 = vmatpush1.msra.mxu0 0.0
        %895 = vmatprep.mubr.f32.mxu0 %v823
        %896 = vmatmul.mubr.f32.gmra.mrb[0].mxu0 %v693
        %v897 = vpop.f32.mrb[0].mxu0
        %v898 = vadd.f32 %v820, %v897
        %v899 = vpop.f32.mrb[0].mxu0
        %900 = vmatprep.mubr.f32.mxu0 %v826
        %901 = vmatmul.mubr.f32.gmra.mrb[0].mxu0 %v694
        %v902 = vpop.f32.mrb[0].mxu0
        %v903 = vadd.f32 %v821, %v902
        %v904 = vpop.f32.mrb[0].mxu0
        %905 = vdwg.mxu0
        %v906 = vmul.f32 %v657, 0.6666667
        %v907 = vmul.f32 %v658, 0.6666667
        %v908 = vmul.f32 %v898, 0.33333334
        %v909 = vmul.f32 %v903, 0.33333334
        %v910 = vadd.f32 %v906, %v908
        %v911 = vadd.f32 %v907, %v909
        %v912 = vmax.f32 %v910, 0.0
        %v913 = vmax.f32 %v911, 0.0
        %vm914 = vcmp.ne.f32.partialorder %v910, %v910
        %vm915 = vcmp.ne.f32.partialorder %v911, %v911
        %v916 = vadd.f32 %v910, 0.0
        %v917 = vadd.f32 %v911, 0.0
        %v918 = vand.u32 2147483647, %v910
        %v919 = vand.u32 2147483647, %v911
        %v920 = vsub.f32 0.0, %v918
        %v921 = vsub.f32 0.0, %v919
        %v922 = vmul.f32 %v920, 1.442695
        %v923 = vpow.pop %v922
        %v924 = vmul.f32 %v921, 1.442695
        %v925 = vpow.pop %v924
        %v926 = vadd.f32 %v923, 1.0
        %v927 = vlog2.pop %v926
        %v928 = vmul.f32 %v927, 0.6931472
        %v929 = vmul.f32 -0.5, %v923
        %v930 = vadd.f32 %v929, 1.0
        %v931 = vmul.f32 %v930, %v923
        %v932 = vand.u32 2147483647, %v923
        %vm933 = vcmp.lt.f32.partialorder %v932, 0.0004427343
        %v934 = vsel %vm933, %v931, %v928
        %v935 = vadd.f32 %v925, 1.0
        %v936 = vlog2.pop %v935
        %v937 = vmul.f32 %v936, 0.6931472
        %v938 = vmul.f32 -0.5, %v925
        %v939 = vadd.f32 %v938, 1.0
        %v940 = vmul.f32 %v939, %v925
        %v941 = vand.u32 2147483647, %v925
        %vm942 = vcmp.lt.f32.partialorder %v941, 0.0004427343
        %v943 = vsel %vm942, %v940, %v937
        %v944 = vadd.f32 %v912, %v934
        %v945 = vadd.f32 %v913, %v943
        %v946 = vsel %vm914, %v916, %v944
        %v947 = vsel %vm915, %v917, %v945
        %s948 = scalar_lea.vmem %s411, 16 [#allocation12]
        %949 = vst [vmem:[%s948] sm:$0xff] %v910
        %950 = vst [vmem:[%s948 + $0x8] sm:$0xff] %v911
        %s951 = scalar_lea.vmem %s418, 16 [#allocation13]
        %952 = vst [vmem:[%s951] sm:$0xff] %v946
        %953 = vst [vmem:[%s951 + $0x8] sm:$0xff] %v947
        %s954 = scalar_lea.vmem %s361, 32 [#allocation4]
        %v955 = vld [vmem:[%s954] sm:$0xff]
        %v956 = vld [vmem:[%s954 + $0x8] sm:$0xff]
        %v957 = vld [vmem:[%s4] sm:$0xff]
        %v958 = vld [vmem:[%s4 + $0x8] sm:$0xff]
        %v959 = vld [vmem:[%s4 + $0x10] sm:$0xff]
        %v960 = vld [vmem:[%s4 + $0x18] sm:$0xff]
        %v961 = vld [vmem:[%s4 + $0x20] sm:$0xff]
        %v962 = vld [vmem:[%s4 + $0x28] sm:$0xff]
        %v963 = vld [vmem:[%s4 + $0x30] sm:$0xff]
        %v964 = vld [vmem:[%s4 + $0x38] sm:$0xff]
        %v965 = vld [vmem:[%s4 + $0x40] sm:$0xff]
        %v966 = vld [vmem:[%s4 + $0x48] sm:$0xff]
        %v967 = vld [vmem:[%s4 + $0x50] sm:$0xff]
        %v968 = vld [vmem:[%s4 + $0x58] sm:$0xff]
        %v969 = vld [vmem:[%s4 + $0x60] sm:$0xff]
        %v970 = vld [vmem:[%s4 + $0x68] sm:$0xff]
        %v971 = vld [vmem:[%s4 + $0x70] sm:$0xff]
        %v972 = vld [vmem:[%s4 + $0x78] sm:$0xff]
        %973 = vmatprep.subr.mxu0 0.0
        %974 = vmatpush1.msra.mxu0 %v957
        %975 = vmatprep.subr.mxu0 0.0
        %976 = vmatpush1.msra.mxu0 %v958
        %977 = vmatprep.subr.mxu0 0.0
        %978 = vmatpush1.msra.mxu0 %v959
        %979 = vmatprep.subr.mxu0 0.0
        %980 = vmatpush1.msra.mxu0 %v960
        %981 = vmatprep.subr.mxu0 0.0
        %982 = vmatpush1.msra.mxu0 %v961
        %983 = vmatprep.subr.mxu0 0.0
        %984 = vmatpush1.msra.mxu0 %v962
        %985 = vmatprep.subr.mxu0 0.0
        %986 = vmatpush1.msra.mxu0 %v963
        %987 = vmatprep.subr.mxu0 0.0
        %988 = vmatpush1.msra.mxu0 %v964
        %989 = vmatprep.subr.mxu0 0.0
        %990 = vmatpush1.msra.mxu0 %v965
        %991 = vmatprep.subr.mxu0 0.0
        %992 = vmatpush1.msra.mxu0 %v966
        %993 = vmatprep.subr.mxu0 0.0
        %994 = vmatpush1.msra.mxu0 %v967
        %995 = vmatprep.subr.mxu0 0.0
        %996 = vmatpush1.msra.mxu0 %v968
        %997 = vmatprep.subr.mxu0 0.0
        %998 = vmatpush1.msra.mxu0 %v969
        %999 = vmatprep.subr.mxu0 0.0
        %1000 = vmatpush1.msra.mxu0 %v970
        %1001 = vmatprep.subr.mxu0 0.0
        %1002 = vmatpush1.msra.mxu0 %v971
        %1003 = vmatprep.subr.mxu0 0.0
        %1004 = vmatpush1.msra.mxu0 %v972
        %1005 = vmatprep.subr.mxu0 0.0
        %1006 = vmatpush1.msra.mxu0 0.0
        %1007 = vmatprep.subr.mxu0 0.0
        %1008 = vmatpush1.msra.mxu0 0.0
        %1009 = vmatprep.subr.mxu0 0.0
        %1010 = vmatpush1.msra.mxu0 0.0
        %1011 = vmatprep.subr.mxu0 0.0
        %1012 = vmatpush1.msra.mxu0 0.0
        %1013 = vmatprep.subr.mxu0 0.0
        %1014 = vmatpush1.msra.mxu0 0.0
        %1015 = vmatprep.subr.mxu0 0.0
        %1016 = vmatpush1.msra.mxu0 0.0
        %1017 = vmatprep.subr.mxu0 0.0
        %1018 = vmatpush1.msra.mxu0 0.0
        %1019 = vmatprep.subr.mxu0 0.0
        %1020 = vmatpush1.msra.mxu0 0.0
        %1021 = vmatprep.subr.mxu0 0.0
        %1022 = vmatpush1.msra.mxu0 0.0
        %1023 = vmatprep.subr.mxu0 0.0
        %1024 = vmatpush1.msra.mxu0 0.0
        %1025 = vmatprep.subr.mxu0 0.0
        %1026 = vmatpush1.msra.mxu0 0.0
        %1027 = vmatprep.subr.mxu0 0.0
        %1028 = vmatpush1.msra.mxu0 0.0
        %1029 = vmatprep.subr.mxu0 0.0
        %1030 = vmatpush1.msra.mxu0 0.0
        %1031 = vmatprep.subr.mxu0 0.0
        %1032 = vmatpush1.msra.mxu0 0.0
        %1033 = vmatprep.subr.mxu0 0.0
        %1034 = vmatpush1.msra.mxu0 0.0
        %1035 = vmatprep.subr.mxu0 0.0
        %1036 = vmatpush1.msra.mxu0 0.0
        %1037 = vmatprep.mubr.f32.mxu0 0.0
        %1038 = vmatmul.mubr.f32.gmra.mrb[0].mxu0 %v946
        %v1039 = vpop.f32.mrb[0].mxu0
        %v1040 = vadd.f32 0.0, %v1039
        %v1041 = vpop.f32.mrb[0].mxu0
        %1042 = vmatprep.mubr.f32.mxu0 0.0
        %1043 = vmatmul.mubr.f32.gmra.mrb[0].mxu0 %v947
        %v1044 = vpop.f32.mrb[0].mxu0
        %v1045 = vadd.f32 0.0, %v1044
        %v1046 = vpop.f32.mrb[0].mxu0
        %1047 = vdwg.mxu0
        %v1048 = vmul.f32 %v1040, %v955
        %v1049 = vmul.f32 %v1045, %v956
        %v1050 = vsel %vm540, %v1048, %v955
        %v1051 = vsel %vm540, %v1049, %v956
        %v1052 = vld [vmem:[%s5] sm:$0xff]
        %v1053 = vld [vmem:[%s5 + $0x8] sm:$0xff]
        %v1054 = vld [vmem:[%s5 + $0x10] sm:$0xff]
        %v1055 = vld [vmem:[%s5 + $0x18] sm:$0xff]
        %v1056 = vld [vmem:[%s5 + $0x20] sm:$0xff]
        %v1057 = vld [vmem:[%s5 + $0x28] sm:$0xff]
        %v1058 = vld [vmem:[%s5 + $0x30] sm:$0xff]
        %v1059 = vld [vmem:[%s5 + $0x38] sm:$0xff]
        %v1060 = vld [vmem:[%s5 + $0x40] sm:$0xff]
        %v1061 = vld [vmem:[%s5 + $0x48] sm:$0xff]
        %v1062 = vld [vmem:[%s5 + $0x50] sm:$0xff]
        %v1063 = vld [vmem:[%s5 + $0x58] sm:$0xff]
        %v1064 = vld [vmem:[%s5 + $0x60] sm:$0xff]
        %v1065 = vld [vmem:[%s5 + $0x68] sm:$0xff]
        %v1066 = vld [vmem:[%s5 + $0x70] sm:$0xff]
        %v1067 = vld [vmem:[%s5 + $0x78] sm:$0xff]
        %v1068 = vld [vmem:[%s5 + $0x80] sm:$0xff]
        %v1069 = vld [vmem:[%s5 + $0x88] sm:$0xff]
        %v1070 = vld [vmem:[%s5 + $0x90] sm:$0xff]
        %v1071 = vld [vmem:[%s5 + $0x98] sm:$0x1]
        %s1072 = scalar_lea.vmem %s370, 32 [#allocation7]
        %v1073 = vld [vmem:[%s1072] sm:$0xff]
        %v1074 = vld [vmem:[%s1072 + $0x8] sm:$0xff]
        %v1075 = vmul.f32 %v1073, 0.08164966
        %v1076 = vmul.f32 %v1074, 0.08164966
        %v1078 = vsel %vm567, %v1050, 0
        %v1081 = vsel %vm567, %v1051, 0
        %v1084 = vsel %vm574, %v1071, 0
        %1086 = vmatprep.subr.mxu0 0.0
        %1087 = vmatpush1.msra.mxu0 %v1052
        %1088 = vmatprep.subr.mxu0 0.0
        %1089 = vmatpush1.msra.mxu0 %v1053
        %1090 = vmatprep.subr.mxu0 0.0
        %1091 = vmatpush1.msra.mxu0 %v1054
        %1092 = vmatprep.subr.mxu0 0.0
        %1093 = vmatpush1.msra.mxu0 %v1055
        %1094 = vmatprep.subr.mxu0 0.0
        %1095 = vmatpush1.msra.mxu0 %v1056
        %1096 = vmatprep.subr.mxu0 0.0
        %1097 = vmatpush1.msra.mxu0 %v1057
        %1098 = vmatprep.subr.mxu0 0.0
        %1099 = vmatpush1.msra.mxu0 %v1058
        %1100 = vmatprep.subr.mxu0 0.0
        %1101 = vmatpush1.msra.mxu0 %v1059
        %1102 = vmatprep.subr.mxu0 0.0
        %1103 = vmatpush1.msra.mxu0 %v1060
        %1104 = vmatprep.subr.mxu0 0.0
        %1105 = vmatpush1.msra.mxu0 %v1061
        %1106 = vmatprep.subr.mxu0 0.0
        %1107 = vmatpush1.msra.mxu0 %v1062
        %1108 = vmatprep.subr.mxu0 0.0
        %1109 = vmatpush1.msra.mxu0 %v1063
        %1110 = vmatprep.subr.mxu0 0.0
        %1111 = vmatpush1.msra.mxu0 %v1064
        %1112 = vmatprep.subr.mxu0 0.0
        %1113 = vmatpush1.msra.mxu0 %v1065
        %1114 = vmatprep.subr.mxu0 0.0
        %1115 = vmatpush1.msra.mxu0 %v1066
        %1116 = vmatprep.subr.mxu0 0.0
        %1117 = vmatpush1.msra.mxu0 %v1067
        %1118 = vmatprep.subr.mxu0 0.0
        %1119 = vmatpush1.msra.mxu0 %v1068
        %1120 = vmatprep.subr.mxu0 0.0
        %1121 = vmatpush1.msra.mxu0 %v1069
        %1122 = vmatprep.subr.mxu0 0.0
        %1123 = vmatpush1.msra.mxu0 %v1070
        %1124 = vmatprep.subr.mxu0 0.0
        %1125 = vmatpush1.msra.mxu0 %v1084
        %1126 = vmatprep.subr.mxu0 0.0
        %1127 = vmatpush1.msra.mxu0 0.0
        %1128 = vmatprep.subr.mxu0 0.0
        %1129 = vmatpush1.msra.mxu0 0.0
        %1130 = vmatprep.subr.mxu0 0.0
        %1131 = vmatpush1.msra.mxu0 0.0
        %1132 = vmatprep.subr.mxu0 0.0
        %1133 = vmatpush1.msra.mxu0 0.0
        %1134 = vmatprep.subr.mxu0 0.0
        %1135 = vmatpush1.msra.mxu0 0.0
        %1136 = vmatprep.subr.mxu0 0.0
        %1137 = vmatpush1.msra.mxu0 0.0
        %1138 = vmatprep.subr.mxu0 0.0
        %1139 = vmatpush1.msra.mxu0 0.0
        %1140 = vmatprep.subr.mxu0 0.0
        %1141 = vmatpush1.msra.mxu0 0.0
        %1142 = vmatprep.subr.mxu0 0.0
        %1143 = vmatpush1.msra.mxu0 0.0
        %1144 = vmatprep.subr.mxu0 0.0
        %1145 = vmatpush1.msra.mxu0 0.0
        %1146 = vmatprep.subr.mxu0 0.0
        %1147 = vmatpush1.msra.mxu0 0.0
        %1148 = vmatprep.subr.mxu0 0.0
        %1149 = vmatpush1.msra.mxu0 0.0
        %1150 = vmatprep.mubr.f32.mxu0 %v1078
        %1151 = vmatmul.mubr.f32.gmra.mrb[0].mxu0 %v946
        %v1152 = vpop.f32.mrb[0].mxu0
        %v1153 = vadd.f32 %v1075, %v1152
        %v1154 = vpop.f32.mrb[0].mxu0
        %1155 = vmatprep.mubr.f32.mxu0 %v1081
        %1156 = vmatmul.mubr.f32.gmra.mrb[0].mxu0 %v947
        %v1157 = vpop.f32.mrb[0].mxu0
        %v1158 = vadd.f32 %v1076, %v1157
        %v1159 = vpop.f32.mrb[0].mxu0
        %1160 = vdwg.mxu0
        %v1161 = vmul.f32 %v910, 0.6666667
        %v1162 = vmul.f32 %v911, 0.6666667
        %v1163 = vmul.f32 %v1153, 0.33333334
        %v1164 = vmul.f32 %v1158, 0.33333334
        %v1165 = vadd.f32 %v1161, %v1163
        %v1166 = vadd.f32 %v1162, %v1164
        %v1167 = vmax.f32 %v1165, 0.0
        %v1168 = vmax.f32 %v1166, 0.0
        %vm1169 = vcmp.ne.f32.partialorder %v1165, %v1165
        %vm1170 = vcmp.ne.f32.partialorder %v1166, %v1166
        %v1171 = vadd.f32 %v1165, 0.0
        %v1172 = vadd.f32 %v1166, 0.0
        %v1173 = vand.u32 2147483647, %v1165
        %v1174 = vand.u32 2147483647, %v1166
        %v1175 = vsub.f32 0.0, %v1173
        %v1176 = vsub.f32 0.0, %v1174
        %v1177 = vmul.f32 %v1175, 1.442695
        %v1178 = vpow.pop %v1177
        %v1179 = vmul.f32 %v1176, 1.442695
        %v1180 = vpow.pop %v1179
        %v1181 = vadd.f32 %v1178, 1.0
        %v1182 = vlog2.pop %v1181
        %v1183 = vmul.f32 %v1182, 0.6931472
        %v1184 = vmul.f32 -0.5, %v1178
        %v1185 = vadd.f32 %v1184, 1.0
        %v1186 = vmul.f32 %v1185, %v1178
        %v1187 = vand.u32 2147483647, %v1178
        %vm1188 = vcmp.lt.f32.partialorder %v1187, 0.0004427343
        %v1189 = vsel %vm1188, %v1186, %v1183
        %v1190 = vadd.f32 %v1180, 1.0
        %v1191 = vlog2.pop %v1190
        %v1192 = vmul.f32 %v1191, 0.6931472
        %v1193 = vmul.f32 -0.5, %v1180
        %v1194 = vadd.f32 %v1193, 1.0
        %v1195 = vmul.f32 %v1194, %v1180
        %v1196 = vand.u32 2147483647, %v1180
        %vm1197 = vcmp.lt.f32.partialorder %v1196, 0.0004427343
        %v1198 = vsel %vm1197, %v1195, %v1192
        %v1199 = vadd.f32 %v1167, %v1189
        %v1200 = vadd.f32 %v1168, %v1198
        %v1201 = vsel %vm1169, %v1171, %v1199
        %v1202 = vsel %vm1170, %v1172, %v1200
        %s1203 = scalar_lea.vmem %s411, 32 [#allocation12]
        %1204 = vst [vmem:[%s1203] sm:$0xff] %v1165
        %1205 = vst [vmem:[%s1203 + $0x8] sm:$0xff] %v1166
        %s1206 = scalar_lea.vmem %s418, 32 [#allocation13]
        %1207 = vst [vmem:[%s1206] sm:$0xff] %v1201
        %1208 = vst [vmem:[%s1206 + $0x8] sm:$0xff] %v1202
        %s1209 = scalar_lea.vmem %s361, 48 [#allocation4]
        %v1210 = vld [vmem:[%s1209] sm:$0xff]
        %v1211 = vld [vmem:[%s1209 + $0x8] sm:$0xff]
        %v1212 = vld [vmem:[%s4] sm:$0xff]
        %v1213 = vld [vmem:[%s4 + $0x8] sm:$0xff]
        %v1214 = vld [vmem:[%s4 + $0x10] sm:$0xff]
        %v1215 = vld [vmem:[%s4 + $0x18] sm:$0xff]
        %v1216 = vld [vmem:[%s4 + $0x20] sm:$0xff]
        %v1217 = vld [vmem:[%s4 + $0x28] sm:$0xff]
        %v1218 = vld [vmem:[%s4 + $0x30] sm:$0xff]
        %v1219 = vld [vmem:[%s4 + $0x38] sm:$0xff]
        %v1220 = vld [vmem:[%s4 + $0x40] sm:$0xff]
        %v1221 = vld [vmem:[%s4 + $0x48] sm:$0xff]
        %v1222 = vld [vmem:[%s4 + $0x50] sm:$0xff]
        %v1223 = vld [vmem:[%s4 + $0x58] sm:$0xff]
        %v1224 = vld [vmem:[%s4 + $0x60] sm:$0xff]
        %v1225 = vld [vmem:[%s4 + $0x68] sm:$0xff]
        %v1226 = vld [vmem:[%s4 + $0x70] sm:$0xff]
        %v1227 = vld [vmem:[%s4 + $0x78] sm:$0xff]
        %1228 = vmatprep.subr.mxu0 0.0
        %1229 = vmatpush1.msra.mxu0 %v1212
        %1230 = vmatprep.subr.mxu0 0.0
        %1231 = vmatpush1.msra.mxu0 %v1213
        %1232 = vmatprep.subr.mxu0 0.0
        %1233 = vmatpush1.msra.mxu0 %v1214
        %1234 = vmatprep.subr.mxu0 0.0
        %1235 = vmatpush1.msra.mxu0 %v1215
        %1236 = vmatprep.subr.mxu0 0.0
        %1237 = vmatpush1.msra.mxu0 %v1216
        %1238 = vmatprep.subr.mxu0 0.0
        %1239 = vmatpush1.msra.mxu0 %v1217
        %1240 = vmatprep.subr.mxu0 0.0
        %1241 = vmatpush1.msra.mxu0 %v1218
        %1242 = vmatprep.subr.mxu0 0.0
        %1243 = vmatpush1.msra.mxu0 %v1219
        %1244 = vmatprep.subr.mxu0 0.0
        %1245 = vmatpush1.msra.mxu0 %v1220
        %1246 = vmatprep.subr.mxu0 0.0
        %1247 = vmatpush1.msra.mxu0 %v1221
        %1248 = vmatprep.subr.mxu0 0.0
        %1249 = vmatpush1.msra.mxu0 %v1222
        %1250 = vmatprep.subr.mxu0 0.0
        %1251 = vmatpush1.msra.mxu0 %v1223
        %1252 = vmatprep.subr.mxu0 0.0
        %1253 = vmatpush1.msra.mxu0 %v1224
        %1254 = vmatprep.subr.mxu0 0.0
        %1255 = vmatpush1.msra.mxu0 %v1225
        %1256 = vmatprep.subr.mxu0 0.0
        %1257 = vmatpush1.msra.mxu0 %v1226
        %1258 = vmatprep.subr.mxu0 0.0
        %1259 = vmatpush1.msra.mxu0 %v1227
        %1260 = vmatprep.subr.mxu0 0.0
        %1261 = vmatpush1.msra.mxu0 0.0
        %1262 = vmatprep.subr.mxu0 0.0
        %1263 = vmatpush1.msra.mxu0 0.0
        %1264 = vmatprep.subr.mxu0 0.0
        %1265 = vmatpush1.msra.mxu0 0.0
        %1266 = vmatprep.subr.mxu0 0.0
        %1267 = vmatpush1.msra.mxu0 0.0
        %1268 = vmatprep.subr.mxu0 0.0
        %1269 = vmatpush1.msra.mxu0 0.0
        %1270 = vmatprep.subr.mxu0 0.0
        %1271 = vmatpush1.msra.mxu0 0.0
        %1272 = vmatprep.subr.mxu0 0.0
        %1273 = vmatpush1.msra.mxu0 0.0
        %1274 = vmatprep.subr.mxu0 0.0
        %1275 = vmatpush1.msra.mxu0 0.0
        %1276 = vmatprep.subr.mxu0 0.0
        %1277 = vmatpush1.msra.mxu0 0.0
        %1278 = vmatprep.subr.mxu0 0.0
        %1279 = vmatpush1.msra.mxu0 0.0
        %1280 = vmatprep.subr.mxu0 0.0
        %1281 = vmatpush1.msra.mxu0 0.0
        %1282 = vmatprep.subr.mxu0 0.0
        %1283 = vmatpush1.msra.mxu0 0.0
        %1284 = vmatprep.subr.mxu0 0.0
        %1285 = vmatpush1.msra.mxu0 0.0
        %1286 = vmatprep.subr.mxu0 0.0
        %1287 = vmatpush1.msra.mxu0 0.0
        %1288 = vmatprep.subr.mxu0 0.0
        %1289 = vmatpush1.msra.mxu0 0.0
        %1290 = vmatprep.subr.mxu0 0.0
        %1291 = vmatpush1.msra.mxu0 0.0
        %1292 = vmatprep.mubr.f32.mxu0 0.0
        %1293 = vmatmul.mubr.f32.gmra.mrb[0].mxu0 %v1201
        %v1294 = vpop.f32.mrb[0].mxu0
        %v1295 = vadd.f32 0.0, %v1294
        %v1296 = vpop.f32.mrb[0].mxu0
        %1297 = vmatprep.mubr.f32.mxu0 0.0
        %1298 = vmatmul.mubr.f32.gmra.mrb[0].mxu0 %v1202
        %v1299 = vpop.f32.mrb[0].mxu0
        %v1300 = vadd.f32 0.0, %v1299
        %v1301 = vpop.f32.mrb[0].mxu0
        %1302 = vdwg.mxu0
        %v1303 = vmul.f32 %v1295, %v1210
        %v1304 = vmul.f32 %v1300, %v1211
        %v1305 = vsel %vm540, %v1303, %v1210
        %v1306 = vsel %vm540, %v1304, %v1211
        %v1307 = vld [vmem:[%s5] sm:$0xff]
        %v1308 = vld [vmem:[%s5 + $0x8] sm:$0xff]
        %v1309 = vld [vmem:[%s5 + $0x10] sm:$0xff]
        %v1310 = vld [vmem:[%s5 + $0x18] sm:$0xff]
        %v1311 = vld [vmem:[%s5 + $0x20] sm:$0xff]
        %v1312 = vld [vmem:[%s5 + $0x28] sm:$0xff]
        %v1313 = vld [vmem:[%s5 + $0x30] sm:$0xff]
        %v1314 = vld [vmem:[%s5 + $0x38] sm:$0xff]
        %v1315 = vld [vmem:[%s5 + $0x40] sm:$0xff]
        %v1316 = vld [vmem:[%s5 + $0x48] sm:$0xff]
        %v1317 = vld [vmem:[%s5 + $0x50] sm:$0xff]
        %v1318 = vld [vmem:[%s5 + $0x58] sm:$0xff]
        %v1319 = vld [vmem:[%s5 + $0x60] sm:$0xff]
        %v1320 = vld [vmem:[%s5 + $0x68] sm:$0xff]
        %v1321 = vld [vmem:[%s5 + $0x70] sm:$0xff]
        %v1322 = vld [vmem:[%s5 + $0x78] sm:$0xff]
        %v1323 = vld [vmem:[%s5 + $0x80] sm:$0xff]
        %v1324 = vld [vmem:[%s5 + $0x88] sm:$0xff]
        %v1325 = vld [vmem:[%s5 + $0x90] sm:$0xff]
        %v1326 = vld [vmem:[%s5 + $0x98] sm:$0x1]
        %s1327 = scalar_lea.vmem %s370, 48 [#allocation7]
        %v1328 = vld [vmem:[%s1327] sm:$0xff]
        %v1329 = vld [vmem:[%s1327 + $0x8] sm:$0xff]
        %v1330 = vmul.f32 %v1328, 0.08164966
        %v1331 = vmul.f32 %v1329, 0.08164966
        %v1333 = vsel %vm567, %v1305, 0
        %v1336 = vsel %vm567, %v1306, 0
        %v1339 = vsel %vm574, %v1326, 0
        %1341 = vmatprep.subr.mxu0 0.0
        %1342 = vmatpush1.msra.mxu0 %v1307
        %1343 = vmatprep.subr.mxu0 0.0
        %1344 = vmatpush1.msra.mxu0 %v1308
        %1345 = vmatprep.subr.mxu0 0.0
        %1346 = vmatpush1.msra.mxu0 %v1309
        %1347 = vmatprep.subr.mxu0 0.0
        %1348 = vmatpush1.msra.mxu0 %v1310
        %1349 = vmatprep.subr.mxu0 0.0
        %1350 = vmatpush1.msra.mxu0 %v1311
        %1351 = vmatprep.subr.mxu0 0.0
        %1352 = vmatpush1.msra.mxu0 %v1312
        %1353 = vmatprep.subr.mxu0 0.0
        %1354 = vmatpush1.msra.mxu0 %v1313
        %1355 = vmatprep.subr.mxu0 0.0
        %1356 = vmatpush1.msra.mxu0 %v1314
        %1357 = vmatprep.subr.mxu0 0.0
        %1358 = vmatpush1.msra.mxu0 %v1315
        %1359 = vmatprep.subr.mxu0 0.0
        %1360 = vmatpush1.msra.mxu0 %v1316
        %1361 = vmatprep.subr.mxu0 0.0
        %1362 = vmatpush1.msra.mxu0 %v1317
        %1363 = vmatprep.subr.mxu0 0.0
        %1364 = vmatpush1.msra.mxu0 %v1318
        %1365 = vmatprep.subr.mxu0 0.0
        %1366 = vmatpush1.msra.mxu0 %v1319
        %1367 = vmatprep.subr.mxu0 0.0
        %1368 = vmatpush1.msra.mxu0 %v1320
        %1369 = vmatprep.subr.mxu0 0.0
        %1370 = vmatpush1.msra.mxu0 %v1321
        %1371 = vmatprep.subr.mxu0 0.0
        %1372 = vmatpush1.msra.mxu0 %v1322
        %1373 = vmatprep.subr.mxu0 0.0
        %1374 = vmatpush1.msra.mxu0 %v1323
        %1375 = vmatprep.subr.mxu0 0.0
        %1376 = vmatpush1.msra.mxu0 %v1324
        %1377 = vmatprep.subr.mxu0 0.0
        %1378 = vmatpush1.msra.mxu0 %v1325
        %1379 = vmatprep.subr.mxu0 0.0
        %1380 = vmatpush1.msra.mxu0 %v1339
        %1381 = vmatprep.subr.mxu0 0.0
        %1382 = vmatpush1.msra.mxu0 0.0
        %1383 = vmatprep.subr.mxu0 0.0
        %1384 = vmatpush1.msra.mxu0 0.0
        %1385 = vmatprep.subr.mxu0 0.0
        %1386 = vmatpush1.msra.mxu0 0.0
        %1387 = vmatprep.subr.mxu0 0.0
        %1388 = vmatpush1.msra.mxu0 0.0
        %1389 = vmatprep.subr.mxu0 0.0
        %1390 = vmatpush1.msra.mxu0 0.0
        %1391 = vmatprep.subr.mxu0 0.0
        %1392 = vmatpush1.msra.mxu0 0.0
        %1393 = vmatprep.subr.mxu0 0.0
        %1394 = vmatpush1.msra.mxu0 0.0
        %1395 = vmatprep.subr.mxu0 0.0
        %1396 = vmatpush1.msra.mxu0 0.0
        %1397 = vmatprep.subr.mxu0 0.0
        %1398 = vmatpush1.msra.mxu0 0.0
        %1399 = vmatprep.subr.mxu0 0.0
        %1400 = vmatpush1.msra.mxu0 0.0
        %1401 = vmatprep.subr.mxu0 0.0
        %1402 = vmatpush1.msra.mxu0 0.0
        %1403 = vmatprep.subr.mxu0 0.0
        %1404 = vmatpush1.msra.mxu0 0.0
        %1405 = vmatprep.mubr.f32.mxu0 %v1333
        %1406 = vmatmul.mubr.f32.gmra.mrb[0].mxu0 %v1201
        %v1407 = vpop.f32.mrb[0].mxu0
        %v1408 = vadd.f32 %v1330, %v1407
        %v1409 = vpop.f32.mrb[0].mxu0
        %1410 = vmatprep.mubr.f32.mxu0 %v1336
        %1411 = vmatmul.mubr.f32.gmra.mrb[0].mxu0 %v1202
        %v1412 = vpop.f32.mrb[0].mxu0
        %v1413 = vadd.f32 %v1331, %v1412
        %v1414 = vpop.f32.mrb[0].mxu0
        %1415 = vdwg.mxu0
        %v1416 = vmul.f32 %v1165, 0.6666667
        %v1417 = vmul.f32 %v1166, 0.6666667
        %v1418 = vmul.f32 %v1408, 0.33333334
        %v1419 = vmul.f32 %v1413, 0.33333334
        %v1420 = vadd.f32 %v1416, %v1418
        %v1421 = vadd.f32 %v1417, %v1419
        %v1422 = vmax.f32 %v1420, 0.0
        %v1423 = vmax.f32 %v1421, 0.0
        %vm1424 = vcmp.ne.f32.partialorder %v1420, %v1420
        %vm1425 = vcmp.ne.f32.partialorder %v1421, %v1421
        %v1426 = vadd.f32 %v1420, 0.0
        %v1427 = vadd.f32 %v1421, 0.0
        %v1428 = vand.u32 2147483647, %v1420
        %v1429 = vand.u32 2147483647, %v1421
        %v1430 = vsub.f32 0.0, %v1428
        %v1431 = vsub.f32 0.0, %v1429
        %v1432 = vmul.f32 %v1430, 1.442695
        %v1433 = vpow.pop %v1432
        %v1434 = vmul.f32 %v1431, 1.442695
        %v1435 = vpow.pop %v1434
        %v1436 = vadd.f32 %v1433, 1.0
        %v1437 = vlog2.pop %v1436
        %v1438 = vmul.f32 %v1437, 0.6931472
        %v1439 = vmul.f32 -0.5, %v1433
        %v1440 = vadd.f32 %v1439, 1.0
        %v1441 = vmul.f32 %v1440, %v1433
        %v1442 = vand.u32 2147483647, %v1433
        %vm1443 = vcmp.lt.f32.partialorder %v1442, 0.0004427343
        %v1444 = vsel %vm1443, %v1441, %v1438
        %v1445 = vadd.f32 %v1435, 1.0
        %v1446 = vlog2.pop %v1445
        %v1447 = vmul.f32 %v1446, 0.6931472
        %v1448 = vmul.f32 -0.5, %v1435
        %v1449 = vadd.f32 %v1448, 1.0
        %v1450 = vmul.f32 %v1449, %v1435
        %v1451 = vand.u32 2147483647, %v1435
        %vm1452 = vcmp.lt.f32.partialorder %v1451, 0.0004427343
        %v1453 = vsel %vm1452, %v1450, %v1447
        %v1454 = vadd.f32 %v1422, %v1444
        %v1455 = vadd.f32 %v1423, %v1453
        %v1456 = vsel %vm1424, %v1426, %v1454
        %v1457 = vsel %vm1425, %v1427, %v1455
        %s1458 = scalar_lea.vmem %s411, 48 [#allocation12]
        %1459 = vst [vmem:[%s1458] sm:$0xff] %v1420
        %1460 = vst [vmem:[%s1458 + $0x8] sm:$0xff] %v1421
        %s1461 = scalar_lea.vmem %s418, 48 [#allocation13]
        %1462 = vst [vmem:[%s1461] sm:$0xff] %v1456
        %1463 = vst [vmem:[%s1461 + $0x8] sm:$0xff] %v1457
        %s1464 = scalar_lea.vmem %s361, 64 [#allocation4]
        %v1465 = vld [vmem:[%s1464] sm:$0xff]
        %v1466 = vld [vmem:[%s1464 + $0x8] sm:$0xff]
        %v1467 = vld [vmem:[%s4] sm:$0xff]
        %v1468 = vld [vmem:[%s4 + $0x8] sm:$0xff]
        %v1469 = vld [vmem:[%s4 + $0x10] sm:$0xff]
        %v1470 = vld [vmem:[%s4 + $0x18] sm:$0xff]
        %v1471 = vld [vmem:[%s4 + $0x20] sm:$0xff]
        %v1472 = vld [vmem:[%s4 + $0x28] sm:$0xff]
        %v1473 = vld [vmem:[%s4 + $0x30] sm:$0xff]
        %v1474 = vld [vmem:[%s4 + $0x38] sm:$0xff]
        %v1475 = vld [vmem:[%s4 + $0x40] sm:$0xff]
        %v1476 = vld [vmem:[%s4 + $0x48] sm:$0xff]
        %v1477 = vld [vmem:[%s4 + $0x50] sm:$0xff]
        %v1478 = vld [vmem:[%s4 + $0x58] sm:$0xff]
        %v1479 = vld [vmem:[%s4 + $0x60] sm:$0xff]
        %v1480 = vld [vmem:[%s4 + $0x68] sm:$0xff]
        %v1481 = vld [vmem:[%s4 + $0x70] sm:$0xff]
        %v1482 = vld [vmem:[%s4 + $0x78] sm:$0xff]
        %1483 = vmatprep.subr.mxu0 0.0
        %1484 = vmatpush1.msra.mxu0 %v1467
        %1485 = vmatprep.subr.mxu0 0.0
        %1486 = vmatpush1.msra.mxu0 %v1468
        %1487 = vmatprep.subr.mxu0 0.0
        %1488 = vmatpush1.msra.mxu0 %v1469
        %1489 = vmatprep.subr.mxu0 0.0
        %1490 = vmatpush1.msra.mxu0 %v1470
        %1491 = vmatprep.subr.mxu0 0.0
        %1492 = vmatpush1.msra.mxu0 %v1471
        %1493 = vmatprep.subr.mxu0 0.0
        %1494 = vmatpush1.msra.mxu0 %v1472
        %1495 = vmatprep.subr.mxu0 0.0
        %1496 = vmatpush1.msra.mxu0 %v1473
        %1497 = vmatprep.subr.mxu0 0.0
        %1498 = vmatpush1.msra.mxu0 %v1474
        %1499 = vmatprep.subr.mxu0 0.0
        %1500 = vmatpush1.msra.mxu0 %v1475
        %1501 = vmatprep.subr.mxu0 0.0
        %1502 = vmatpush1.msra.mxu0 %v1476
        %1503 = vmatprep.subr.mxu0 0.0
        %1504 = vmatpush1.msra.mxu0 %v1477
        %1505 = vmatprep.subr.mxu0 0.0
        %1506 = vmatpush1.msra.mxu0 %v1478
        %1507 = vmatprep.subr.mxu0 0.0
        %1508 = vmatpush1.msra.mxu0 %v1479
        %1509 = vmatprep.subr.mxu0 0.0
        %1510 = vmatpush1.msra.mxu0 %v1480
        %1511 = vmatprep.subr.mxu0 0.0
        %1512 = vmatpush1.msra.mxu0 %v1481
        %1513 = vmatprep.subr.mxu0 0.0
        %1514 = vmatpush1.msra.mxu0 %v1482
        %1515 = vmatprep.subr.mxu0 0.0
        %1516 = vmatpush1.msra.mxu0 0.0
        %1517 = vmatprep.subr.mxu0 0.0
        %1518 = vmatpush1.msra.mxu0 0.0
        %1519 = vmatprep.subr.mxu0 0.0
        %1520 = vmatpush1.msra.mxu0 0.0
        %1521 = vmatprep.subr.mxu0 0.0
        %1522 = vmatpush1.msra.mxu0 0.0
        %1523 = vmatprep.subr.mxu0 0.0
        %1524 = vmatpush1.msra.mxu0 0.0
        %1525 = vmatprep.subr.mxu0 0.0
        %1526 = vmatpush1.msra.mxu0 0.0
        %1527 = vmatprep.subr.mxu0 0.0
        %1528 = vmatpush1.msra.mxu0 0.0
        %1529 = vmatprep.subr.mxu0 0.0
        %1530 = vmatpush1.msra.mxu0 0.0
        %1531 = vmatprep.subr.mxu0 0.0
        %1532 = vmatpush1.msra.mxu0 0.0
        %1533 = vmatprep.subr.mxu0 0.0
        %1534 = vmatpush1.msra.mxu0 0.0
        %1535 = vmatprep.subr.mxu0 0.0
        %1536 = vmatpush1.msra.mxu0 0.0
        %1537 = vmatprep.subr.mxu0 0.0
        %1538 = vmatpush1.msra.mxu0 0.0
        %1539 = vmatprep.subr.mxu0 0.0
        %1540 = vmatpush1.msra.mxu0 0.0
        %1541 = vmatprep.subr.mxu0 0.0
        %1542 = vmatpush1.msra.mxu0 0.0
        %1543 = vmatprep.subr.mxu0 0.0
        %1544 = vmatpush1.msra.mxu0 0.0
        %1545 = vmatprep.subr.mxu0 0.0
        %1546 = vmatpush1.msra.mxu0 0.0
        %1547 = vmatprep.mubr.f32.mxu0 0.0
        %1548 = vmatmul.mubr.f32.gmra.mrb[0].mxu0 %v1456
        %v1549 = vpop.f32.mrb[0].mxu0
        %v1550 = vadd.f32 0.0, %v1549
        %v1551 = vpop.f32.mrb[0].mxu0
        %1552 = vmatprep.mubr.f32.mxu0 0.0
        %1553 = vmatmul.mubr.f32.gmra.mrb[0].mxu0 %v1457
        %v1554 = vpop.f32.mrb[0].mxu0
        %v1555 = vadd.f32 0.0, %v1554
        %v1556 = vpop.f32.mrb[0].mxu0
        %1557 = vdwg.mxu0
        %v1558 = vmul.f32 %v1550, %v1465
        %v1559 = vmul.f32 %v1555, %v1466
        %v1560 = vsel %vm540, %v1558, %v1465
        %v1561 = vsel %vm540, %v1559, %v1466
        %v1562 = vld [vmem:[%s5] sm:$0xff]
        %v1563 = vld [vmem:[%s5 + $0x8] sm:$0xff]
        %v1564 = vld [vmem:[%s5 + $0x10] sm:$0xff]
        %v1565 = vld [vmem:[%s5 + $0x18] sm:$0xff]
        %v1566 = vld [vmem:[%s5 + $0x20] sm:$0xff]
        %v1567 = vld [vmem:[%s5 + $0x28] sm:$0xff]
        %v1568 = vld [vmem:[%s5 + $0x30] sm:$0xff]
        %v1569 = vld [vmem:[%s5 + $0x38] sm:$0xff]
        %v1570 = vld [vmem:[%s5 + $0x40] sm:$0xff]
        %v1571 = vld [vmem:[%s5 + $0x48] sm:$0xff]
        %v1572 = vld [vmem:[%s5 + $0x50] sm:$0xff]
        %v1573 = vld [vmem:[%s5 + $0x58] sm:$0xff]
        %v1574 = vld [vmem:[%s5 + $0x60] sm:$0xff]
        %v1575 = vld [vmem:[%s5 + $0x68] sm:$0xff]
        %v1576 = vld [vmem:[%s5 + $0x70] sm:$0xff]
        %v1577 = vld [vmem:[%s5 + $0x78] sm:$0xff]
        %v1578 = vld [vmem:[%s5 + $0x80] sm:$0xff]
        %v1579 = vld [vmem:[%s5 + $0x88] sm:$0xff]
        %v1580 = vld [vmem:[%s5 + $0x90] sm:$0xff]
        %v1581 = vld [vmem:[%s5 + $0x98] sm:$0x1]
        %s1582 = scalar_lea.vmem %s370, 64 [#allocation7]
        %v1583 = vld [vmem:[%s1582] sm:$0xff]
        %v1584 = vld [vmem:[%s1582 + $0x8] sm:$0xff]
        %v1585 = vmul.f32 %v1583, 0.08164966
        %v1586 = vmul.f32 %v1584, 0.08164966
        %v1588 = vsel %vm567, %v1560, 0
        %v1591 = vsel %vm567, %v1561, 0
        %v1594 = vsel %vm574, %v1581, 0
        %1596 = vmatprep.subr.mxu0 0.0
        %1597 = vmatpush1.msra.mxu0 %v1562
        %1598 = vmatprep.subr.mxu0 0.0
        %1599 = vmatpush1.msra.mxu0 %v1563
        %1600 = vmatprep.subr.mxu0 0.0
        %1601 = vmatpush1.msra.mxu0 %v1564
        %1602 = vmatprep.subr.mxu0 0.0
        %1603 = vmatpush1.msra.mxu0 %v1565
        %1604 = vmatprep.subr.mxu0 0.0
        %1605 = vmatpush1.msra.mxu0 %v1566
        %1606 = vmatprep.subr.mxu0 0.0
        %1607 = vmatpush1.msra.mxu0 %v1567
        %1608 = vmatprep.subr.mxu0 0.0
        %1609 = vmatpush1.msra.mxu0 %v1568
        %1610 = vmatprep.subr.mxu0 0.0
        %1611 = vmatpush1.msra.mxu0 %v1569
        %1612 = vmatprep.subr.mxu0 0.0
        %1613 = vmatpush1.msra.mxu0 %v1570
        %1614 = vmatprep.subr.mxu0 0.0
        %1615 = vmatpush1.msra.mxu0 %v1571
        %1616 = vmatprep.subr.mxu0 0.0
        %1617 = vmatpush1.msra.mxu0 %v1572
        %1618 = vmatprep.subr.mxu0 0.0
        %1619 = vmatpush1.msra.mxu0 %v1573
        %1620 = vmatprep.subr.mxu0 0.0
        %1621 = vmatpush1.msra.mxu0 %v1574
        %1622 = vmatprep.subr.mxu0 0.0
        %1623 = vmatpush1.msra.mxu0 %v1575
        %1624 = vmatprep.subr.mxu0 0.0
        %1625 = vmatpush1.msra.mxu0 %v1576
        %1626 = vmatprep.subr.mxu0 0.0
        %1627 = vmatpush1.msra.mxu0 %v1577
        %1628 = vmatprep.subr.mxu0 0.0
        %1629 = vmatpush1.msra.mxu0 %v1578
        %1630 = vmatprep.subr.mxu0 0.0
        %1631 = vmatpush1.msra.mxu0 %v1579
        %1632 = vmatprep.subr.mxu0 0.0
        %1633 = vmatpush1.msra.mxu0 %v1580
        %1634 = vmatprep.subr.mxu0 0.0
        %1635 = vmatpush1.msra.mxu0 %v1594
        %1636 = vmatprep.subr.mxu0 0.0
        %1637 = vmatpush1.msra.mxu0 0.0
        %1638 = vmatprep.subr.mxu0 0.0
        %1639 = vmatpush1.msra.mxu0 0.0
        %1640 = vmatprep.subr.mxu0 0.0
        %1641 = vmatpush1.msra.mxu0 0.0
        %1642 = vmatprep.subr.mxu0 0.0
        %1643 = vmatpush1.msra.mxu0 0.0
        %1644 = vmatprep.subr.mxu0 0.0
        %1645 = vmatpush1.msra.mxu0 0.0
        %1646 = vmatprep.subr.mxu0 0.0
        %1647 = vmatpush1.msra.mxu0 0.0
        %1648 = vmatprep.subr.mxu0 0.0
        %1649 = vmatpush1.msra.mxu0 0.0
        %1650 = vmatprep.subr.mxu0 0.0
        %1651 = vmatpush1.msra.mxu0 0.0
        %1652 = vmatprep.subr.mxu0 0.0
        %1653 = vmatpush1.msra.mxu0 0.0
        %1654 = vmatprep.subr.mxu0 0.0
        %1655 = vmatpush1.msra.mxu0 0.0
        %1656 = vmatprep.subr.mxu0 0.0
        %1657 = vmatpush1.msra.mxu0 0.0
        %1658 = vmatprep.subr.mxu0 0.0
        %1659 = vmatpush1.msra.mxu0 0.0
        %1660 = vmatprep.mubr.f32.mxu0 %v1588
        %1661 = vmatmul.mubr.f32.gmra.mrb[0].mxu0 %v1456
        %v1662 = vpop.f32.mrb[0].mxu0
        %v1663 = vadd.f32 %v1585, %v1662
        %v1664 = vpop.f32.mrb[0].mxu0
        %1665 = vmatprep.mubr.f32.mxu0 %v1591
        %1666 = vmatmul.mubr.f32.gmra.mrb[0].mxu0 %v1457
        %v1667 = vpop.f32.mrb[0].mxu0
        %v1668 = vadd.f32 %v1586, %v1667
        %v1669 = vpop.f32.mrb[0].mxu0
        %1670 = vdwg.mxu0
        %v1671 = vmul.f32 %v1420, 0.6666667
        %v1672 = vmul.f32 %v1421, 0.6666667
        %v1673 = vmul.f32 %v1663, 0.33333334
        %v1674 = vmul.f32 %v1668, 0.33333334
        %v1675 = vadd.f32 %v1671, %v1673
        %v1676 = vadd.f32 %v1672, %v1674
        %v1677 = vmax.f32 %v1675, 0.0
        %v1678 = vmax.f32 %v1676, 0.0
        %vm1679 = vcmp.ne.f32.partialorder %v1675, %v1675
        %vm1680 = vcmp.ne.f32.partialorder %v1676, %v1676
        %v1681 = vadd.f32 %v1675, 0.0
        %v1682 = vadd.f32 %v1676, 0.0
        %v1683 = vand.u32 2147483647, %v1675
        %v1684 = vand.u32 2147483647, %v1676
        %v1685 = vsub.f32 0.0, %v1683
        %v1686 = vsub.f32 0.0, %v1684
        %v1687 = vmul.f32 %v1685, 1.442695
        %v1688 = vpow.pop %v1687
        %v1689 = vmul.f32 %v1686, 1.442695
        %v1690 = vpow.pop %v1689
        %v1691 = vadd.f32 %v1688, 1.0
        %v1692 = vlog2.pop %v1691
        %v1693 = vmul.f32 %v1692, 0.6931472
        %v1694 = vmul.f32 -0.5, %v1688
        %v1695 = vadd.f32 %v1694, 1.0
        %v1696 = vmul.f32 %v1695, %v1688
        %v1697 = vand.u32 2147483647, %v1688
        %vm1698 = vcmp.lt.f32.partialorder %v1697, 0.0004427343
        %v1699 = vsel %vm1698, %v1696, %v1693
        %v1700 = vadd.f32 %v1690, 1.0
        %v1701 = vlog2.pop %v1700
        %v1702 = vmul.f32 %v1701, 0.6931472
        %v1703 = vmul.f32 -0.5, %v1690
        %v1704 = vadd.f32 %v1703, 1.0
        %v1705 = vmul.f32 %v1704, %v1690
        %v1706 = vand.u32 2147483647, %v1690
        %vm1707 = vcmp.lt.f32.partialorder %v1706, 0.0004427343
        %v1708 = vsel %vm1707, %v1705, %v1702
        %v1709 = vadd.f32 %v1677, %v1699
        %v1710 = vadd.f32 %v1678, %v1708
        %v1711 = vsel %vm1679, %v1681, %v1709
        %v1712 = vsel %vm1680, %v1682, %v1710
        %s1713 = scalar_lea.vmem %s411, 64 [#allocation12]
        %1714 = vst [vmem:[%s1713] sm:$0xff] %v1675
        %1715 = vst [vmem:[%s1713 + $0x8] sm:$0xff] %v1676
        %s1716 = scalar_lea.vmem %s418, 64 [#allocation13]
        %1717 = vst [vmem:[%s1716] sm:$0xff] %v1711
        %1718 = vst [vmem:[%s1716 + $0x8] sm:$0xff] %v1712
        %s1719 = scalar_lea.vmem %s361, 80 [#allocation4]
        %v1720 = vld [vmem:[%s1719] sm:$0xff]
        %v1721 = vld [vmem:[%s1719 + $0x8] sm:$0xff]
        %v1722 = vld [vmem:[%s4] sm:$0xff]
        %v1723 = vld [vmem:[%s4 + $0x8] sm:$0xff]
        %v1724 = vld [vmem:[%s4 + $0x10] sm:$0xff]
        %v1725 = vld [vmem:[%s4 + $0x18] sm:$0xff]
        %v1726 = vld [vmem:[%s4 + $0x20] sm:$0xff]
        %v1727 = vld [vmem:[%s4 + $0x28] sm:$0xff]
        %v1728 = vld [vmem:[%s4 + $0x30] sm:$0xff]
        %v1729 = vld [vmem:[%s4 + $0x38] sm:$0xff]
        %v1730 = vld [vmem:[%s4 + $0x40] sm:$0xff]
        %v1731 = vld [vmem:[%s4 + $0x48] sm:$0xff]
        %v1732 = vld [vmem:[%s4 + $0x50] sm:$0xff]
        %v1733 = vld [vmem:[%s4 + $0x58] sm:$0xff]
        %v1734 = vld [vmem:[%s4 + $0x60] sm:$0xff]
        %v1735 = vld [vmem:[%s4 + $0x68] sm:$0xff]
        %v1736 = vld [vmem:[%s4 + $0x70] sm:$0xff]
        %v1737 = vld [vmem:[%s4 + $0x78] sm:$0xff]
        %1738 = vmatprep.subr.mxu0 0.0
        %1739 = vmatpush1.msra.mxu0 %v1722
        %1740 = vmatprep.subr.mxu0 0.0
        %1741 = vmatpush1.msra.mxu0 %v1723
        %1742 = vmatprep.subr.mxu0 0.0
        %1743 = vmatpush1.msra.mxu0 %v1724
        %1744 = vmatprep.subr.mxu0 0.0
        %1745 = vmatpush1.msra.mxu0 %v1725
        %1746 = vmatprep.subr.mxu0 0.0
        %1747 = vmatpush1.msra.mxu0 %v1726
        %1748 = vmatprep.subr.mxu0 0.0
        %1749 = vmatpush1.msra.mxu0 %v1727
        %1750 = vmatprep.subr.mxu0 0.0
        %1751 = vmatpush1.msra.mxu0 %v1728
        %1752 = vmatprep.subr.mxu0 0.0
        %1753 = vmatpush1.msra.mxu0 %v1729
        %1754 = vmatprep.subr.mxu0 0.0
        %1755 = vmatpush1.msra.mxu0 %v1730
        %1756 = vmatprep.subr.mxu0 0.0
        %1757 = vmatpush1.msra.mxu0 %v1731
        %1758 = vmatprep.subr.mxu0 0.0
        %1759 = vmatpush1.msra.mxu0 %v1732
        %1760 = vmatprep.subr.mxu0 0.0
        %1761 = vmatpush1.msra.mxu0 %v1733
        %1762 = vmatprep.subr.mxu0 0.0
        %1763 = vmatpush1.msra.mxu0 %v1734
        %1764 = vmatprep.subr.mxu0 0.0
        %1765 = vmatpush1.msra.mxu0 %v1735
        %1766 = vmatprep.subr.mxu0 0.0
        %1767 = vmatpush1.msra.mxu0 %v1736
        %1768 = vmatprep.subr.mxu0 0.0
        %1769 = vmatpush1.msra.mxu0 %v1737
        %1770 = vmatprep.subr.mxu0 0.0
        %1771 = vmatpush1.msra.mxu0 0.0
        %1772 = vmatprep.subr.mxu0 0.0
        %1773 = vmatpush1.msra.mxu0 0.0
        %1774 = vmatprep.subr.mxu0 0.0
        %1775 = vmatpush1.msra.mxu0 0.0
        %1776 = vmatprep.subr.mxu0 0.0
        %1777 = vmatpush1.msra.mxu0 0.0
        %1778 = vmatprep.subr.mxu0 0.0
        %1779 = vmatpush1.msra.mxu0 0.0
        %1780 = vmatprep.subr.mxu0 0.0
        %1781 = vmatpush1.msra.mxu0 0.0
        %1782 = vmatprep.subr.mxu0 0.0
        %1783 = vmatpush1.msra.mxu0 0.0
        %1784 = vmatprep.subr.mxu0 0.0
        %1785 = vmatpush1.msra.mxu0 0.0
        %1786 = vmatprep.subr.mxu0 0.0
        %1787 = vmatpush1.msra.mxu0 0.0
        %1788 = vmatprep.subr.mxu0 0.0
        %1789 = vmatpush1.msra.mxu0 0.0
        %1790 = vmatprep.subr.mxu0 0.0
        %1791 = vmatpush1.msra.mxu0 0.0
        %1792 = vmatprep.subr.mxu0 0.0
        %1793 = vmatpush1.msra.mxu0 0.0
        %1794 = vmatprep.subr.mxu0 0.0
        %1795 = vmatpush1.msra.mxu0 0.0
        %1796 = vmatprep.subr.mxu0 0.0
        %1797 = vmatpush1.msra.mxu0 0.0
        %1798 = vmatprep.subr.mxu0 0.0
        %1799 = vmatpush1.msra.mxu0 0.0
        %1800 = vmatprep.subr.mxu0 0.0
        %1801 = vmatpush1.msra.mxu0 0.0
        %1802 = vmatprep.mubr.f32.mxu0 0.0
        %1803 = vmatmul.mubr.f32.gmra.mrb[0].mxu0 %v1711
        %v1804 = vpop.f32.mrb[0].mxu0
        %v1805 = vadd.f32 0.0, %v1804
        %v1806 = vpop.f32.mrb[0].mxu0
        %1807 = vmatprep.mubr.f32.mxu0 0.0
        %1808 = vmatmul.mubr.f32.gmra.mrb[0].mxu0 %v1712
        %v1809 = vpop.f32.mrb[0].mxu0
        %v1810 = vadd.f32 0.0, %v1809
        %v1811 = vpop.f32.mrb[0].mxu0
        %1812 = vdwg.mxu0
        %v1813 = vmul.f32 %v1805, %v1720
        %v1814 = vmul.f32 %v1810, %v1721
        %v1815 = vsel %vm540, %v1813, %v1720
        %v1816 = vsel %vm540, %v1814, %v1721
        %v1817 = vld [vmem:[%s5] sm:$0xff]
        %v1818 = vld [vmem:[%s5 + $0x8] sm:$0xff]
        %v1819 = vld [vmem:[%s5 + $0x10] sm:$0xff]
        %v1820 = vld [vmem:[%s5 + $0x18] sm:$0xff]
        %v1821 = vld [vmem:[%s5 + $0x20] sm:$0xff]
        %v1822 = vld [vmem:[%s5 + $0x28] sm:$0xff]
        %v1823 = vld [vmem:[%s5 + $0x30] sm:$0xff]
        %v1824 = vld [vmem:[%s5 + $0x38] sm:$0xff]
        %v1825 = vld [vmem:[%s5 + $0x40] sm:$0xff]
        %v1826 = vld [vmem:[%s5 + $0x48] sm:$0xff]
        %v1827 = vld [vmem:[%s5 + $0x50] sm:$0xff]
        %v1828 = vld [vmem:[%s5 + $0x58] sm:$0xff]
        %v1829 = vld [vmem:[%s5 + $0x60] sm:$0xff]
        %v1830 = vld [vmem:[%s5 + $0x68] sm:$0xff]
        %v1831 = vld [vmem:[%s5 + $0x70] sm:$0xff]
        %v1832 = vld [vmem:[%s5 + $0x78] sm:$0xff]
        %v1833 = vld [vmem:[%s5 + $0x80] sm:$0xff]
        %v1834 = vld [vmem:[%s5 + $0x88] sm:$0xff]
        %v1835 = vld [vmem:[%s5 + $0x90] sm:$0xff]
        %v1836 = vld [vmem:[%s5 + $0x98] sm:$0x1]
        %s1837 = scalar_lea.vmem %s370, 80 [#allocation7]
        %v1838 = vld [vmem:[%s1837] sm:$0xff]
        %v1839 = vld [vmem:[%s1837 + $0x8] sm:$0xff]
        %v1840 = vmul.f32 %v1838, 0.08164966
        %v1841 = vmul.f32 %v1839, 0.08164966
        %v1843 = vsel %vm567, %v1815, 0
        %v1846 = vsel %vm567, %v1816, 0
        %v1849 = vsel %vm574, %v1836, 0
        %1851 = vmatprep.subr.mxu0 0.0
        %1852 = vmatpush1.msra.mxu0 %v1817
        %1853 = vmatprep.subr.mxu0 0.0
        %1854 = vmatpush1.msra.mxu0 %v1818
        %1855 = vmatprep.subr.mxu0 0.0
        %1856 = vmatpush1.msra.mxu0 %v1819
        %1857 = vmatprep.subr.mxu0 0.0
        %1858 = vmatpush1.msra.mxu0 %v1820
        %1859 = vmatprep.subr.mxu0 0.0
        %1860 = vmatpush1.msra.mxu0 %v1821
        %1861 = vmatprep.subr.mxu0 0.0
        %1862 = vmatpush1.msra.mxu0 %v1822
        %1863 = vmatprep.subr.mxu0 0.0
        %1864 = vmatpush1.msra.mxu0 %v1823
        %1865 = vmatprep.subr.mxu0 0.0
        %1866 = vmatpush1.msra.mxu0 %v1824
        %1867 = vmatprep.subr.mxu0 0.0
        %1868 = vmatpush1.msra.mxu0 %v1825
        %1869 = vmatprep.subr.mxu0 0.0
        %1870 = vmatpush1.msra.mxu0 %v1826
        %1871 = vmatprep.subr.mxu0 0.0
        %1872 = vmatpush1.msra.mxu0 %v1827
        %1873 = vmatprep.subr.mxu0 0.0
        %1874 = vmatpush1.msra.mxu0 %v1828
        %1875 = vmatprep.subr.mxu0 0.0
        %1876 = vmatpush1.msra.mxu0 %v1829
        %1877 = vmatprep.subr.mxu0 0.0
        %1878 = vmatpush1.msra.mxu0 %v1830
        %1879 = vmatprep.subr.mxu0 0.0
        %1880 = vmatpush1.msra.mxu0 %v1831
        %1881 = vmatprep.subr.mxu0 0.0
        %1882 = vmatpush1.msra.mxu0 %v1832
        %1883 = vmatprep.subr.mxu0 0.0
        %1884 = vmatpush1.msra.mxu0 %v1833
        %1885 = vmatprep.subr.mxu0 0.0
        %1886 = vmatpush1.msra.mxu0 %v1834
        %1887 = vmatprep.subr.mxu0 0.0
        %1888 = vmatpush1.msra.mxu0 %v1835
        %1889 = vmatprep.subr.mxu0 0.0
        %1890 = vmatpush1.msra.mxu0 %v1849
        %1891 = vmatprep.subr.mxu0 0.0
        %1892 = vmatpush1.msra.mxu0 0.0
        %1893 = vmatprep.subr.mxu0 0.0
        %1894 = vmatpush1.msra.mxu0 0.0
        %1895 = vmatprep.subr.mxu0 0.0
        %1896 = vmatpush1.msra.mxu0 0.0
        %1897 = vmatprep.subr.mxu0 0.0
        %1898 = vmatpush1.msra.mxu0 0.0
        %1899 = vmatprep.subr.mxu0 0.0
        %1900 = vmatpush1.msra.mxu0 0.0
        %1901 = vmatprep.subr.mxu0 0.0
        %1902 = vmatpush1.msra.mxu0 0.0
        %1903 = vmatprep.subr.mxu0 0.0
        %1904 = vmatpush1.msra.mxu0 0.0
        %1905 = vmatprep.subr.mxu0 0.0
        %1906 = vmatpush1.msra.mxu0 0.0
        %1907 = vmatprep.subr.mxu0 0.0
        %1908 = vmatpush1.msra.mxu0 0.0
        %1909 = vmatprep.subr.mxu0 0.0
        %1910 = vmatpush1.msra.mxu0 0.0
        %1911 = vmatprep.subr.mxu0 0.0
        %1912 = vmatpush1.msra.mxu0 0.0
        %1913 = vmatprep.subr.mxu0 0.0
        %1914 = vmatpush1.msra.mxu0 0.0
        %1915 = vmatprep.mubr.f32.mxu0 %v1843
        %1916 = vmatmul.mubr.f32.gmra.mrb[0].mxu0 %v1711
        %v1917 = vpop.f32.mrb[0].mxu0
        %v1918 = vadd.f32 %v1840, %v1917
        %v1919 = vpop.f32.mrb[0].mxu0
        %1920 = vmatprep.mubr.f32.mxu0 %v1846
        %1921 = vmatmul.mubr.f32.gmra.mrb[0].mxu0 %v1712
        %v1922 = vpop.f32.mrb[0].mxu0
        %v1923 = vadd.f32 %v1841, %v1922
        %v1924 = vpop.f32.mrb[0].mxu0
        %1925 = vdwg.mxu0
        %v1926 = vmul.f32 %v1675, 0.6666667
        %v1927 = vmul.f32 %v1676, 0.6666667
        %v1928 = vmul.f32 %v1918, 0.33333334
        %v1929 = vmul.f32 %v1923, 0.33333334
        %v1930 = vadd.f32 %v1926, %v1928
        %v1931 = vadd.f32 %v1927, %v1929
        %v1932 = vmax.f32 %v1930, 0.0
        %v1933 = vmax.f32 %v1931, 0.0
        %vm1934 = vcmp.ne.f32.partialorder %v1930, %v1930
        %vm1935 = vcmp.ne.f32.partialorder %v1931, %v1931
        %v1936 = vadd.f32 %v1930, 0.0
        %v1937 = vadd.f32 %v1931, 0.0
        %v1938 = vand.u32 2147483647, %v1930
        %v1939 = vand.u32 2147483647, %v1931
        %v1940 = vsub.f32 0.0, %v1938
        %v1941 = vsub.f32 0.0, %v1939
        %v1942 = vmul.f32 %v1940, 1.442695
        %v1943 = vpow.pop %v1942
        %v1944 = vmul.f32 %v1941, 1.442695
        %v1945 = vpow.pop %v1944
        %v1946 = vadd.f32 %v1943, 1.0
        %v1947 = vlog2.pop %v1946
        %v1948 = vmul.f32 %v1947, 0.6931472
        %v1949 = vmul.f32 -0.5, %v1943
        %v1950 = vadd.f32 %v1949, 1.0
        %v1951 = vmul.f32 %v1950, %v1943
        %v1952 = vand.u32 2147483647, %v1943
        %vm1953 = vcmp.lt.f32.partialorder %v1952, 0.0004427343
        %v1954 = vsel %vm1953, %v1951, %v1948
        %v1955 = vadd.f32 %v1945, 1.0
        %v1956 = vlog2.pop %v1955
        %v1957 = vmul.f32 %v1956, 0.6931472
        %v1958 = vmul.f32 -0.5, %v1945
        %v1959 = vadd.f32 %v1958, 1.0
        %v1960 = vmul.f32 %v1959, %v1945
        %v1961 = vand.u32 2147483647, %v1945
        %vm1962 = vcmp.lt.f32.partialorder %v1961, 0.0004427343
        %v1963 = vsel %vm1962, %v1960, %v1957
        %v1964 = vadd.f32 %v1932, %v1954
        %v1965 = vadd.f32 %v1933, %v1963
        %v1966 = vsel %vm1934, %v1936, %v1964
        %v1967 = vsel %vm1935, %v1937, %v1965
        %s1968 = scalar_lea.vmem %s411, 80 [#allocation12]
        %1969 = vst [vmem:[%s1968] sm:$0xff] %v1930
        %1970 = vst [vmem:[%s1968 + $0x8] sm:$0xff] %v1931
        %s1971 = scalar_lea.vmem %s418, 80 [#allocation13]
        %1972 = vst [vmem:[%s1971] sm:$0xff] %v1966
        %1973 = vst [vmem:[%s1971 + $0x8] sm:$0xff] %v1967
        %s1974 = scalar_lea.vmem %s361, 96 [#allocation4]
        %v1975 = vld [vmem:[%s1974] sm:$0xff]
        %v1976 = vld [vmem:[%s1974 + $0x8] sm:$0xff]
        %v1977 = vld [vmem:[%s4] sm:$0xff]
        %v1978 = vld [vmem:[%s4 + $0x8] sm:$0xff]
        %v1979 = vld [vmem:[%s4 + $0x10] sm:$0xff]
        %v1980 = vld [vmem:[%s4 + $0x18] sm:$0xff]
        %v1981 = vld [vmem:[%s4 + $0x20] sm:$0xff]
        %v1982 = vld [vmem:[%s4 + $0x28] sm:$0xff]
        %v1983 = vld [vmem:[%s4 + $0x30] sm:$0xff]
        %v1984 = vld [vmem:[%s4 + $0x38] sm:$0xff]
        %v1985 = vld [vmem:[%s4 + $0x40] sm:$0xff]
        %v1986 = vld [vmem:[%s4 + $0x48] sm:$0xff]
        %v1987 = vld [vmem:[%s4 + $0x50] sm:$0xff]
        %v1988 = vld [vmem:[%s4 + $0x58] sm:$0xff]
        %v1989 = vld [vmem:[%s4 + $0x60] sm:$0xff]
        %v1990 = vld [vmem:[%s4 + $0x68] sm:$0xff]
        %v1991 = vld [vmem:[%s4 + $0x70] sm:$0xff]
        %v1992 = vld [vmem:[%s4 + $0x78] sm:$0xff]
        %1993 = vmatprep.subr.mxu0 0.0
        %1994 = vmatpush1.msra.mxu0 %v1977
        %1995 = vmatprep.subr.mxu0 0.0
        %1996 = vmatpush1.msra.mxu0 %v1978
        %1997 = vmatprep.subr.mxu0 0.0
        %1998 = vmatpush1.msra.mxu0 %v1979
        %1999 = vmatprep.subr.mxu0 0.0
        %2000 = vmatpush1.msra.mxu0 %v1980
        %2001 = vmatprep.subr.mxu0 0.0
        %2002 = vmatpush1.msra.mxu0 %v1981
        %2003 = vmatprep.subr.mxu0 0.0
        %2004 = vmatpush1.msra.mxu0 %v1982
        %2005 = vmatprep.subr.mxu0 0.0
        %2006 = vmatpush1.msra.mxu0 %v1983
        %2007 = vmatprep.subr.mxu0 0.0
        %2008 = vmatpush1.msra.mxu0 %v1984
        %2009 = vmatprep.subr.mxu0 0.0
        %2010 = vmatpush1.msra.mxu0 %v1985
        %2011 = vmatprep.subr.mxu0 0.0
        %2012 = vmatpush1.msra.mxu0 %v1986
        %2013 = vmatprep.subr.mxu0 0.0
        %2014 = vmatpush1.msra.mxu0 %v1987
        %2015 = vmatprep.subr.mxu0 0.0
        %2016 = vmatpush1.msra.mxu0 %v1988
        %2017 = vmatprep.subr.mxu0 0.0
        %2018 = vmatpush1.msra.mxu0 %v1989
        %2019 = vmatprep.subr.mxu0 0.0
        %2020 = vmatpush1.msra.mxu0 %v1990
        %2021 = vmatprep.subr.mxu0 0.0
        %2022 = vmatpush1.msra.mxu0 %v1991
        %2023 = vmatprep.subr.mxu0 0.0
        %2024 = vmatpush1.msra.mxu0 %v1992
        %2025 = vmatprep.subr.mxu0 0.0
        %2026 = vmatpush1.msra.mxu0 0.0
        %2027 = vmatprep.subr.mxu0 0.0
        %2028 = vmatpush1.msra.mxu0 0.0
        %2029 = vmatprep.subr.mxu0 0.0
        %2030 = vmatpush1.msra.mxu0 0.0
        %2031 = vmatprep.subr.mxu0 0.0
        %2032 = vmatpush1.msra.mxu0 0.0
        %2033 = vmatprep.subr.mxu0 0.0
        %2034 = vmatpush1.msra.mxu0 0.0
        %2035 = vmatprep.subr.mxu0 0.0
        %2036 = vmatpush1.msra.mxu0 0.0
        %2037 = vmatprep.subr.mxu0 0.0
        %2038 = vmatpush1.msra.mxu0 0.0
        %2039 = vmatprep.subr.mxu0 0.0
        %2040 = vmatpush1.msra.mxu0 0.0
        %2041 = vmatprep.subr.mxu0 0.0
        %2042 = vmatpush1.msra.mxu0 0.0
        %2043 = vmatprep.subr.mxu0 0.0
        %2044 = vmatpush1.msra.mxu0 0.0
        %2045 = vmatprep.subr.mxu0 0.0
        %2046 = vmatpush1.msra.mxu0 0.0
        %2047 = vmatprep.subr.mxu0 0.0
        %2048 = vmatpush1.msra.mxu0 0.0
        %2049 = vmatprep.subr.mxu0 0.0
        %2050 = vmatpush1.msra.mxu0 0.0
        %2051 = vmatprep.subr.mxu0 0.0
        %2052 = vmatpush1.msra.mxu0 0.0
        %2053 = vmatprep.subr.mxu0 0.0
        %2054 = vmatpush1.msra.mxu0 0.0
        %2055 = vmatprep.subr.mxu0 0.0
        %2056 = vmatpush1.msra.mxu0 0.0
        %2057 = vmatprep.mubr.f32.mxu0 0.0
        %2058 = vmatmul.mubr.f32.gmra.mrb[0].mxu0 %v1966
        %v2059 = vpop.f32.mrb[0].mxu0
        %v2060 = vadd.f32 0.0, %v2059
        %v2061 = vpop.f32.mrb[0].mxu0
        %2062 = vmatprep.mubr.f32.mxu0 0.0
        %2063 = vmatmul.mubr.f32.gmra.mrb[0].mxu0 %v1967
        %v2064 = vpop.f32.mrb[0].mxu0
        %v2065 = vadd.f32 0.0, %v2064
        %v2066 = vpop.f32.mrb[0].mxu0
        %2067 = vdwg.mxu0
        %v2068 = vmul.f32 %v2060, %v1975
        %v2069 = vmul.f32 %v2065, %v1976
        %v2070 = vsel %vm540, %v2068, %v1975
        %v2071 = vsel %vm540, %v2069, %v1976
        %v2072 = vld [vmem:[%s5] sm:$0xff]
        %v2073 = vld [vmem:[%s5 + $0x8] sm:$0xff]
        %v2074 = vld [vmem:[%s5 + $0x10] sm:$0xff]
        %v2075 = vld [vmem:[%s5 + $0x18] sm:$0xff]
        %v2076 = vld [vmem:[%s5 + $0x20] sm:$0xff]
        %v2077 = vld [vmem:[%s5 + $0x28] sm:$0xff]
        %v2078 = vld [vmem:[%s5 + $0x30] sm:$0xff]
        %v2079 = vld [vmem:[%s5 + $0x38] sm:$0xff]
        %v2080 = vld [vmem:[%s5 + $0x40] sm:$0xff]
        %v2081 = vld [vmem:[%s5 + $0x48] sm:$0xff]
        %v2082 = vld [vmem:[%s5 + $0x50] sm:$0xff]
        %v2083 = vld [vmem:[%s5 + $0x58] sm:$0xff]
        %v2084 = vld [vmem:[%s5 + $0x60] sm:$0xff]
        %v2085 = vld [vmem:[%s5 + $0x68] sm:$0xff]
        %v2086 = vld [vmem:[%s5 + $0x70] sm:$0xff]
        %v2087 = vld [vmem:[%s5 + $0x78] sm:$0xff]
        %v2088 = vld [vmem:[%s5 + $0x80] sm:$0xff]
        %v2089 = vld [vmem:[%s5 + $0x88] sm:$0xff]
        %v2090 = vld [vmem:[%s5 + $0x90] sm:$0xff]
        %v2091 = vld [vmem:[%s5 + $0x98] sm:$0x1]
        %s2092 = scalar_lea.vmem %s370, 96 [#allocation7]
        %v2093 = vld [vmem:[%s2092] sm:$0xff]
        %v2094 = vld [vmem:[%s2092 + $0x8] sm:$0xff]
        %v2095 = vmul.f32 %v2093, 0.08164966
        %v2096 = vmul.f32 %v2094, 0.08164966
        %v2098 = vsel %vm567, %v2070, 0
        %v2101 = vsel %vm567, %v2071, 0
        %v2104 = vsel %vm574, %v2091, 0
        %2106 = vmatprep.subr.mxu0 0.0
        %2107 = vmatpush1.msra.mxu0 %v2072
        %2108 = vmatprep.subr.mxu0 0.0
        %2109 = vmatpush1.msra.mxu0 %v2073
        %2110 = vmatprep.subr.mxu0 0.0
        %2111 = vmatpush1.msra.mxu0 %v2074
        %2112 = vmatprep.subr.mxu0 0.0
        %2113 = vmatpush1.msra.mxu0 %v2075
        %2114 = vmatprep.subr.mxu0 0.0
        %2115 = vmatpush1.msra.mxu0 %v2076
        %2116 = vmatprep.subr.mxu0 0.0
        %2117 = vmatpush1.msra.mxu0 %v2077
        %2118 = vmatprep.subr.mxu0 0.0
        %2119 = vmatpush1.msra.mxu0 %v2078
        %2120 = vmatprep.subr.mxu0 0.0
        %2121 = vmatpush1.msra.mxu0 %v2079
        %2122 = vmatprep.subr.mxu0 0.0
        %2123 = vmatpush1.msra.mxu0 %v2080
        %2124 = vmatprep.subr.mxu0 0.0
        %2125 = vmatpush1.msra.mxu0 %v2081
        %2126 = vmatprep.subr.mxu0 0.0
        %2127 = vmatpush1.msra.mxu0 %v2082
        %2128 = vmatprep.subr.mxu0 0.0
        %2129 = vmatpush1.msra.mxu0 %v2083
        %2130 = vmatprep.subr.mxu0 0.0
        %2131 = vmatpush1.msra.mxu0 %v2084
        %2132 = vmatprep.subr.mxu0 0.0
        %2133 = vmatpush1.msra.mxu0 %v2085
        %2134 = vmatprep.subr.mxu0 0.0
        %2135 = vmatpush1.msra.mxu0 %v2086
        %2136 = vmatprep.subr.mxu0 0.0
        %2137 = vmatpush1.msra.mxu0 %v2087
        %2138 = vmatprep.subr.mxu0 0.0
        %2139 = vmatpush1.msra.mxu0 %v2088
        %2140 = vmatprep.subr.mxu0 0.0
        %2141 = vmatpush1.msra.mxu0 %v2089
        %2142 = vmatprep.subr.mxu0 0.0
        %2143 = vmatpush1.msra.mxu0 %v2090
        %2144 = vmatprep.subr.mxu0 0.0
        %2145 = vmatpush1.msra.mxu0 %v2104
        %2146 = vmatprep.subr.mxu0 0.0
        %2147 = vmatpush1.msra.mxu0 0.0
        %2148 = vmatprep.subr.mxu0 0.0
        %2149 = vmatpush1.msra.mxu0 0.0
        %2150 = vmatprep.subr.mxu0 0.0
        %2151 = vmatpush1.msra.mxu0 0.0
        %2152 = vmatprep.subr.mxu0 0.0
        %2153 = vmatpush1.msra.mxu0 0.0
        %2154 = vmatprep.subr.mxu0 0.0
        %2155 = vmatpush1.msra.mxu0 0.0
        %2156 = vmatprep.subr.mxu0 0.0
        %2157 = vmatpush1.msra.mxu0 0.0
        %2158 = vmatprep.subr.mxu0 0.0
        %2159 = vmatpush1.msra.mxu0 0.0
        %2160 = vmatprep.subr.mxu0 0.0
        %2161 = vmatpush1.msra.mxu0 0.0
        %2162 = vmatprep.subr.mxu0 0.0
        %2163 = vmatpush1.msra.mxu0 0.0
        %2164 = vmatprep.subr.mxu0 0.0
        %2165 = vmatpush1.msra.mxu0 0.0
        %2166 = vmatprep.subr.mxu0 0.0
        %2167 = vmatpush1.msra.mxu0 0.0
        %2168 = vmatprep.subr.mxu0 0.0
        %2169 = vmatpush1.msra.mxu0 0.0
        %2170 = vmatprep.mubr.f32.mxu0 %v2098
        %2171 = vmatmul.mubr.f32.gmra.mrb[0].mxu0 %v1966
        %v2172 = vpop.f32.mrb[0].mxu0
        %v2173 = vadd.f32 %v2095, %v2172
        %v2174 = vpop.f32.mrb[0].mxu0
        %2175 = vmatprep.mubr.f32.mxu0 %v2101
        %2176 = vmatmul.mubr.f32.gmra.mrb[0].mxu0 %v1967
        %v2177 = vpop.f32.mrb[0].mxu0
        %v2178 = vadd.f32 %v2096, %v2177
        %v2179 = vpop.f32.mrb[0].mxu0
        %2180 = vdwg.mxu0
        %v2181 = vmul.f32 %v1930, 0.6666667
        %v2182 = vmul.f32 %v1931, 0.6666667
        %v2183 = vmul.f32 %v2173, 0.33333334
        %v2184 = vmul.f32 %v2178, 0.33333334
        %v2185 = vadd.f32 %v2181, %v2183
        %v2186 = vadd.f32 %v2182, %v2184
        %v2187 = vmax.f32 %v2185, 0.0
        %v2188 = vmax.f32 %v2186, 0.0
        %vm2189 = vcmp.ne.f32.partialorder %v2185, %v2185
        %vm2190 = vcmp.ne.f32.partialorder %v2186, %v2186
        %v2191 = vadd.f32 %v2185, 0.0
        %v2192 = vadd.f32 %v2186, 0.0
        %v2193 = vand.u32 2147483647, %v2185
        %v2194 = vand.u32 2147483647, %v2186
        %v2195 = vsub.f32 0.0, %v2193
        %v2196 = vsub.f32 0.0, %v2194
        %v2197 = vmul.f32 %v2195, 1.442695
        %v2198 = vpow.pop %v2197
        %v2199 = vmul.f32 %v2196, 1.442695
        %v2200 = vpow.pop %v2199
        %v2201 = vadd.f32 %v2198, 1.0
        %v2202 = vlog2.pop %v2201
        %v2203 = vmul.f32 %v2202, 0.6931472
        %v2204 = vmul.f32 -0.5, %v2198
        %v2205 = vadd.f32 %v2204, 1.0
        %v2206 = vmul.f32 %v2205, %v2198
        %v2207 = vand.u32 2147483647, %v2198
        %vm2208 = vcmp.lt.f32.partialorder %v2207, 0.0004427343
        %v2209 = vsel %vm2208, %v2206, %v2203
        %v2210 = vadd.f32 %v2200, 1.0
        %v2211 = vlog2.pop %v2210
        %v2212 = vmul.f32 %v2211, 0.6931472
        %v2213 = vmul.f32 -0.5, %v2200
        %v2214 = vadd.f32 %v2213, 1.0
        %v2215 = vmul.f32 %v2214, %v2200
        %v2216 = vand.u32 2147483647, %v2200
        %vm2217 = vcmp.lt.f32.partialorder %v2216, 0.0004427343
        %v2218 = vsel %vm2217, %v2215, %v2212
        %v2219 = vadd.f32 %v2187, %v2209
        %v2220 = vadd.f32 %v2188, %v2218
        %v2221 = vsel %vm2189, %v2191, %v2219
        %v2222 = vsel %vm2190, %v2192, %v2220
        %s2223 = scalar_lea.vmem %s411, 96 [#allocation12]
        %2224 = vst [vmem:[%s2223] sm:$0xff] %v2185
        %2225 = vst [vmem:[%s2223 + $0x8] sm:$0xff] %v2186
        %s2226 = scalar_lea.vmem %s418, 96 [#allocation13]
        %2227 = vst [vmem:[%s2226] sm:$0xff] %v2221
        %2228 = vst [vmem:[%s2226 + $0x8] sm:$0xff] %v2222
        %s2229 = scalar_lea.vmem %s361, 112 [#allocation4]
        %v2230 = vld [vmem:[%s2229] sm:$0xff]
        %v2231 = vld [vmem:[%s2229 + $0x8] sm:$0xff]
        %v2232 = vld [vmem:[%s4] sm:$0xff]
        %v2233 = vld [vmem:[%s4 + $0x8] sm:$0xff]
        %v2234 = vld [vmem:[%s4 + $0x10] sm:$0xff]
        %v2235 = vld [vmem:[%s4 + $0x18] sm:$0xff]
        %v2236 = vld [vmem:[%s4 + $0x20] sm:$0xff]
        %v2237 = vld [vmem:[%s4 + $0x28] sm:$0xff]
        %v2238 = vld [vmem:[%s4 + $0x30] sm:$0xff]
        %v2239 = vld [vmem:[%s4 + $0x38] sm:$0xff]
        %v2240 = vld [vmem:[%s4 + $0x40] sm:$0xff]
        %v2241 = vld [vmem:[%s4 + $0x48] sm:$0xff]
        %v2242 = vld [vmem:[%s4 + $0x50] sm:$0xff]
        %v2243 = vld [vmem:[%s4 + $0x58] sm:$0xff]
        %v2244 = vld [vmem:[%s4 + $0x60] sm:$0xff]
        %v2245 = vld [vmem:[%s4 + $0x68] sm:$0xff]
        %v2246 = vld [vmem:[%s4 + $0x70] sm:$0xff]
        %v2247 = vld [vmem:[%s4 + $0x78] sm:$0xff]
        %2248 = vmatprep.subr.mxu0 0.0
        %2249 = vmatpush1.msra.mxu0 %v2232
        %2250 = vmatprep.subr.mxu0 0.0
        %2251 = vmatpush1.msra.mxu0 %v2233
        %2252 = vmatprep.subr.mxu0 0.0
        %2253 = vmatpush1.msra.mxu0 %v2234
        %2254 = vmatprep.subr.mxu0 0.0
        %2255 = vmatpush1.msra.mxu0 %v2235
        %2256 = vmatprep.subr.mxu0 0.0
        %2257 = vmatpush1.msra.mxu0 %v2236
        %2258 = vmatprep.subr.mxu0 0.0
        %2259 = vmatpush1.msra.mxu0 %v2237
        %2260 = vmatprep.subr.mxu0 0.0
        %2261 = vmatpush1.msra.mxu0 %v2238
        %2262 = vmatprep.subr.mxu0 0.0
        %2263 = vmatpush1.msra.mxu0 %v2239
        %2264 = vmatprep.subr.mxu0 0.0
        %2265 = vmatpush1.msra.mxu0 %v2240
        %2266 = vmatprep.subr.mxu0 0.0
        %2267 = vmatpush1.msra.mxu0 %v2241
        %2268 = vmatprep.subr.mxu0 0.0
        %2269 = vmatpush1.msra.mxu0 %v2242
        %2270 = vmatprep.subr.mxu0 0.0
        %2271 = vmatpush1.msra.mxu0 %v2243
        %2272 = vmatprep.subr.mxu0 0.0
        %2273 = vmatpush1.msra.mxu0 %v2244
        %2274 = vmatprep.subr.mxu0 0.0
        %2275 = vmatpush1.msra.mxu0 %v2245
        %2276 = vmatprep.subr.mxu0 0.0
        %2277 = vmatpush1.msra.mxu0 %v2246
        %2278 = vmatprep.subr.mxu0 0.0
        %2279 = vmatpush1.msra.mxu0 %v2247
        %2280 = vmatprep.subr.mxu0 0.0
        %2281 = vmatpush1.msra.mxu0 0.0
        %2282 = vmatprep.subr.mxu0 0.0
        %2283 = vmatpush1.msra.mxu0 0.0
        %2284 = vmatprep.subr.mxu0 0.0
        %2285 = vmatpush1.msra.mxu0 0.0
        %2286 = vmatprep.subr.mxu0 0.0
        %2287 = vmatpush1.msra.mxu0 0.0
        %2288 = vmatprep.subr.mxu0 0.0
        %2289 = vmatpush1.msra.mxu0 0.0
        %2290 = vmatprep.subr.mxu0 0.0
        %2291 = vmatpush1.msra.mxu0 0.0
        %2292 = vmatprep.subr.mxu0 0.0
        %2293 = vmatpush1.msra.mxu0 0.0
        %2294 = vmatprep.subr.mxu0 0.0
        %2295 = vmatpush1.msra.mxu0 0.0
        %2296 = vmatprep.subr.mxu0 0.0
        %2297 = vmatpush1.msra.mxu0 0.0
        %2298 = vmatprep.subr.mxu0 0.0
        %2299 = vmatpush1.msra.mxu0 0.0
        %2300 = vmatprep.subr.mxu0 0.0
        %2301 = vmatpush1.msra.mxu0 0.0
        %2302 = vmatprep.subr.mxu0 0.0
        %2303 = vmatpush1.msra.mxu0 0.0
        %2304 = vmatprep.subr.mxu0 0.0
        %2305 = vmatpush1.msra.mxu0 0.0
        %2306 = vmatprep.subr.mxu0 0.0
        %2307 = vmatpush1.msra.mxu0 0.0
        %2308 = vmatprep.subr.mxu0 0.0
        %2309 = vmatpush1.msra.mxu0 0.0
        %2310 = vmatprep.subr.mxu0 0.0
        %2311 = vmatpush1.msra.mxu0 0.0
        %2312 = vmatprep.mubr.f32.mxu0 0.0
        %2313 = vmatmul.mubr.f32.gmra.mrb[0].mxu0 %v2221
        %v2314 = vpop.f32.mrb[0].mxu0
        %v2315 = vadd.f32 0.0, %v2314
        %v2316 = vpop.f32.mrb[0].mxu0
        %2317 = vmatprep.mubr.f32.mxu0 0.0
        %2318 = vmatmul.mubr.f32.gmra.mrb[0].mxu0 %v2222
        %v2319 = vpop.f32.mrb[0].mxu0
        %v2320 = vadd.f32 0.0, %v2319
        %v2321 = vpop.f32.mrb[0].mxu0
        %2322 = vdwg.mxu0
        %v2323 = vmul.f32 %v2315, %v2230
        %v2324 = vmul.f32 %v2320, %v2231
        %v2325 = vsel %vm540, %v2323, %v2230
        %v2326 = vsel %vm540, %v2324, %v2231
        %v2327 = vld [vmem:[%s5] sm:$0xff]
        %v2328 = vld [vmem:[%s5 + $0x8] sm:$0xff]
        %v2329 = vld [vmem:[%s5 + $0x10] sm:$0xff]
        %v2330 = vld [vmem:[%s5 + $0x18] sm:$0xff]
        %v2331 = vld [vmem:[%s5 + $0x20] sm:$0xff]
        %v2332 = vld [vmem:[%s5 + $0x28] sm:$0xff]
        %v2333 = vld [vmem:[%s5 + $0x30] sm:$0xff]
        %v2334 = vld [vmem:[%s5 + $0x38] sm:$0xff]
        %v2335 = vld [vmem:[%s5 + $0x40] sm:$0xff]
        %v2336 = vld [vmem:[%s5 + $0x48] sm:$0xff]
        %v2337 = vld [vmem:[%s5 + $0x50] sm:$0xff]
        %v2338 = vld [vmem:[%s5 + $0x58] sm:$0xff]
        %v2339 = vld [vmem:[%s5 + $0x60] sm:$0xff]
        %v2340 = vld [vmem:[%s5 + $0x68] sm:$0xff]
        %v2341 = vld [vmem:[%s5 + $0x70] sm:$0xff]
        %v2342 = vld [vmem:[%s5 + $0x78] sm:$0xff]
        %v2343 = vld [vmem:[%s5 + $0x80] sm:$0xff]
        %v2344 = vld [vmem:[%s5 + $0x88] sm:$0xff]
        %v2345 = vld [vmem:[%s5 + $0x90] sm:$0xff]
        %v2346 = vld [vmem:[%s5 + $0x98] sm:$0x1]
        %s2347 = scalar_lea.vmem %s370, 112 [#allocation7]
        %v2348 = vld [vmem:[%s2347] sm:$0xff]
        %v2349 = vld [vmem:[%s2347 + $0x8] sm:$0xff]
        %v2350 = vmul.f32 %v2348, 0.08164966
        %v2351 = vmul.f32 %v2349, 0.08164966
        %v2353 = vsel %vm567, %v2325, 0
        %v2356 = vsel %vm567, %v2326, 0
        %v2359 = vsel %vm574, %v2346, 0
        %2361 = vmatprep.subr.mxu0 0.0
        %2362 = vmatpush1.msra.mxu0 %v2327
        %2363 = vmatprep.subr.mxu0 0.0
        %2364 = vmatpush1.msra.mxu0 %v2328
        %2365 = vmatprep.subr.mxu0 0.0
        %2366 = vmatpush1.msra.mxu0 %v2329
        %2367 = vmatprep.subr.mxu0 0.0
        %2368 = vmatpush1.msra.mxu0 %v2330
        %2369 = vmatprep.subr.mxu0 0.0
        %2370 = vmatpush1.msra.mxu0 %v2331
        %2371 = vmatprep.subr.mxu0 0.0
        %2372 = vmatpush1.msra.mxu0 %v2332
        %2373 = vmatprep.subr.mxu0 0.0
        %2374 = vmatpush1.msra.mxu0 %v2333
        %2375 = vmatprep.subr.mxu0 0.0
        %2376 = vmatpush1.msra.mxu0 %v2334
        %2377 = vmatprep.subr.mxu0 0.0
        %2378 = vmatpush1.msra.mxu0 %v2335
        %2379 = vmatprep.subr.mxu0 0.0
        %2380 = vmatpush1.msra.mxu0 %v2336
        %2381 = vmatprep.subr.mxu0 0.0
        %2382 = vmatpush1.msra.mxu0 %v2337
        %2383 = vmatprep.subr.mxu0 0.0
        %2384 = vmatpush1.msra.mxu0 %v2338
        %2385 = vmatprep.subr.mxu0 0.0
        %2386 = vmatpush1.msra.mxu0 %v2339
        %2387 = vmatprep.subr.mxu0 0.0
        %2388 = vmatpush1.msra.mxu0 %v2340
        %2389 = vmatprep.subr.mxu0 0.0
        %2390 = vmatpush1.msra.mxu0 %v2341
        %2391 = vmatprep.subr.mxu0 0.0
        %2392 = vmatpush1.msra.mxu0 %v2342
        %2393 = vmatprep.subr.mxu0 0.0
        %2394 = vmatpush1.msra.mxu0 %v2343
        %2395 = vmatprep.subr.mxu0 0.0
        %2396 = vmatpush1.msra.mxu0 %v2344
        %2397 = vmatprep.subr.mxu0 0.0
        %2398 = vmatpush1.msra.mxu0 %v2345
        %2399 = vmatprep.subr.mxu0 0.0
        %2400 = vmatpush1.msra.mxu0 %v2359
        %2401 = vmatprep.subr.mxu0 0.0
        %2402 = vmatpush1.msra.mxu0 0.0
        %2403 = vmatprep.subr.mxu0 0.0
        %2404 = vmatpush1.msra.mxu0 0.0
        %2405 = vmatprep.subr.mxu0 0.0
        %2406 = vmatpush1.msra.mxu0 0.0
        %2407 = vmatprep.subr.mxu0 0.0
        %2408 = vmatpush1.msra.mxu0 0.0
        %2409 = vmatprep.subr.mxu0 0.0
        %2410 = vmatpush1.msra.mxu0 0.0
        %2411 = vmatprep.subr.mxu0 0.0
        %2412 = vmatpush1.msra.mxu0 0.0
        %2413 = vmatprep.subr.mxu0 0.0
        %2414 = vmatpush1.msra.mxu0 0.0
        %2415 = vmatprep.subr.mxu0 0.0
        %2416 = vmatpush1.msra.mxu0 0.0
        %2417 = vmatprep.subr.mxu0 0.0
        %2418 = vmatpush1.msra.mxu0 0.0
        %2419 = vmatprep.subr.mxu0 0.0
        %2420 = vmatpush1.msra.mxu0 0.0
        %2421 = vmatprep.subr.mxu0 0.0
        %2422 = vmatpush1.msra.mxu0 0.0
        %2423 = vmatprep.subr.mxu0 0.0
        %2424 = vmatpush1.msra.mxu0 0.0
        %2425 = vmatprep.mubr.f32.mxu0 %v2353
        %2426 = vmatmul.mubr.f32.gmra.mrb[0].mxu0 %v2221
        %v2427 = vpop.f32.mrb[0].mxu0
        %v2428 = vadd.f32 %v2350, %v2427
        %v2429 = vpop.f32.mrb[0].mxu0
        %2430 = vmatprep.mubr.f32.mxu0 %v2356
        %2431 = vmatmul.mubr.f32.gmra.mrb[0].mxu0 %v2222
        %v2432 = vpop.f32.mrb[0].mxu0
        %v2433 = vadd.f32 %v2351, %v2432
        %v2434 = vpop.f32.mrb[0].mxu0
        %2435 = vdwg.mxu0
        %v2436 = vmul.f32 %v2185, 0.6666667
        %v2437 = vmul.f32 %v2186, 0.6666667
        %v2438 = vmul.f32 %v2428, 0.33333334
        %v2439 = vmul.f32 %v2433, 0.33333334
        %v2440 = vadd.f32 %v2436, %v2438
        %v2441 = vadd.f32 %v2437, %v2439
        %v2442 = vmax.f32 %v2440, 0.0
        %v2443 = vmax.f32 %v2441, 0.0
        %vm2444 = vcmp.ne.f32.partialorder %v2440, %v2440
        %vm2445 = vcmp.ne.f32.partialorder %v2441, %v2441
        %v2446 = vadd.f32 %v2440, 0.0
        %v2447 = vadd.f32 %v2441, 0.0
        %v2448 = vand.u32 2147483647, %v2440
        %v2449 = vand.u32 2147483647, %v2441
        %v2450 = vsub.f32 0.0, %v2448
        %v2451 = vsub.f32 0.0, %v2449
        %v2452 = vmul.f32 %v2450, 1.442695
        %v2453 = vpow.pop %v2452
        %v2454 = vmul.f32 %v2451, 1.442695
        %v2455 = vpow.pop %v2454
        %v2456 = vadd.f32 %v2453, 1.0
        %v2457 = vlog2.pop %v2456
        %v2458 = vmul.f32 %v2457, 0.6931472
        %v2459 = vmul.f32 -0.5, %v2453
        %v2460 = vadd.f32 %v2459, 1.0
        %v2461 = vmul.f32 %v2460, %v2453
        %v2462 = vand.u32 2147483647, %v2453
        %vm2463 = vcmp.lt.f32.partialorder %v2462, 0.0004427343
        %v2464 = vsel %vm2463, %v2461, %v2458
        %v2465 = vadd.f32 %v2455, 1.0
        %v2466 = vlog2.pop %v2465
        %v2467 = vmul.f32 %v2466, 0.6931472
        %v2468 = vmul.f32 -0.5, %v2455
        %v2469 = vadd.f32 %v2468, 1.0
        %v2470 = vmul.f32 %v2469, %v2455
        %v2471 = vand.u32 2147483647, %v2455
        %vm2472 = vcmp.lt.f32.partialorder %v2471, 0.0004427343
        %v2473 = vsel %vm2472, %v2470, %v2467
        %v2474 = vadd.f32 %v2442, %v2464
        %v2475 = vadd.f32 %v2443, %v2473
        %v2476 = vsel %vm2444, %v2446, %v2474
        %v2477 = vsel %vm2445, %v2447, %v2475
        %s2478 = scalar_lea.vmem %s411, 112 [#allocation12]
        %2479 = vst [vmem:[%s2478] sm:$0xff] %v2440
        %2480 = vst [vmem:[%s2478 + $0x8] sm:$0xff] %v2441
        %s2481 = scalar_lea.vmem %s418, 112 [#allocation13]
        %2482 = vst [vmem:[%s2481] sm:$0xff] %v2476
        %2483 = vst [vmem:[%s2481 + $0x8] sm:$0xff] %v2477
        %2484 = vst [vmem:[#allocation2] sm:$0xff] %v2440
        %2485 = vst [vmem:[#allocation2 + $0x8] sm:$0xff] %v2441
        %2486 = vst [vmem:[#allocation3] sm:$0xff] %v2476
        %2487 = vst [vmem:[#allocation3 + $0x8] sm:$0xff] %v2477
        %s2488 = sand.u32 %s204, 1
        %s2489 = scalar_lea.sflag [#allocation6], %s2488
        %s2490 = sand.u32 %s204, 1
        %s2491 = smul.addr %s2490, 128
        %s2492 = scalar_lea.vmem [#allocation12], %s2491
        %s2493 = sand.u32 %s232, 1
        %s2494 = scalar_lea.sflag [#allocation14], %s2493
        %s2495 = sand.u32 %s232, 1
        %s2496 = smul.addr %s2495, 128
        %s2497 = scalar_lea.vmem [#allocation13], %s2496
        // Predicated region
        $region65: #{tpu_custom_call.1} parent=43 // pred_check
          %p2498 = pneg %p214
        $region66: #{tpu_custom_call.1} parent=43 // pred_check_branch
          %2500 = sbr.rel (%p2498) target = $region68
        $region67: #{tpu_custom_call.1} parent=43 // pred_region
          %s2501 = smul.u32 8, %s37
          %s2502 = smul.u32 2, %s36
          %s2504 = ssub.s32 2048, 2048
          %2505 = vsyncadd %s2489, %s2504
          %s2506 = smul.addr %s2501, 2
          %s2507 = sadd.s32 %s2502, %s2506
          %s2508 = smul.addr %s2507, 128
          %s2509 = scalar_lea.hbm %s6, %s2508
          %s2510 = sshll.u32 %s2492, 4
          %s2511 = int_to_ptr.vmem [resolvable:$true] %s2510
          %2516 = dma.vmem_to_hbm [thread:$0]  %s2511, 2048, %s2509, %s2489, 128, 128, 8
        $region68: #{tpu_custom_call.1} parent=43 // pred_fallthru
          _
        // Predicated region
        $region69: #{tpu_custom_call.1} parent=43 // pred_check
          %p2517 = pneg %p242
        $region70: #{tpu_custom_call.1} parent=43 // pred_check_branch
          %2519 = sbr.rel (%p2517) target = $region72
        $region71: #{tpu_custom_call.1} parent=43 // pred_region
          %s2520 = smul.u32 8, %s37
          %s2521 = smul.u32 2, %s36
          %s2523 = ssub.s32 2048, 2048
          %2524 = vsyncadd %s2494, %s2523
          %s2525 = smul.addr %s2520, 2
          %s2526 = sadd.s32 %s2521, %s2525
          %s2527 = smul.addr %s2526, 128
          %s2528 = scalar_lea.hbm %s7, %s2527
          %s2529 = sshll.u32 %s2497, 4
          %s2530 = int_to_ptr.vmem [resolvable:$true] %s2529
          %2535 = dma.vmem_to_hbm [thread:$0]  %s2530, 2048, %s2528, %s2494, 128, 128, 8
        $region72: #{tpu_custom_call.1} parent=43 // pred_fallthru
          _
      $region44: #{tpu_custom_call.1} parent=5 // pred_fallthru
        _
      %p2536 = scmp.le.s32.totalorder 2, %s27
      // Predicated region
      $region73: #{tpu_custom_call.1} parent=5 // pred_check
        %p2537 = pneg %p2536
      $region74: #{tpu_custom_call.1} parent=5 // pred_check_branch
        %2539 = sbr.rel (%p2537) target = $region76
      $region75: #{tpu_custom_call.1} parent=5 // pred_region
        %s2540 = ssub.s32 %s27, 2
        // Predicated region
        $region77: #{tpu_custom_call.1} parent=75 // pred_check
          %p2541 = pneg %p220
        $region78: #{tpu_custom_call.1} parent=75 // pred_check_branch
          %2543 = sbr.rel (%p2541) target = $region80
        $region79: #{tpu_custom_call.1} parent=75 // pred_region
          %s2544 = sand.u32 %s205, 1
          %s2545 = scalar_lea.sflag [#allocation6], %s2544
          %s2546 = sand.u32 %s205, 1
          %s2547 = smul.addr %s2546, 128
          %s2548 = scalar_lea.vmem [#allocation12], %s2547
          %2549 = dma.done %s2545, 2048
        $region80: #{tpu_custom_call.1} parent=75 // pred_fallthru
          _
        // Predicated region
        $region81: #{tpu_custom_call.1} parent=75 // pred_check
          %p2550 = pneg %p248
        $region82: #{tpu_custom_call.1} parent=75 // pred_check_branch
          %2552 = sbr.rel (%p2550) target = $region84
        $region83: #{tpu_custom_call.1} parent=75 // pred_region
          %s2553 = sand.u32 %s233, 1
          %s2554 = scalar_lea.sflag [#allocation14], %s2553
          %s2555 = sand.u32 %s233, 1
          %s2556 = smul.addr %s2555, 128
          %s2557 = scalar_lea.vmem [#allocation13], %s2556
          %2558 = dma.done %s2554, 2048
        $region84: #{tpu_custom_call.1} parent=75 // pred_fallthru
          _
      $region76: #{tpu_custom_call.1} parent=5 // pred_fallthru
        _
    $region6: #{tpu_custom_call.1} parent=1 // loop_footer
      %s31 = sadd.s32 1, %s27
    $region7: #{tpu_custom_call.1} parent=1 // loop_footer_branch
      %26 = sbr.rel target = $region3
    $region8: #{tpu_custom_call.1} parent=1 // loop_exit
      _
    %2559 = vsyncpa [#allocation5], 1
    %s2560 = scalar_lea.sflag [#allocation5], 1
    %2561 = vsyncpa %s2560, 1
    %2562 = vsyncpa [#allocation8], 1
    %s2563 = scalar_lea.sflag [#allocation8], 1
    %2564 = vsyncpa %s2563, 1
    %2565 = vsyncpa [#allocation11], 1
    %2566 = vsyncpa [#allocation6], 1
    %s2567 = scalar_lea.sflag [#allocation6], 1
    %2568 = vsyncpa %s2567, 1
    %2569 = vsyncpa [#allocation14], 1
    %s2570 = scalar_lea.sflag [#allocation14], 1
    %2571 = vsyncpa %s2570, 1

</llo_original>
